<compile_context>
chip_gen: v7x
topology: tpu7x:2x2x1
jax: 0.10.0
libtpu: 0.0.40
codegen_flags: <defaults>
</compile_context>

<pallas_src>
import jax
import jax.numpy as jnp
from jax.experimental import pallas as pl
from jax.experimental.pallas import tpu as pltpu

BN_EPS = 1e-5
NORM_EPS = 1e-12


def _round_up(x, m):
    return ((x + m - 1) // m) * m


def _choose_tn(n, cap=256):
    """Row tile: big (MXU-friendly), but >= 2 grid steps when N permits (v7x dual-TC)."""
    if n <= 8:
        return n                       # full-extent block is always legal
    tn = _round_up((n + 1) // 2, 8)    # ceil(N/2) rounded up to sublane multiple
    return max(8, min(cap, tn))


def _choose_tc(c, cap=512):
    """Class tile: either the full C (if small) or a 128-multiple chunk."""
    return min(c, cap)


def irnet_head_kernel(x_ref, w_ref, b_ref, gnorm_ref, cls_ref):
    x = x_ref[...]                                            # (tn, D) f32

    # --- classifier with folded BN: cls = x @ W' + b' (bf16 MXU, f32 accumulate) ---
    cls_ref[...] = (
        jnp.dot(x.astype(jnp.bfloat16), w_ref[...],
                preferred_element_type=jnp.float32)
        + b_ref[...]
    )

    # --- L2-normalize the *pre-BN* features; only once per row tile (j == 0) ---
    @pl.when(pl.program_id(1) == 0)
    def _():
        sq = jnp.sum(x * x, axis=-1, keepdims=True)           # (tn, 1)
        inv = pl.reciprocal(jnp.sqrt(sq) + NORM_EPS, approx=False)
        gnorm_ref[...] = x * inv


def prepare_irnet_head_params(gamma, beta, run_mean, run_var, cls_weight):
    """Fold BatchNorm1d into the bias-free classifier. Do this once at model load.

    cls_weight is in PyTorch Linear layout (C, D). Returns (W' as (D, C) bf16, b' as (1, C) f32).
    """
    scale = gamma * jax.lax.rsqrt(run_var + BN_EPS)            # (D,)
    shift = beta - run_mean * scale                            # (D,)
    w_folded = scale[:, None] * cls_weight.T                   # (D, C) f32
    b_folded = (shift @ cls_weight.T).reshape(1, -1)           # (1, C) f32
    return w_folded.astype(jnp.bfloat16), b_folded.astype(jnp.float32)


def irnet_head(global_feat, w_folded, b_folded, *, tn=None, tc=None):
    """global_feat: (N, D) f32; w_folded: (D, C) bf16; b_folded: (1, C) f32."""
    N, D = global_feat.shape
    Dw, C = w_folded.shape
    assert Dw == D

    tn = _choose_tn(N) if tn is None else tn
    tc = _choose_tc(C) if tc is None else tc
    grid = (pl.cdiv(N, tn), pl.cdiv(C, tc))

    gnorm, cls = pl.pallas_call(
        irnet_head_kernel,
        out_shape=(jax.ShapeDtypeStruct((N, D), jnp.float32),
                   jax.ShapeDtypeStruct((N, C), jnp.float32)),
        grid_spec=pltpu.PrefetchScalarGridSpec(
            num_scalar_prefetch=0,
            grid=grid,
            in_specs=[
                pl.BlockSpec((tn, D), lambda i, j: (i, 0)),    # global_feat row tile
                pl.BlockSpec((D, tc), lambda i, j: (0, j)),    # folded weight (D, tc) bf16
                pl.BlockSpec((1, tc), lambda i, j: (0, j)),    # folded bias
            ],
            out_specs=[
                pl.BlockSpec((tn, D), lambda i, j: (i, 0)),    # normalized global_feat
                pl.BlockSpec((tn, tc), lambda i, j: (i, j)),   # cls_score
            ],
        ),
        compiler_params=pltpu.CompilerParams(
            # rows parallel (v7x megacore); class axis revisits the gnorm block -> arbitrary
            dimension_semantics=("parallel", "arbitrary")),
    )(global_feat, w_folded, b_folded)
    return gnorm, cls


def reference(global_feat, gamma, beta, run_mean, run_var, cls_weight):
    feat = (global_feat - run_mean) / jnp.sqrt(run_var + BN_EPS) * gamma + beta
    norm = jnp.linalg.norm(global_feat, ord=2, axis=-1, keepdims=True)
    gnorm = global_feat / (norm + NORM_EPS)
    cls = feat @ cls_weight.T
    return gnorm, cls


if __name__ == "__main__":
    key = jax.random.PRNGKey(0)
    # 24 RoIs, 2048-d features (the module hardcodes 2048), 640 identity classes.
    # Shapes chosen to exercise: 2 row tiles (one ragged) and 2 class tiles.
    N, D, C = 24, 2048, 640

    k0, k1, k2, k3 = jax.random.split(key, 4)
    # "global_feat" = flattened output of bbox_roi_extractor (simulated input here).
    global_feat = jax.random.normal(k0, (N, D), dtype=jnp.float32)

    # BatchNorm1d(2048): gamma=1, beta=0 (bias frozen), synthetic running stats.
    gamma = jnp.ones((D,), dtype=jnp.float32)
    beta = jnp.zeros((D,), dtype=jnp.float32)
    run_mean = 0.05 * jax.random.normal(k1, (D,), dtype=jnp.float32)
    run_var = 1.0 + 0.1 * jax.nn.sigmoid(jax.random.normal(k2, (D,), dtype=jnp.float32))

    # classifier: Linear(2048, num_classes, bias=False), kaiming_normal_(mode='fan_out')
    cls_weight = jax.random.normal(k3, (C, D), dtype=jnp.float32) * jnp.sqrt(2.0 / C)

    # One-time BN fold + transpose + bf16 cast (done at "model load", not per call).
    w_folded, b_folded = prepare_irnet_head_params(gamma, beta, run_mean, run_var, cls_weight)

    gnorm, cls = irnet_head(global_feat, w_folded, b_folded)
    gnorm = jax.block_until_ready(gnorm)
    cls = jax.block_until_ready(cls)

    gnorm_ref, cls_ref = reference(global_feat, gamma, beta, run_mean, run_var, cls_weight)
    # gnorm is pure f32.
    assert jnp.allclose(gnorm, gnorm_ref, atol=1e-5, rtol=1e-5)
    # cls uses bf16 MXU operands with f32 accumulation -> wider tolerance vs f32 reference.
    assert jnp.allclose(cls, cls_ref, atol=5e-2, rtol=5e-2)

    print("KERNEL_OK")
</pallas_src>

<mosaic_0001>
module attributes {stable_mosaic.version = 11 : i64} {
  func.func @irnet_head_kernel(%arg0: i32, %arg1: i32, %arg2: memref<16x2048xf32, #tpu.memory_space<vmem>>, %arg3: memref<2048x512xbf16, #tpu.memory_space<vmem>>, %arg4: memref<1x512xf32, #tpu.memory_space<vmem>>, %arg5: memref<16x2048xf32, #tpu.memory_space<vmem>>, %arg6: memref<16x512xf32, #tpu.memory_space<vmem>>) attributes {dimension_semantics = [#tpu.dimension_semantics<parallel>, #tpu.dimension_semantics<arbitrary>], iteration_bounds = array<i64: 2, 2>, scalar_prefetch = 0 : i64, scratch_operands = 0 : i64, tpu.core_type = #tpu.core_type<tc>, window_params = [{transform_indices = @transform_0, window_bounds = array<i64: 16, 2048>}, {transform_indices = @transform_1, window_bounds = array<i64: 2048, 512>}, {transform_indices = @transform_2, window_bounds = array<i64: 1, 512>}, {transform_indices = @transform_3, window_bounds = array<i64: 16, 2048>}, {transform_indices = @transform_4, window_bounds = array<i64: 16, 512>}]} {
    %c0 = arith.constant 0 : index
    %c0_0 = arith.constant 0 : index
    %0 = vector.load %arg2[%c0, %c0_0] : memref<16x2048xf32, #tpu.memory_space<vmem>>, vector<16x2048xf32>
    %1 = arith.truncf %0 : vector<16x2048xf32> to vector<16x2048xbf16>
    %c0_1 = arith.constant 0 : index
    %c0_2 = arith.constant 0 : index
    %2 = vector.load %arg3[%c0_1, %c0_2] : memref<2048x512xbf16, #tpu.memory_space<vmem>>, vector<2048x512xbf16>
    %cst = arith.constant dense<0.000000e+00> : vector<16x512xf32>
    %3 = tpu.matmul %1, %2, %cst {dimension_numbers = #tpu.dot_dimension_numbers<[1], [0], [0], [1], [0, 0, 1, 1], [], []>} : vector<16x2048xbf16>, vector<2048x512xbf16>, vector<16x512xf32> -> vector<16x512xf32>
    %c0_3 = arith.constant 0 : index
    %c0_4 = arith.constant 0 : index
    %4 = vector.load %arg4[%c0_3, %c0_4] : memref<1x512xf32, #tpu.memory_space<vmem>>, vector<1x512xf32>
    %5 = vector.broadcast %4 : vector<1x512xf32> to vector<16x512xf32>
    %6 = arith.addf %3, %5 : vector<16x512xf32>
    %c0_5 = arith.constant 0 : index
    %c0_6 = arith.constant 0 : index
    %7 = vector.load %arg6[%c0_5, %c0_6] : memref<16x512xf32, #tpu.memory_space<vmem>>, vector<16x512xf32>
    tpu.vector_store %arg6[%c0_5, %c0_6], %6 {strides = array<i32>} : memref<16x512xf32, #tpu.memory_space<vmem>>, vector<16x512xf32>,
    %c0_i32 = arith.constant 0 : i32
    %8 = arith.cmpi eq, %arg1, %c0_i32 : i32
    %9 = arith.extui %8 : i1 to i32
    %c0_i32_7 = arith.constant 0 : i32
    %10 = arith.cmpi ne, %9, %c0_i32_7 : i32
    scf.if %10 {
      %11 = arith.mulf %0, %0 : vector<16x2048xf32>
      %cst_8 = arith.constant dense<0.000000e+00> : vector<16xf32>
      %12 = vector.multi_reduction <add>, %11, %cst_8 [1] : vector<16x2048xf32> to vector<16xf32>
      %13 = vector.shape_cast %12 : vector<16xf32> to vector<16x1xf32>
      %14 = math.sqrt %13 : vector<16x1xf32>
      %cst_9 = arith.constant 9.99999996E-13 : f32
      %15 = vector.broadcast %cst_9 : f32 to vector<16x1xf32>
      %16 = arith.addf %14, %15 : vector<16x1xf32>
      %17 = tpu.reciprocal %16 : vector<16x1xf32> -> vector<16x1xf32>
      %18 = vector.broadcast %17 : vector<16x1xf32> to vector<16x2048xf32>
      %19 = arith.mulf %0, %18 : vector<16x2048xf32>
      %c0_10 = arith.constant 0 : index
      %c0_11 = arith.constant 0 : index
      %20 = vector.load %arg5[%c0_10, %c0_11] : memref<16x2048xf32, #tpu.memory_space<vmem>>, vector<16x2048xf32>
      tpu.vector_store %arg5[%c0_10, %c0_11], %19 {strides = array<i32>} : memref<16x2048xf32, #tpu.memory_space<vmem>>, vector<16x2048xf32>,
    } else {
    }
    return
  }
  func.func @transform_0(%arg0: i32, %arg1: i32) -> (i32, i32) {
    %c0_i32 = arith.constant 0 : i32
    %c0_i32_0 = arith.constant 0 : i32
    return %arg0, %c0_i32 : i32, i32
  }
  func.func @transform_1(%arg0: i32, %arg1: i32) -> (i32, i32) {
    %c0_i32 = arith.constant 0 : i32
    %c0_i32_0 = arith.constant 0 : i32
    return %c0_i32, %arg1 : i32, i32
  }
  func.func @transform_2(%arg0: i32, %arg1: i32) -> (i32, i32) {
    %c0_i32 = arith.constant 0 : i32
    %c0_i32_0 = arith.constant 0 : i32
    return %c0_i32, %arg1 : i32, i32
  }
  func.func @transform_3(%arg0: i32, %arg1: i32) -> (i32, i32) {
    %c0_i32 = arith.constant 0 : i32
    %c0_i32_0 = arith.constant 0 : i32
    return %arg0, %c0_i32 : i32, i32
  }
  func.func @transform_4(%arg0: i32, %arg1: i32) -> (i32, i32) {
    %c0_i32 = arith.constant 0 : i32
    return %arg0, %arg1 : i32, i32
  }
}

</mosaic_0001>

<llo_original>
// kernel: tpu_custom_call.1
$region0: #{tpu_custom_call.1}
  #allocation0 [shape = 'u32[]', space=smem, size = 0x4, offset = 0x4, fixed_abs, tag = 'smem constant byte address 0x4 - core index']
  #allocation1 [shape = 'u32[144,128]{1,0:T(1,128)}', space=vmem, size = 0x12000, scoped, tag = 'internal scratch']
  %s0 = inlined_call_operand.hbm [shape: f32[24,2048], index: 0, kind: input, shape index: {}]
  %s1 = inlined_call_operand.hbm [shape: bf16[2048,640], index: 1, kind: input, shape index: {}]
  %s2 = inlined_call_operand.hbm [shape: f32[1,640], index: 2, kind: input, shape index: {}]
  %s3 = inlined_call_operand.hbm [shape: f32[24,2048], index: 3, kind: output, shape index: {0}]
  %s4 = inlined_call_operand.hbm [shape: f32[24,640], index: 4, kind: output, shape index: {1}]
  %5 = xla_tuple %s3, %s4
  %s6 = sld [smem:[#allocation0]]
  $region69: #{tpu_custom_call.1} parent=0
    _
  %s8 = ssub.s32 1, %s6
  %s9 = scalar_select 0, %s8, %s6
  $region1: #{tpu_custom_call.1} parent=0
    #allocation2 [shape = 'u8[262144]{0}', space=vmem, size = 0x40000, scoped, tag = 'input window, operand 0']
    #allocation3 [shape = 's32[2]{0}', space=sflag, size = 0x8, scoped, tag = 'scoped memory for tpu_custom_call.1']
    #allocation4 [shape = 's32[2]{0}', space=sflag, size = 0x8, scoped, tag = 'scoped memory for tpu_custom_call.1']
    #allocation5 [shape = 'u8[4194304]{0}', space=vmem, size = 0x400000, scoped, tag = 'input window, operand 1']
    #allocation6 [shape = 's32[2]{0}', space=sflag, size = 0x8, scoped, tag = 'scoped memory for tpu_custom_call.1']
    #allocation7 [shape = 'u8[4096]{0}', space=vmem, size = 0x1000, scoped, tag = 'input window, operand 2']
    #allocation8 [shape = 'u8[262144]{0}', space=vmem, size = 0x40000, scoped, tag = 'output window, operand 0']
    #allocation9 [shape = 'u8[65536]{0}', space=vmem, size = 0x10000, scoped, tag = 'output window, operand 1']
    #allocation10 [shape = 's32[2]{0}', space=sflag, size = 0x8, scoped, tag = 'scoped memory for tpu_custom_call.1']
    %10 = vsyncpa [#allocation3], 0
    %s11 = scalar_lea.sflag [#allocation3], 1
    %12 = vsyncpa %s11, 0
    %13 = vsyncpa [#allocation6], 0
    %s14 = scalar_lea.sflag [#allocation6], 1
    %15 = vsyncpa %s14, 0
    %16 = vsyncpa [#allocation4], 0
    %s17 = scalar_lea.sflag [#allocation4], 1
    %18 = vsyncpa %s17, 0
    %19 = vsyncpa [#allocation10], 0
    %s20 = scalar_lea.sflag [#allocation10], 1
    %21 = vsyncpa %s20, 0
    loop: start=0, step=1, limit=6
    $region2: #{tpu_custom_call.1} parent=1 // loop_pre_header
      _
    $region3: #{tpu_custom_call.1} parent=1 // loop_header
      %s23 = sphi 0, %s27
      %p24 = scmp.ge.s32.totalorder %s23, 6
      %s30 = sphi 0, %s42
      %s31 = sphi 0, %s38
      %s32 = sphi 0, %s30
      %s33 = sphi 0, %s31
      %s34 = sphi 0, %s32
      %s35 = sphi 0, %s33
      %s45 = sphi 0, %s47
      %s48 = sphi 0, %s45
      %s49 = sphi 0, %s48
      %s65 = sphi 0, %s49
      %s71 = sphi 0, %s73
      %s74 = sphi 0, %s71
      %s75 = sphi 0, %s74
      %s91 = sphi 0, %s75
      %s97 = sphi 0, %s99
      %s100 = sphi 0, %s97
      %s101 = sphi 0, %s100
      %s117 = sphi 0, %s101
      %s123 = sphi 0, %s125
      %s126 = sphi 0, %s123
      %s127 = sphi 0, %s126
      %s143 = sphi 0, %s127
      %s151 = sphi 0, %s153
      %s154 = sphi 0, %s151
      %s155 = sphi 0, %s154
      %s171 = sphi 0, %s155
    $region4: #{tpu_custom_call.1} parent=1 // loop_header_branch
      %26 = sbr.rel (%p24) target = $region8
    $region5: #{tpu_custom_call.1} parent=1 // loop_body
      %s28 = ssub.s32 %s23, 1
      %s29 = ssub.s32 %s23, 2
      %s36 = sadd.s32 1, %s31
      %p37 = scmp.ge.s32.totalorder %s36, 2
      %s38 = scalar_select %p37, 0, %s36
      %s39 = sadd.s32 1, %s30
      %s40 = scalar_select %p37, %s39, %s30
      %p41 = scmp.ge.s32.totalorder %s40, 2
      %s42 = scalar_select %p41, 0, %s40
      %s43 = ssub.s32 %s30, %s42
      %p44 = scmp.eq.s32.totalorder %s43, 0
      %s46 = sadd.s32 %s45, 1
      %s47 = scalar_select %p44, %s45, %s46
      %p50 = pneg %p44
      %p51 = scmp.eq.s32.totalorder %s23, 3
      %p52 = por %p50, %p51
      %p53 = scmp.ne.s32.totalorder %s45, %s48
      %p54 = scmp.eq.s32.totalorder %s23, 0
      %p55 = por %p53, %p54
      %p56 = scmp.ne.s32.totalorder %s45, %s48
      %p57 = scmp.eq.s32.totalorder %s28, 3
      %p58 = por %p56, %p57
      %p59 = scmp.ne.s32.totalorder %s48, %s49
      %p60 = scmp.eq.s32.totalorder %s28, 0
      %p61 = por %p59, %p60
      %p62 = scmp.ne.s32.totalorder %s48, %s49
      %p63 = scmp.eq.s32.totalorder %s29, 3
      %p64 = por %p62, %p63
      %p66 = scmp.ne.s32.totalorder %s49, %s65
      %p67 = scmp.eq.s32.totalorder %s29, 0
      %p68 = por %p66, %p67
      %s69 = ssub.s32 %s31, %s38
      %p70 = scmp.eq.s32.totalorder %s69, 0
      %s72 = sadd.s32 %s71, 1
      %s73 = scalar_select %p70, %s71, %s72
      %p76 = pneg %p70
      %p77 = scmp.eq.s32.totalorder %s23, 3
      %p78 = por %p76, %p77
      %p79 = scmp.ne.s32.totalorder %s71, %s74
      %p80 = scmp.eq.s32.totalorder %s23, 0
      %p81 = por %p79, %p80
      %p82 = scmp.ne.s32.totalorder %s71, %s74
      %p83 = scmp.eq.s32.totalorder %s28, 3
      %p84 = por %p82, %p83
      %p85 = scmp.ne.s32.totalorder %s74, %s75
      %p86 = scmp.eq.s32.totalorder %s28, 0
      %p87 = por %p85, %p86
      %p88 = scmp.ne.s32.totalorder %s74, %s75
      %p89 = scmp.eq.s32.totalorder %s29, 3
      %p90 = por %p88, %p89
      %p92 = scmp.ne.s32.totalorder %s75, %s91
      %p93 = scmp.eq.s32.totalorder %s29, 0
      %p94 = por %p92, %p93
      %s95 = ssub.s32 %s31, %s38
      %p96 = scmp.eq.s32.totalorder %s95, 0
      %s98 = sadd.s32 %s97, 1
      %s99 = scalar_select %p96, %s97, %s98
      %p102 = pneg %p96
      %p103 = scmp.eq.s32.totalorder %s23, 3
      %p104 = por %p102, %p103
      %p105 = scmp.ne.s32.totalorder %s97, %s100
      %p106 = scmp.eq.s32.totalorder %s23, 0
      %p107 = por %p105, %p106
      %p108 = scmp.ne.s32.totalorder %s97, %s100
      %p109 = scmp.eq.s32.totalorder %s28, 3
      %p110 = por %p108, %p109
      %p111 = scmp.ne.s32.totalorder %s100, %s101
      %p112 = scmp.eq.s32.totalorder %s28, 0
      %p113 = por %p111, %p112
      %p114 = scmp.ne.s32.totalorder %s100, %s101
      %p115 = scmp.eq.s32.totalorder %s29, 3
      %p116 = por %p114, %p115
      %p118 = scmp.ne.s32.totalorder %s101, %s117
      %p119 = scmp.eq.s32.totalorder %s29, 0
      %p120 = por %p118, %p119
      %s121 = ssub.s32 %s30, %s42
      %p122 = scmp.eq.s32.totalorder %s121, 0
      %s124 = sadd.s32 %s123, 1
      %s125 = scalar_select %p122, %s123, %s124
      %p128 = pneg %p122
      %p129 = scmp.eq.s32.totalorder %s23, 3
      %p130 = por %p128, %p129
      %p131 = scmp.ne.s32.totalorder %s123, %s126
      %p132 = scmp.eq.s32.totalorder %s23, 0
      %p133 = por %p131, %p132
      %p134 = scmp.ne.s32.totalorder %s123, %s126
      %p135 = scmp.eq.s32.totalorder %s28, 3
      %p136 = por %p134, %p135
      %p137 = scmp.ne.s32.totalorder %s126, %s127
      %p138 = scmp.eq.s32.totalorder %s28, 0
      %p139 = por %p137, %p138
      %p140 = scmp.ne.s32.totalorder %s126, %s127
      %p141 = scmp.eq.s32.totalorder %s29, 3
      %p142 = por %p140, %p141
      %p144 = scmp.ne.s32.totalorder %s127, %s143
      %p145 = scmp.eq.s32.totalorder %s29, 0
      %p146 = por %p144, %p145
      %s147 = ssub.s32 %s30, %s42
      %s148 = ssub.s32 %s31, %s38
      %s149 = sor.u32 %s147, %s148
      %p150 = scmp.eq.s32.totalorder %s149, 0
      %s152 = sadd.s32 %s151, 1
      %s153 = scalar_select %p150, %s151, %s152
      %p156 = pneg %p150
      %p157 = scmp.eq.s32.totalorder %s23, 3
      %p158 = por %p156, %p157
      %p159 = scmp.ne.s32.totalorder %s151, %s154
      %p160 = scmp.eq.s32.totalorder %s23, 0
      %p161 = por %p159, %p160
      %p162 = scmp.ne.s32.totalorder %s151, %s154
      %p163 = scmp.eq.s32.totalorder %s28, 3
      %p164 = por %p162, %p163
      %p165 = scmp.ne.s32.totalorder %s154, %s155
      %p166 = scmp.eq.s32.totalorder %s28, 0
      %p167 = por %p165, %p166
      %p168 = scmp.ne.s32.totalorder %s154, %s155
      %p169 = scmp.eq.s32.totalorder %s29, 3
      %p170 = por %p168, %p169
      %p172 = scmp.ne.s32.totalorder %s155, %s171
      %p173 = scmp.eq.s32.totalorder %s29, 0
      %p174 = por %p172, %p173
      %p175 = scmp.le.s32.totalorder 1, %s23
      %p176 = scmp.lt.s32.totalorder %s23, 5
      %p177 = pnand %p175, %p176
      %p178 = pneg %p177
      // Predicated region
      $region9: #{tpu_custom_call.1} parent=5 // pred_check
        _
      $region10: #{tpu_custom_call.1} parent=5 // pred_check_branch
        %180 = sbr.rel (%p177) target = $region12
      $region11: #{tpu_custom_call.1} parent=5 // pred_region
        %s181 = ssub.s32 %s23, 1
      $region12: #{tpu_custom_call.1} parent=5 // pred_fallthru
        _
      %p182 = scmp.lt.s32.totalorder %s23, 4
      // Predicated region
      $region13: #{tpu_custom_call.1} parent=5 // pred_check
        %p183 = pneg %p182
      $region14: #{tpu_custom_call.1} parent=5 // pred_check_branch
        %185 = sbr.rel (%p183) target = $region16
      $region15: #{tpu_custom_call.1} parent=5 // pred_region
        // Predicated region
        $region17: #{tpu_custom_call.1} parent=15 // pred_check
          %p186 = pneg %p55
        $region18: #{tpu_custom_call.1} parent=15 // pred_check_branch
          %188 = sbr.rel (%p186) target = $region20
        $region19: #{tpu_custom_call.1} parent=15 // pred_region
          %s189 = sand.u32 %s45, 1
          %s190 = scalar_lea.sflag [#allocation3], %s189
          %s191 = sand.u32 %s45, 1
          %s192 = smul.addr %s191, 256
          %s193 = scalar_lea.vmem [#allocation2], %s192
          %s194 = smul.u32 2, %s30
          %s195 = ssub.s32 3, %s194
          %p196 = scmp.lt.s32.totalorder %s195, 2
          %s197 = scalar_select %p196, %s195, 2
          %s198 = smul.u32 128, %s197
          %s199 = smul.u32 %s198, 16
          %s201 = ssub.s32 4096, %s199
          %202 = vsyncadd %s190, %s201
          %p203 = scmp.ne.s32.totalorder 0, %s199
          %s204 = smul.addr %s194, 16
          %s205 = smul.addr %s204, 128
          %s206 = scalar_lea.hbm %s0, %s205
          %s207 = smul.u32 128, %s197
          %s208 = sshll.u32 %s193, 4
          %s209 = int_to_ptr.vmem [resolvable:$true] %s208
          %s210 = sshll.u32 %s207, 4
          %214 = dma.hbm_to_vmem [thread:$0]  (%p203), %s206, %s210, %s209, %s190, 2048, 2048, 128
        $region20: #{tpu_custom_call.1} parent=15 // pred_fallthru
          _
        // Predicated region
        $region21: #{tpu_custom_call.1} parent=15 // pred_check
          %p215 = pneg %p81
        $region22: #{tpu_custom_call.1} parent=15 // pred_check_branch
          %217 = sbr.rel (%p215) target = $region24
        $region23: #{tpu_custom_call.1} parent=15 // pred_region
          %s218 = sand.u32 %s23, 1
          %s219 = scalar_lea.sflag [#allocation6], %s218
          %s220 = sand.u32 %s71, 1
          %s221 = smul.addr %s220, 4096
          %s222 = scalar_lea.vmem [#allocation5], %s221
          %s223 = smul.u32 4, %s31
          %s224 = ssub.s32 5, %s223
          %p225 = scmp.lt.s32.totalorder %s224, 4
          %s226 = scalar_select %p225, %s224, 4
          %s227 = smul.u32 16384, %s226
          %s229 = ssub.s32 65536, %s227
          %230 = vsyncadd %s219, %s229
          %p231 = scmp.ne.s32.totalorder 0, %s227
          %s232 = smul.addr %s223, 64
          %s233 = scalar_lea.hbm %s1, %s232
          %s234 = smul.u32 %s226, 4
          %s235 = smul.u32 %s234, 256
          %s236 = sshll.u32 %s222, 4
          %s237 = int_to_ptr.vmem [resolvable:$true] %s236
          %s238 = sshll.u32 %s235, 4
          %242 = dma.hbm_to_vmem [thread:$0]  (%p231), %s233, %s238, %s237, %s219, 320, 256, %s234
        $region24: #{tpu_custom_call.1} parent=15 // pred_fallthru
          _
        // Predicated region
        $region25: #{tpu_custom_call.1} parent=15 // pred_check
          %p243 = pneg %p107
        $region26: #{tpu_custom_call.1} parent=15 // pred_check_branch
          %245 = sbr.rel (%p243) target = $region28
        $region27: #{tpu_custom_call.1} parent=15 // pred_region
          %s246 = sand.u32 %s23, 1
          %s247 = scalar_lea.sflag [#allocation6], %s246
          %s248 = sand.u32 %s97, 1
          %s249 = smul.addr %s248, 4
          %s250 = scalar_lea.vmem [#allocation7], %s249
          %s251 = smul.u32 4, %s31
          %s252 = ssub.s32 5, %s251
          %p253 = scmp.lt.s32.totalorder %s252, 4
          %s254 = scalar_select %p253, %s252, 4
          %s255 = smul.u32 16, %s254
          %s257 = ssub.s32 64, %s255
          %258 = vsyncadd %s247, %s257
          %p259 = scmp.ne.s32.totalorder 0, %s255
          %s260 = smul.addr %s251, 16
          %s261 = scalar_lea.hbm %s2, %s260
          %s262 = sshll.u32 %s254, 4
          %s263 = sshll.u32 %s250, 4
          %s264 = int_to_ptr.vmem [resolvable:$true] %s263
          %266 = dma.hbm_to_vmem [thread:$0]  (%p259), %s261, %s262, %s264, %s247
        $region28: #{tpu_custom_call.1} parent=15 // pred_fallthru
          _
      $region16: #{tpu_custom_call.1} parent=5 // pred_fallthru
        _
      %p267 = scmp.le.s32.totalorder 1, %s23
      %p268 = scmp.lt.s32.totalorder %s23, 5
      %p269 = pnand %p267, %p268
      %p270 = pneg %p269
      // Predicated region
      $region29: #{tpu_custom_call.1} parent=5 // pred_check
        _
      $region30: #{tpu_custom_call.1} parent=5 // pred_check_branch
        %272 = sbr.rel (%p269) target = $region32
      $region31: #{tpu_custom_call.1} parent=5 // pred_region
        %s273 = ssub.s32 %s23, 1
        %s274 = sand.u32 %s48, 1
        %s275 = scalar_lea.sflag [#allocation3], %s274
        %s276 = sand.u32 %s48, 1
        %s277 = smul.addr %s276, 256
        %s278 = scalar_lea.vmem [#allocation2], %s277
        // Predicated region
        $region33: #{tpu_custom_call.1} parent=31 // pred_check
          %p279 = pneg %p61
        $region34: #{tpu_custom_call.1} parent=31 // pred_check_branch
          %281 = sbr.rel (%p279) target = $region36
        $region35: #{tpu_custom_call.1} parent=31 // pred_region
          %282 = dma.done %s275, 4096
        $region36: #{tpu_custom_call.1} parent=31 // pred_fallthru
          _
        %s283 = sand.u32 %s28, 1
        %s284 = scalar_lea.sflag [#allocation6], %s283
        %s285 = sand.u32 %s74, 1
        %s286 = smul.addr %s285, 4096
        %s287 = scalar_lea.vmem [#allocation5], %s286
        // Predicated region
        $region37: #{tpu_custom_call.1} parent=31 // pred_check
          %p288 = pneg %p87
        $region38: #{tpu_custom_call.1} parent=31 // pred_check_branch
          %290 = sbr.rel (%p288) target = $region40
        $region39: #{tpu_custom_call.1} parent=31 // pred_region
          %291 = dma.done %s284, 65536
        $region40: #{tpu_custom_call.1} parent=31 // pred_fallthru
          _
        %s292 = sand.u32 %s28, 1
        %s293 = scalar_lea.sflag [#allocation6], %s292
        %s294 = sand.u32 %s100, 1
        %s295 = smul.addr %s294, 4
        %s296 = scalar_lea.vmem [#allocation7], %s295
        // Predicated region
        $region41: #{tpu_custom_call.1} parent=31 // pred_check
          %p297 = pneg %p113
        $region42: #{tpu_custom_call.1} parent=31 // pred_check_branch
          %299 = sbr.rel (%p297) target = $region44
        $region43: #{tpu_custom_call.1} parent=31 // pred_region
          %300 = dma.done %s293, 64
        $region44: #{tpu_custom_call.1} parent=31 // pred_fallthru
          _
        %s301 = sand.u32 %s48, 1
        %s302 = scalar_lea.sflag [#allocation3], %s301
        %s303 = sand.u32 %s48, 1
        %s304 = smul.addr %s303, 256
        %s305 = scalar_lea.vmem [#allocation2], %s304
        %p306 = pneg %p61
        %p307 = pneg %p58
        %s308 = sand.u32 %s28, 1
        %s309 = scalar_lea.sflag [#allocation6], %s308
        %s310 = sand.u32 %s74, 1
        %s311 = smul.addr %s310, 4096
        %s312 = scalar_lea.vmem [#allocation5], %s311
        %p313 = pneg %p87
        %p314 = pneg %p84
        %s315 = sand.u32 %s28, 1
        %s316 = scalar_lea.sflag [#allocation6], %s315
        %s317 = sand.u32 %s100, 1
        %s318 = smul.addr %s317, 4
        %s319 = scalar_lea.vmem [#allocation7], %s318
        %p320 = pneg %p113
        %p321 = pneg %p110
        %p322 = pneg %p139
        %p323 = pneg %p136
        %s324 = sand.u32 %s126, 1
        %s325 = scalar_lea.sflag [#allocation4], %s324
        %s326 = sand.u32 %s126, 1
        %s327 = smul.addr %s326, 256
        %s328 = scalar_lea.vmem [#allocation8], %s327
        %p329 = pneg %p167
        %p330 = pneg %p164
        %s331 = sand.u32 %s154, 1
        %s332 = scalar_lea.sflag [#allocation10], %s331
        %s333 = sand.u32 %s154, 1
        %s334 = smul.addr %s333, 64
        %s335 = scalar_lea.vmem [#allocation9], %s334
        %s336 = smul.u32 2, %s32
        %s337 = ssub.s32 3, %s336
        %p338 = scmp.lt.s32.totalorder %s337, 2
        %s339 = scalar_select %p338, %s337, 2
        %s340 = smul.u32 128, %s339
        %s341 = smul.u32 %s340, 16
        %s342 = smul.u32 4, %s33
        %s343 = ssub.s32 5, %s342
        %p344 = scmp.lt.s32.totalorder %s343, 4
        %s345 = scalar_select %p344, %s343, 4
        %s346 = smul.u32 16384, %s345
        %s347 = smul.u32 4, %s33
        %s348 = ssub.s32 5, %s347
        %p349 = scmp.lt.s32.totalorder %s348, 4
        %s350 = scalar_select %p349, %s348, 4
        %s351 = smul.u32 16, %s350
        %s352 = smul.u32 2, %s32
        %s353 = ssub.s32 3, %s352
        %p354 = scmp.lt.s32.totalorder %s353, 2
        %s355 = scalar_select %p354, %s353, 2
        %s356 = smul.u32 128, %s355
        %s357 = smul.u32 %s356, 16
        %s358 = smul.u32 2, %s32
        %s359 = smul.u32 4, %s33
        %s360 = ssub.s32 3, %s358
        %p361 = scmp.lt.s32.totalorder %s360, 2
        %s362 = scalar_select %p361, %s360, 2
        %s363 = smul.u32 128, %s362
        %s364 = ssub.s32 5, %s359
        %p365 = scmp.lt.s32.totalorder %s364, 4
        %s366 = scalar_select %p365, %s364, 4
        %s367 = smul.u32 %s363, %s366
        %v368 = vld [vmem:[%s278] sm:$0xff]
        %v369 = vld [vmem:[%s278 + $0x8] sm:$0xff]
        %v370 = vld [vmem:[%s278 + $0x10] sm:$0xff]
        %v371 = vld [vmem:[%s278 + $0x18] sm:$0xff]
        %v372 = vld [vmem:[%s278 + $0x20] sm:$0xff]
        %v373 = vld [vmem:[%s278 + $0x28] sm:$0xff]
        %v374 = vld [vmem:[%s278 + $0x30] sm:$0xff]
        %v375 = vld [vmem:[%s278 + $0x38] sm:$0xff]
        %v376 = vld [vmem:[%s278 + $0x40] sm:$0xff]
        %v377 = vld [vmem:[%s278 + $0x48] sm:$0xff]
        %v378 = vld [vmem:[%s278 + $0x50] sm:$0xff]
        %v379 = vld [vmem:[%s278 + $0x58] sm:$0xff]
        %v380 = vld [vmem:[%s278 + $0x60] sm:$0xff]
        %v381 = vld [vmem:[%s278 + $0x68] sm:$0xff]
        %v382 = vld [vmem:[%s278 + $0x70] sm:$0xff]
        %v383 = vld [vmem:[%s278 + $0x78] sm:$0xff]
        %v384 = vld [vmem:[%s278 + $0x80] sm:$0xff]
        %v385 = vld [vmem:[%s278 + $0x88] sm:$0xff]
        %v386 = vld [vmem:[%s278 + $0x90] sm:$0xff]
        %v387 = vld [vmem:[%s278 + $0x98] sm:$0xff]
        %v388 = vld [vmem:[%s278 + $0xa0] sm:$0xff]
        %v389 = vld [vmem:[%s278 + $0xa8] sm:$0xff]
        %v390 = vld [vmem:[%s278 + $0xb0] sm:$0xff]
        %v391 = vld [vmem:[%s278 + $0xb8] sm:$0xff]
        %v392 = vld [vmem:[%s278 + $0xc0] sm:$0xff]
        %v393 = vld [vmem:[%s278 + $0xc8] sm:$0xff]
        %v394 = vld [vmem:[%s278 + $0xd0] sm:$0xff]
        %v395 = vld [vmem:[%s278 + $0xd8] sm:$0xff]
        %v396 = vld [vmem:[%s278 + $0xe0] sm:$0xff]
        %v397 = vld [vmem:[%s278 + $0xe8] sm:$0xff]
        %v398 = vld [vmem:[%s278 + $0xf0] sm:$0xff]
        %v399 = vld [vmem:[%s278 + $0xf8] sm:$0xff]
        %v400 = vpack.c.bf16 %v384, %v368
        %v401 = vpack.c.bf16 %v385, %v369
        %v402 = vpack.c.bf16 %v386, %v370
        %v403 = vpack.c.bf16 %v387, %v371
        %v404 = vpack.c.bf16 %v388, %v372
        %v405 = vpack.c.bf16 %v389, %v373
        %v406 = vpack.c.bf16 %v390, %v374
        %v407 = vpack.c.bf16 %v391, %v375
        %v408 = vpack.c.bf16 %v392, %v376
        %v409 = vpack.c.bf16 %v393, %v377
        %v410 = vpack.c.bf16 %v394, %v378
        %v411 = vpack.c.bf16 %v395, %v379
        %v412 = vpack.c.bf16 %v396, %v380
        %v413 = vpack.c.bf16 %v397, %v381
        %v414 = vpack.c.bf16 %v398, %v382
        %v415 = vpack.c.bf16 %v399, %v383
        %v416 = vld [vmem:[%s287] sm:$0xff]
        %v417 = vld [vmem:[%s287 + $0x8] sm:$0xff]
        %v418 = vld [vmem:[%s287 + $0x10] sm:$0xff]
        %v419 = vld [vmem:[%s287 + $0x18] sm:$0xff]
        %v420 = vld [vmem:[%s287 + $0x20] sm:$0xff]
        %v421 = vld [vmem:[%s287 + $0x28] sm:$0xff]
        %v422 = vld [vmem:[%s287 + $0x30] sm:$0xff]
        %v423 = vld [vmem:[%s287 + $0x38] sm:$0xff]
        %v424 = vld [vmem:[%s287 + $0x40] sm:$0xff]
        %v425 = vld [vmem:[%s287 + $0x48] sm:$0xff]
        %v426 = vld [vmem:[%s287 + $0x50] sm:$0xff]
        %v427 = vld [vmem:[%s287 + $0x58] sm:$0xff]
        %v428 = vld [vmem:[%s287 + $0x60] sm:$0xff]
        %v429 = vld [vmem:[%s287 + $0x68] sm:$0xff]
        %v430 = vld [vmem:[%s287 + $0x70] sm:$0xff]
        %v431 = vld [vmem:[%s287 + $0x78] sm:$0xff]
        %v432 = vld [vmem:[%s287 + $0x80] sm:$0xff]
        %v433 = vld [vmem:[%s287 + $0x88] sm:$0xff]
        %v434 = vld [vmem:[%s287 + $0x90] sm:$0xff]
        %v435 = vld [vmem:[%s287 + $0x98] sm:$0xff]
        %v436 = vld [vmem:[%s287 + $0xa0] sm:$0xff]
        %v437 = vld [vmem:[%s287 + $0xa8] sm:$0xff]
        %v438 = vld [vmem:[%s287 + $0xb0] sm:$0xff]
        %v439 = vld [vmem:[%s287 + $0xb8] sm:$0xff]
        %v440 = vld [vmem:[%s287 + $0xc0] sm:$0xff]
        %v441 = vld [vmem:[%s287 + $0xc8] sm:$0xff]
        %v442 = vld [vmem:[%s287 + $0xd0] sm:$0xff]
        %v443 = vld [vmem:[%s287 + $0xd8] sm:$0xff]
        %v444 = vld [vmem:[%s287 + $0xe0] sm:$0xff]
        %v445 = vld [vmem:[%s287 + $0xe8] sm:$0xff]
        %v446 = vld [vmem:[%s287 + $0xf0] sm:$0xff]
        %v447 = vld [vmem:[%s287 + $0xf8] sm:$0xff]
        %v448 = vld [vmem:[%s287 + $0x100] sm:$0xff]
        %v449 = vld [vmem:[%s287 + $0x108] sm:$0xff]
        %v450 = vld [vmem:[%s287 + $0x110] sm:$0xff]
        %v451 = vld [vmem:[%s287 + $0x118] sm:$0xff]
        %v452 = vld [vmem:[%s287 + $0x120] sm:$0xff]
        %v453 = vld [vmem:[%s287 + $0x128] sm:$0xff]
        %v454 = vld [vmem:[%s287 + $0x130] sm:$0xff]
        %v455 = vld [vmem:[%s287 + $0x138] sm:$0xff]
        %v456 = vld [vmem:[%s287 + $0x140] sm:$0xff]
        %v457 = vld [vmem:[%s287 + $0x148] sm:$0xff]
        %v458 = vld [vmem:[%s287 + $0x150] sm:$0xff]
        %v459 = vld [vmem:[%s287 + $0x158] sm:$0xff]
        %v460 = vld [vmem:[%s287 + $0x160] sm:$0xff]
        %v461 = vld [vmem:[%s287 + $0x168] sm:$0xff]
        %v462 = vld [vmem:[%s287 + $0x170] sm:$0xff]
        %v463 = vld [vmem:[%s287 + $0x178] sm:$0xff]
        %v464 = vld [vmem:[%s287 + $0x180] sm:$0xff]
        %v465 = vld [vmem:[%s287 + $0x188] sm:$0xff]
        %v466 = vld [vmem:[%s287 + $0x190] sm:$0xff]
        %v467 = vld [vmem:[%s287 + $0x198] sm:$0xff]
        %v468 = vld [vmem:[%s287 + $0x1a0] sm:$0xff]
        %v469 = vld [vmem:[%s287 + $0x1a8] sm:$0xff]
        %v470 = vld [vmem:[%s287 + $0x1b0] sm:$0xff]
        %v471 = vld [vmem:[%s287 + $0x1b8] sm:$0xff]
        %v472 = vld [vmem:[%s287 + $0x1c0] sm:$0xff]
        %v473 = vld [vmem:[%s287 + $0x1c8] sm:$0xff]
        %v474 = vld [vmem:[%s287 + $0x1d0] sm:$0xff]
        %v475 = vld [vmem:[%s287 + $0x1d8] sm:$0xff]
        %v476 = vld [vmem:[%s287 + $0x1e0] sm:$0xff]
        %v477 = vld [vmem:[%s287 + $0x1e8] sm:$0xff]
        %v478 = vld [vmem:[%s287 + $0x1f0] sm:$0xff]
        %v479 = vld [vmem:[%s287 + $0x1f8] sm:$0xff]
        %v480 = vld [vmem:[%s287 + $0x200] sm:$0xff]
        %v481 = vld [vmem:[%s287 + $0x208] sm:$0xff]
        %v482 = vld [vmem:[%s287 + $0x210] sm:$0xff]
        %v483 = vld [vmem:[%s287 + $0x218] sm:$0xff]
        %v484 = vld [vmem:[%s287 + $0x220] sm:$0xff]
        %v485 = vld [vmem:[%s287 + $0x228] sm:$0xff]
        %v486 = vld [vmem:[%s287 + $0x230] sm:$0xff]
        %v487 = vld [vmem:[%s287 + $0x238] sm:$0xff]
        %v488 = vld [vmem:[%s287 + $0x240] sm:$0xff]
        %v489 = vld [vmem:[%s287 + $0x248] sm:$0xff]
        %v490 = vld [vmem:[%s287 + $0x250] sm:$0xff]
        %v491 = vld [vmem:[%s287 + $0x258] sm:$0xff]
        %v492 = vld [vmem:[%s287 + $0x260] sm:$0xff]
        %v493 = vld [vmem:[%s287 + $0x268] sm:$0xff]
        %v494 = vld [vmem:[%s287 + $0x270] sm:$0xff]
        %v495 = vld [vmem:[%s287 + $0x278] sm:$0xff]
        %v496 = vld [vmem:[%s287 + $0x280] sm:$0xff]
        %v497 = vld [vmem:[%s287 + $0x288] sm:$0xff]
        %v498 = vld [vmem:[%s287 + $0x290] sm:$0xff]
        %v499 = vld [vmem:[%s287 + $0x298] sm:$0xff]
        %v500 = vld [vmem:[%s287 + $0x2a0] sm:$0xff]
        %v501 = vld [vmem:[%s287 + $0x2a8] sm:$0xff]
        %v502 = vld [vmem:[%s287 + $0x2b0] sm:$0xff]
        %v503 = vld [vmem:[%s287 + $0x2b8] sm:$0xff]
        %v504 = vld [vmem:[%s287 + $0x2c0] sm:$0xff]
        %v505 = vld [vmem:[%s287 + $0x2c8] sm:$0xff]
        %v506 = vld [vmem:[%s287 + $0x2d0] sm:$0xff]
        %v507 = vld [vmem:[%s287 + $0x2d8] sm:$0xff]
        %v508 = vld [vmem:[%s287 + $0x2e0] sm:$0xff]
        %v509 = vld [vmem:[%s287 + $0x2e8] sm:$0xff]
        %v510 = vld [vmem:[%s287 + $0x2f0] sm:$0xff]
        %v511 = vld [vmem:[%s287 + $0x2f8] sm:$0xff]
        %v512 = vld [vmem:[%s287 + $0x300] sm:$0xff]
        %v513 = vld [vmem:[%s287 + $0x308] sm:$0xff]
        %v514 = vld [vmem:[%s287 + $0x310] sm:$0xff]
        %v515 = vld [vmem:[%s287 + $0x318] sm:$0xff]
        %v516 = vld [vmem:[%s287 + $0x320] sm:$0xff]
        %v517 = vld [vmem:[%s287 + $0x328] sm:$0xff]
        %v518 = vld [vmem:[%s287 + $0x330] sm:$0xff]
        %v519 = vld [vmem:[%s287 + $0x338] sm:$0xff]
        %v520 = vld [vmem:[%s287 + $0x340] sm:$0xff]
        %v521 = vld [vmem:[%s287 + $0x348] sm:$0xff]
        %v522 = vld [vmem:[%s287 + $0x350] sm:$0xff]
        %v523 = vld [vmem:[%s287 + $0x358] sm:$0xff]
        %v524 = vld [vmem:[%s287 + $0x360] sm:$0xff]
        %v525 = vld [vmem:[%s287 + $0x368] sm:$0xff]
        %v526 = vld [vmem:[%s287 + $0x370] sm:$0xff]
        %v527 = vld [vmem:[%s287 + $0x378] sm:$0xff]
        %v528 = vld [vmem:[%s287 + $0x380] sm:$0xff]
        %v529 = vld [vmem:[%s287 + $0x388] sm:$0xff]
        %v530 = vld [vmem:[%s287 + $0x390] sm:$0xff]
        %v531 = vld [vmem:[%s287 + $0x398] sm:$0xff]
        %v532 = vld [vmem:[%s287 + $0x3a0] sm:$0xff]
        %v533 = vld [vmem:[%s287 + $0x3a8] sm:$0xff]
        %v534 = vld [vmem:[%s287 + $0x3b0] sm:$0xff]
        %v535 = vld [vmem:[%s287 + $0x3b8] sm:$0xff]
        %v536 = vld [vmem:[%s287 + $0x3c0] sm:$0xff]
        %v537 = vld [vmem:[%s287 + $0x3c8] sm:$0xff]
        %v538 = vld [vmem:[%s287 + $0x3d0] sm:$0xff]
        %v539 = vld [vmem:[%s287 + $0x3d8] sm:$0xff]
        %v540 = vld [vmem:[%s287 + $0x3e0] sm:$0xff]
        %v541 = vld [vmem:[%s287 + $0x3e8] sm:$0xff]
        %v542 = vld [vmem:[%s287 + $0x3f0] sm:$0xff]
        %v543 = vld [vmem:[%s287 + $0x3f8] sm:$0xff]
        %v544 = vld [vmem:[%s287 + $0x400] sm:$0xff]
        %v545 = vld [vmem:[%s287 + $0x408] sm:$0xff]
        %v546 = vld [vmem:[%s287 + $0x410] sm:$0xff]
        %v547 = vld [vmem:[%s287 + $0x418] sm:$0xff]
        %v548 = vld [vmem:[%s287 + $0x420] sm:$0xff]
        %v549 = vld [vmem:[%s287 + $0x428] sm:$0xff]
        %v550 = vld [vmem:[%s287 + $0x430] sm:$0xff]
        %v551 = vld [vmem:[%s287 + $0x438] sm:$0xff]
        %v552 = vld [vmem:[%s287 + $0x440] sm:$0xff]
        %v553 = vld [vmem:[%s287 + $0x448] sm:$0xff]
        %v554 = vld [vmem:[%s287 + $0x450] sm:$0xff]
        %v555 = vld [vmem:[%s287 + $0x458] sm:$0xff]
        %v556 = vld [vmem:[%s287 + $0x460] sm:$0xff]
        %v557 = vld [vmem:[%s287 + $0x468] sm:$0xff]
        %v558 = vld [vmem:[%s287 + $0x470] sm:$0xff]
        %v559 = vld [vmem:[%s287 + $0x478] sm:$0xff]
        %v560 = vld [vmem:[%s287 + $0x480] sm:$0xff]
        %v561 = vld [vmem:[%s287 + $0x488] sm:$0xff]
        %v562 = vld [vmem:[%s287 + $0x490] sm:$0xff]
        %v563 = vld [vmem:[%s287 + $0x498] sm:$0xff]
        %v564 = vld [vmem:[%s287 + $0x4a0] sm:$0xff]
        %v565 = vld [vmem:[%s287 + $0x4a8] sm:$0xff]
        %v566 = vld [vmem:[%s287 + $0x4b0] sm:$0xff]
        %v567 = vld [vmem:[%s287 + $0x4b8] sm:$0xff]
        %v568 = vld [vmem:[%s287 + $0x4c0] sm:$0xff]
        %v569 = vld [vmem:[%s287 + $0x4c8] sm:$0xff]
        %v570 = vld [vmem:[%s287 + $0x4d0] sm:$0xff]
        %v571 = vld [vmem:[%s287 + $0x4d8] sm:$0xff]
        %v572 = vld [vmem:[%s287 + $0x4e0] sm:$0xff]
        %v573 = vld [vmem:[%s287 + $0x4e8] sm:$0xff]
        %v574 = vld [vmem:[%s287 + $0x4f0] sm:$0xff]
        %v575 = vld [vmem:[%s287 + $0x4f8] sm:$0xff]
        %v576 = vld [vmem:[%s287 + $0x500] sm:$0xff]
        %v577 = vld [vmem:[%s287 + $0x508] sm:$0xff]
        %v578 = vld [vmem:[%s287 + $0x510] sm:$0xff]
        %v579 = vld [vmem:[%s287 + $0x518] sm:$0xff]
        %v580 = vld [vmem:[%s287 + $0x520] sm:$0xff]
        %v581 = vld [vmem:[%s287 + $0x528] sm:$0xff]
        %v582 = vld [vmem:[%s287 + $0x530] sm:$0xff]
        %v583 = vld [vmem:[%s287 + $0x538] sm:$0xff]
        %v584 = vld [vmem:[%s287 + $0x540] sm:$0xff]
        %v585 = vld [vmem:[%s287 + $0x548] sm:$0xff]
        %v586 = vld [vmem:[%s287 + $0x550] sm:$0xff]
        %v587 = vld [vmem:[%s287 + $0x558] sm:$0xff]
        %v588 = vld [vmem:[%s287 + $0x560] sm:$0xff]
        %v589 = vld [vmem:[%s287 + $0x568] sm:$0xff]
        %v590 = vld [vmem:[%s287 + $0x570] sm:$0xff]
        %v591 = vld [vmem:[%s287 + $0x578] sm:$0xff]
        %v592 = vld [vmem:[%s287 + $0x580] sm:$0xff]
        %v593 = vld [vmem:[%s287 + $0x588] sm:$0xff]
        %v594 = vld [vmem:[%s287 + $0x590] sm:$0xff]
        %v595 = vld [vmem:[%s287 + $0x598] sm:$0xff]
        %v596 = vld [vmem:[%s287 + $0x5a0] sm:$0xff]
        %v597 = vld [vmem:[%s287 + $0x5a8] sm:$0xff]
        %v598 = vld [vmem:[%s287 + $0x5b0] sm:$0xff]
        %v599 = vld [vmem:[%s287 + $0x5b8] sm:$0xff]
        %v600 = vld [vmem:[%s287 + $0x5c0] sm:$0xff]
        %v601 = vld [vmem:[%s287 + $0x5c8] sm:$0xff]
        %v602 = vld [vmem:[%s287 + $0x5d0] sm:$0xff]
        %v603 = vld [vmem:[%s287 + $0x5d8] sm:$0xff]
        %v604 = vld [vmem:[%s287 + $0x5e0] sm:$0xff]
        %v605 = vld [vmem:[%s287 + $0x5e8] sm:$0xff]
        %v606 = vld [vmem:[%s287 + $0x5f0] sm:$0xff]
        %v607 = vld [vmem:[%s287 + $0x5f8] sm:$0xff]
        %v608 = vld [vmem:[%s287 + $0x600] sm:$0xff]
        %v609 = vld [vmem:[%s287 + $0x608] sm:$0xff]
        %v610 = vld [vmem:[%s287 + $0x610] sm:$0xff]
        %v611 = vld [vmem:[%s287 + $0x618] sm:$0xff]
        %v612 = vld [vmem:[%s287 + $0x620] sm:$0xff]
        %v613 = vld [vmem:[%s287 + $0x628] sm:$0xff]
        %v614 = vld [vmem:[%s287 + $0x630] sm:$0xff]
        %v615 = vld [vmem:[%s287 + $0x638] sm:$0xff]
        %v616 = vld [vmem:[%s287 + $0x640] sm:$0xff]
        %v617 = vld [vmem:[%s287 + $0x648] sm:$0xff]
        %v618 = vld [vmem:[%s287 + $0x650] sm:$0xff]
        %v619 = vld [vmem:[%s287 + $0x658] sm:$0xff]
        %v620 = vld [vmem:[%s287 + $0x660] sm:$0xff]
        %v621 = vld [vmem:[%s287 + $0x668] sm:$0xff]
        %v622 = vld [vmem:[%s287 + $0x670] sm:$0xff]
        %v623 = vld [vmem:[%s287 + $0x678] sm:$0xff]
        %v624 = vld [vmem:[%s287 + $0x680] sm:$0xff]
        %v625 = vld [vmem:[%s287 + $0x688] sm:$0xff]
        %v626 = vld [vmem:[%s287 + $0x690] sm:$0xff]
        %v627 = vld [vmem:[%s287 + $0x698] sm:$0xff]
        %v628 = vld [vmem:[%s287 + $0x6a0] sm:$0xff]
        %v629 = vld [vmem:[%s287 + $0x6a8] sm:$0xff]
        %v630 = vld [vmem:[%s287 + $0x6b0] sm:$0xff]
        %v631 = vld [vmem:[%s287 + $0x6b8] sm:$0xff]
        %v632 = vld [vmem:[%s287 + $0x6c0] sm:$0xff]
        %v633 = vld [vmem:[%s287 + $0x6c8] sm:$0xff]
        %v634 = vld [vmem:[%s287 + $0x6d0] sm:$0xff]
        %v635 = vld [vmem:[%s287 + $0x6d8] sm:$0xff]
        %v636 = vld [vmem:[%s287 + $0x6e0] sm:$0xff]
        %v637 = vld [vmem:[%s287 + $0x6e8] sm:$0xff]
        %v638 = vld [vmem:[%s287 + $0x6f0] sm:$0xff]
        %v639 = vld [vmem:[%s287 + $0x6f8] sm:$0xff]
        %v640 = vld [vmem:[%s287 + $0x700] sm:$0xff]
        %v641 = vld [vmem:[%s287 + $0x708] sm:$0xff]
        %v642 = vld [vmem:[%s287 + $0x710] sm:$0xff]
        %v643 = vld [vmem:[%s287 + $0x718] sm:$0xff]
        %v644 = vld [vmem:[%s287 + $0x720] sm:$0xff]
        %v645 = vld [vmem:[%s287 + $0x728] sm:$0xff]
        %v646 = vld [vmem:[%s287 + $0x730] sm:$0xff]
        %v647 = vld [vmem:[%s287 + $0x738] sm:$0xff]
        %v648 = vld [vmem:[%s287 + $0x740] sm:$0xff]
        %v649 = vld [vmem:[%s287 + $0x748] sm:$0xff]
        %v650 = vld [vmem:[%s287 + $0x750] sm:$0xff]
        %v651 = vld [vmem:[%s287 + $0x758] sm:$0xff]
        %v652 = vld [vmem:[%s287 + $0x760] sm:$0xff]
        %v653 = vld [vmem:[%s287 + $0x768] sm:$0xff]
        %v654 = vld [vmem:[%s287 + $0x770] sm:$0xff]
        %v655 = vld [vmem:[%s287 + $0x778] sm:$0xff]
        %v656 = vld [vmem:[%s287 + $0x780] sm:$0xff]
        %v657 = vld [vmem:[%s287 + $0x788] sm:$0xff]
        %v658 = vld [vmem:[%s287 + $0x790] sm:$0xff]
        %v659 = vld [vmem:[%s287 + $0x798] sm:$0xff]
        %v660 = vld [vmem:[%s287 + $0x7a0] sm:$0xff]
        %v661 = vld [vmem:[%s287 + $0x7a8] sm:$0xff]
        %v662 = vld [vmem:[%s287 + $0x7b0] sm:$0xff]
        %v663 = vld [vmem:[%s287 + $0x7b8] sm:$0xff]
        %v664 = vld [vmem:[%s287 + $0x7c0] sm:$0xff]
        %v665 = vld [vmem:[%s287 + $0x7c8] sm:$0xff]
        %v666 = vld [vmem:[%s287 + $0x7d0] sm:$0xff]
        %v667 = vld [vmem:[%s287 + $0x7d8] sm:$0xff]
        %v668 = vld [vmem:[%s287 + $0x7e0] sm:$0xff]
        %v669 = vld [vmem:[%s287 + $0x7e8] sm:$0xff]
        %v670 = vld [vmem:[%s287 + $0x7f0] sm:$0xff]
        %v671 = vld [vmem:[%s287 + $0x7f8] sm:$0xff]
        %v672 = vld [vmem:[%s287 + $0x800] sm:$0xff]
        %v673 = vld [vmem:[%s287 + $0x808] sm:$0xff]
        %v674 = vld [vmem:[%s287 + $0x810] sm:$0xff]
        %v675 = vld [vmem:[%s287 + $0x818] sm:$0xff]
        %v676 = vld [vmem:[%s287 + $0x820] sm:$0xff]
        %v677 = vld [vmem:[%s287 + $0x828] sm:$0xff]
        %v678 = vld [vmem:[%s287 + $0x830] sm:$0xff]
        %v679 = vld [vmem:[%s287 + $0x838] sm:$0xff]
        %v680 = vld [vmem:[%s287 + $0x840] sm:$0xff]
        %v681 = vld [vmem:[%s287 + $0x848] sm:$0xff]
        %v682 = vld [vmem:[%s287 + $0x850] sm:$0xff]
        %v683 = vld [vmem:[%s287 + $0x858] sm:$0xff]
        %v684 = vld [vmem:[%s287 + $0x860] sm:$0xff]
        %v685 = vld [vmem:[%s287 + $0x868] sm:$0xff]
        %v686 = vld [vmem:[%s287 + $0x870] sm:$0xff]
        %v687 = vld [vmem:[%s287 + $0x878] sm:$0xff]
        %v688 = vld [vmem:[%s287 + $0x880] sm:$0xff]
        %v689 = vld [vmem:[%s287 + $0x888] sm:$0xff]
        %v690 = vld [vmem:[%s287 + $0x890] sm:$0xff]
        %v691 = vld [vmem:[%s287 + $0x898] sm:$0xff]
        %v692 = vld [vmem:[%s287 + $0x8a0] sm:$0xff]
        %v693 = vld [vmem:[%s287 + $0x8a8] sm:$0xff]
        %v694 = vld [vmem:[%s287 + $0x8b0] sm:$0xff]
        %v695 = vld [vmem:[%s287 + $0x8b8] sm:$0xff]
        %v696 = vld [vmem:[%s287 + $0x8c0] sm:$0xff]
        %v697 = vld [vmem:[%s287 + $0x8c8] sm:$0xff]
        %v698 = vld [vmem:[%s287 + $0x8d0] sm:$0xff]
        %v699 = vld [vmem:[%s287 + $0x8d8] sm:$0xff]
        %v700 = vld [vmem:[%s287 + $0x8e0] sm:$0xff]
        %v701 = vld [vmem:[%s287 + $0x8e8] sm:$0xff]
        %v702 = vld [vmem:[%s287 + $0x8f0] sm:$0xff]
        %v703 = vld [vmem:[%s287 + $0x8f8] sm:$0xff]
        %v704 = vld [vmem:[%s287 + $0x900] sm:$0xff]
        %v705 = vld [vmem:[%s287 + $0x908] sm:$0xff]
        %v706 = vld [vmem:[%s287 + $0x910] sm:$0xff]
        %v707 = vld [vmem:[%s287 + $0x918] sm:$0xff]
        %v708 = vld [vmem:[%s287 + $0x920] sm:$0xff]
        %v709 = vld [vmem:[%s287 + $0x928] sm:$0xff]
        %v710 = vld [vmem:[%s287 + $0x930] sm:$0xff]
        %v711 = vld [vmem:[%s287 + $0x938] sm:$0xff]
        %v712 = vld [vmem:[%s287 + $0x940] sm:$0xff]
        %v713 = vld [vmem:[%s287 + $0x948] sm:$0xff]
        %v714 = vld [vmem:[%s287 + $0x950] sm:$0xff]
        %v715 = vld [vmem:[%s287 + $0x958] sm:$0xff]
        %v716 = vld [vmem:[%s287 + $0x960] sm:$0xff]
        %v717 = vld [vmem:[%s287 + $0x968] sm:$0xff]
        %v718 = vld [vmem:[%s287 + $0x970] sm:$0xff]
        %v719 = vld [vmem:[%s287 + $0x978] sm:$0xff]
        %v720 = vld [vmem:[%s287 + $0x980] sm:$0xff]
        %v721 = vld [vmem:[%s287 + $0x988] sm:$0xff]
        %v722 = vld [vmem:[%s287 + $0x990] sm:$0xff]
        %v723 = vld [vmem:[%s287 + $0x998] sm:$0xff]
        %v724 = vld [vmem:[%s287 + $0x9a0] sm:$0xff]
        %v725 = vld [vmem:[%s287 + $0x9a8] sm:$0xff]
        %v726 = vld [vmem:[%s287 + $0x9b0] sm:$0xff]
        %v727 = vld [vmem:[%s287 + $0x9b8] sm:$0xff]
        %v728 = vld [vmem:[%s287 + $0x9c0] sm:$0xff]
        %v729 = vld [vmem:[%s287 + $0x9c8] sm:$0xff]
        %v730 = vld [vmem:[%s287 + $0x9d0] sm:$0xff]
        %v731 = vld [vmem:[%s287 + $0x9d8] sm:$0xff]
        %v732 = vld [vmem:[%s287 + $0x9e0] sm:$0xff]
        %v733 = vld [vmem:[%s287 + $0x9e8] sm:$0xff]
        %v734 = vld [vmem:[%s287 + $0x9f0] sm:$0xff]
        %v735 = vld [vmem:[%s287 + $0x9f8] sm:$0xff]
        %v736 = vld [vmem:[%s287 + $0xa00] sm:$0xff]
        %v737 = vld [vmem:[%s287 + $0xa08] sm:$0xff]
        %v738 = vld [vmem:[%s287 + $0xa10] sm:$0xff]
        %v739 = vld [vmem:[%s287 + $0xa18] sm:$0xff]
        %v740 = vld [vmem:[%s287 + $0xa20] sm:$0xff]
        %v741 = vld [vmem:[%s287 + $0xa28] sm:$0xff]
        %v742 = vld [vmem:[%s287 + $0xa30] sm:$0xff]
        %v743 = vld [vmem:[%s287 + $0xa38] sm:$0xff]
        %v744 = vld [vmem:[%s287 + $0xa40] sm:$0xff]
        %v745 = vld [vmem:[%s287 + $0xa48] sm:$0xff]
        %v746 = vld [vmem:[%s287 + $0xa50] sm:$0xff]
        %v747 = vld [vmem:[%s287 + $0xa58] sm:$0xff]
        %v748 = vld [vmem:[%s287 + $0xa60] sm:$0xff]
        %v749 = vld [vmem:[%s287 + $0xa68] sm:$0xff]
        %v750 = vld [vmem:[%s287 + $0xa70] sm:$0xff]
        %v751 = vld [vmem:[%s287 + $0xa78] sm:$0xff]
        %v752 = vld [vmem:[%s287 + $0xa80] sm:$0xff]
        %v753 = vld [vmem:[%s287 + $0xa88] sm:$0xff]
        %v754 = vld [vmem:[%s287 + $0xa90] sm:$0xff]
        %v755 = vld [vmem:[%s287 + $0xa98] sm:$0xff]
        %v756 = vld [vmem:[%s287 + $0xaa0] sm:$0xff]
        %v757 = vld [vmem:[%s287 + $0xaa8] sm:$0xff]
        %v758 = vld [vmem:[%s287 + $0xab0] sm:$0xff]
        %v759 = vld [vmem:[%s287 + $0xab8] sm:$0xff]
        %v760 = vld [vmem:[%s287 + $0xac0] sm:$0xff]
        %v761 = vld [vmem:[%s287 + $0xac8] sm:$0xff]
        %v762 = vld [vmem:[%s287 + $0xad0] sm:$0xff]
        %v763 = vld [vmem:[%s287 + $0xad8] sm:$0xff]
        %v764 = vld [vmem:[%s287 + $0xae0] sm:$0xff]
        %v765 = vld [vmem:[%s287 + $0xae8] sm:$0xff]
        %v766 = vld [vmem:[%s287 + $0xaf0] sm:$0xff]
        %v767 = vld [vmem:[%s287 + $0xaf8] sm:$0xff]
        %v768 = vld [vmem:[%s287 + $0xb00] sm:$0xff]
        %v769 = vld [vmem:[%s287 + $0xb08] sm:$0xff]
        %v770 = vld [vmem:[%s287 + $0xb10] sm:$0xff]
        %v771 = vld [vmem:[%s287 + $0xb18] sm:$0xff]
        %v772 = vld [vmem:[%s287 + $0xb20] sm:$0xff]
        %v773 = vld [vmem:[%s287 + $0xb28] sm:$0xff]
        %v774 = vld [vmem:[%s287 + $0xb30] sm:$0xff]
        %v775 = vld [vmem:[%s287 + $0xb38] sm:$0xff]
        %v776 = vld [vmem:[%s287 + $0xb40] sm:$0xff]
        %v777 = vld [vmem:[%s287 + $0xb48] sm:$0xff]
        %v778 = vld [vmem:[%s287 + $0xb50] sm:$0xff]
        %v779 = vld [vmem:[%s287 + $0xb58] sm:$0xff]
        %v780 = vld [vmem:[%s287 + $0xb60] sm:$0xff]
        %v781 = vld [vmem:[%s287 + $0xb68] sm:$0xff]
        %v782 = vld [vmem:[%s287 + $0xb70] sm:$0xff]
        %v783 = vld [vmem:[%s287 + $0xb78] sm:$0xff]
        %v784 = vld [vmem:[%s287 + $0xb80] sm:$0xff]
        %v785 = vld [vmem:[%s287 + $0xb88] sm:$0xff]
        %v786 = vld [vmem:[%s287 + $0xb90] sm:$0xff]
        %v787 = vld [vmem:[%s287 + $0xb98] sm:$0xff]
        %v788 = vld [vmem:[%s287 + $0xba0] sm:$0xff]
        %v789 = vld [vmem:[%s287 + $0xba8] sm:$0xff]
        %v790 = vld [vmem:[%s287 + $0xbb0] sm:$0xff]
        %v791 = vld [vmem:[%s287 + $0xbb8] sm:$0xff]
        %v792 = vld [vmem:[%s287 + $0xbc0] sm:$0xff]
        %v793 = vld [vmem:[%s287 + $0xbc8] sm:$0xff]
        %v794 = vld [vmem:[%s287 + $0xbd0] sm:$0xff]
        %v795 = vld [vmem:[%s287 + $0xbd8] sm:$0xff]
        %v796 = vld [vmem:[%s287 + $0xbe0] sm:$0xff]
        %v797 = vld [vmem:[%s287 + $0xbe8] sm:$0xff]
        %v798 = vld [vmem:[%s287 + $0xbf0] sm:$0xff]
        %v799 = vld [vmem:[%s287 + $0xbf8] sm:$0xff]
        %v800 = vld [vmem:[%s287 + $0xc00] sm:$0xff]
        %v801 = vld [vmem:[%s287 + $0xc08] sm:$0xff]
        %v802 = vld [vmem:[%s287 + $0xc10] sm:$0xff]
        %v803 = vld [vmem:[%s287 + $0xc18] sm:$0xff]
        %v804 = vld [vmem:[%s287 + $0xc20] sm:$0xff]
        %v805 = vld [vmem:[%s287 + $0xc28] sm:$0xff]
        %v806 = vld [vmem:[%s287 + $0xc30] sm:$0xff]
        %v807 = vld [vmem:[%s287 + $0xc38] sm:$0xff]
        %v808 = vld [vmem:[%s287 + $0xc40] sm:$0xff]
        %v809 = vld [vmem:[%s287 + $0xc48] sm:$0xff]
        %v810 = vld [vmem:[%s287 + $0xc50] sm:$0xff]
        %v811 = vld [vmem:[%s287 + $0xc58] sm:$0xff]
        %v812 = vld [vmem:[%s287 + $0xc60] sm:$0xff]
        %v813 = vld [vmem:[%s287 + $0xc68] sm:$0xff]
        %v814 = vld [vmem:[%s287 + $0xc70] sm:$0xff]
        %v815 = vld [vmem:[%s287 + $0xc78] sm:$0xff]
        %v816 = vld [vmem:[%s287 + $0xc80] sm:$0xff]
        %v817 = vld [vmem:[%s287 + $0xc88] sm:$0xff]
        %v818 = vld [vmem:[%s287 + $0xc90] sm:$0xff]
        %v819 = vld [vmem:[%s287 + $0xc98] sm:$0xff]
        %v820 = vld [vmem:[%s287 + $0xca0] sm:$0xff]
        %v821 = vld [vmem:[%s287 + $0xca8] sm:$0xff]
        %v822 = vld [vmem:[%s287 + $0xcb0] sm:$0xff]
        %v823 = vld [vmem:[%s287 + $0xcb8] sm:$0xff]
        %v824 = vld [vmem:[%s287 + $0xcc0] sm:$0xff]
        %v825 = vld [vmem:[%s287 + $0xcc8] sm:$0xff]
        %v826 = vld [vmem:[%s287 + $0xcd0] sm:$0xff]
        %v827 = vld [vmem:[%s287 + $0xcd8] sm:$0xff]
        %v828 = vld [vmem:[%s287 + $0xce0] sm:$0xff]
        %v829 = vld [vmem:[%s287 + $0xce8] sm:$0xff]
        %v830 = vld [vmem:[%s287 + $0xcf0] sm:$0xff]
        %v831 = vld [vmem:[%s287 + $0xcf8] sm:$0xff]
        %v832 = vld [vmem:[%s287 + $0xd00] sm:$0xff]
        %v833 = vld [vmem:[%s287 + $0xd08] sm:$0xff]
        %v834 = vld [vmem:[%s287 + $0xd10] sm:$0xff]
        %v835 = vld [vmem:[%s287 + $0xd18] sm:$0xff]
        %v836 = vld [vmem:[%s287 + $0xd20] sm:$0xff]
        %v837 = vld [vmem:[%s287 + $0xd28] sm:$0xff]
        %v838 = vld [vmem:[%s287 + $0xd30] sm:$0xff]
        %v839 = vld [vmem:[%s287 + $0xd38] sm:$0xff]
        %v840 = vld [vmem:[%s287 + $0xd40] sm:$0xff]
        %v841 = vld [vmem:[%s287 + $0xd48] sm:$0xff]
        %v842 = vld [vmem:[%s287 + $0xd50] sm:$0xff]
        %v843 = vld [vmem:[%s287 + $0xd58] sm:$0xff]
        %v844 = vld [vmem:[%s287 + $0xd60] sm:$0xff]
        %v845 = vld [vmem:[%s287 + $0xd68] sm:$0xff]
        %v846 = vld [vmem:[%s287 + $0xd70] sm:$0xff]
        %v847 = vld [vmem:[%s287 + $0xd78] sm:$0xff]
        %v848 = vld [vmem:[%s287 + $0xd80] sm:$0xff]
        %v849 = vld [vmem:[%s287 + $0xd88] sm:$0xff]
        %v850 = vld [vmem:[%s287 + $0xd90] sm:$0xff]
        %v851 = vld [vmem:[%s287 + $0xd98] sm:$0xff]
        %v852 = vld [vmem:[%s287 + $0xda0] sm:$0xff]
        %v853 = vld [vmem:[%s287 + $0xda8] sm:$0xff]
        %v854 = vld [vmem:[%s287 + $0xdb0] sm:$0xff]
        %v855 = vld [vmem:[%s287 + $0xdb8] sm:$0xff]
        %v856 = vld [vmem:[%s287 + $0xdc0] sm:$0xff]
        %v857 = vld [vmem:[%s287 + $0xdc8] sm:$0xff]
        %v858 = vld [vmem:[%s287 + $0xdd0] sm:$0xff]
        %v859 = vld [vmem:[%s287 + $0xdd8] sm:$0xff]
        %v860 = vld [vmem:[%s287 + $0xde0] sm:$0xff]
        %v861 = vld [vmem:[%s287 + $0xde8] sm:$0xff]
        %v862 = vld [vmem:[%s287 + $0xdf0] sm:$0xff]
        %v863 = vld [vmem:[%s287 + $0xdf8] sm:$0xff]
        %v864 = vld [vmem:[%s287 + $0xe00] sm:$0xff]
        %v865 = vld [vmem:[%s287 + $0xe08] sm:$0xff]
        %v866 = vld [vmem:[%s287 + $0xe10] sm:$0xff]
        %v867 = vld [vmem:[%s287 + $0xe18] sm:$0xff]
        %v868 = vld [vmem:[%s287 + $0xe20] sm:$0xff]
        %v869 = vld [vmem:[%s287 + $0xe28] sm:$0xff]
        %v870 = vld [vmem:[%s287 + $0xe30] sm:$0xff]
        %v871 = vld [vmem:[%s287 + $0xe38] sm:$0xff]
        %v872 = vld [vmem:[%s287 + $0xe40] sm:$0xff]
        %v873 = vld [vmem:[%s287 + $0xe48] sm:$0xff]
        %v874 = vld [vmem:[%s287 + $0xe50] sm:$0xff]
        %v875 = vld [vmem:[%s287 + $0xe58] sm:$0xff]
        %v876 = vld [vmem:[%s287 + $0xe60] sm:$0xff]
        %v877 = vld [vmem:[%s287 + $0xe68] sm:$0xff]
        %v878 = vld [vmem:[%s287 + $0xe70] sm:$0xff]
        %v879 = vld [vmem:[%s287 + $0xe78] sm:$0xff]
        %v880 = vld [vmem:[%s287 + $0xe80] sm:$0xff]
        %v881 = vld [vmem:[%s287 + $0xe88] sm:$0xff]
        %v882 = vld [vmem:[%s287 + $0xe90] sm:$0xff]
        %v883 = vld [vmem:[%s287 + $0xe98] sm:$0xff]
        %v884 = vld [vmem:[%s287 + $0xea0] sm:$0xff]
        %v885 = vld [vmem:[%s287 + $0xea8] sm:$0xff]
        %v886 = vld [vmem:[%s287 + $0xeb0] sm:$0xff]
        %v887 = vld [vmem:[%s287 + $0xeb8] sm:$0xff]
        %v888 = vld [vmem:[%s287 + $0xec0] sm:$0xff]
        %v889 = vld [vmem:[%s287 + $0xec8] sm:$0xff]
        %v890 = vld [vmem:[%s287 + $0xed0] sm:$0xff]
        %v891 = vld [vmem:[%s287 + $0xed8] sm:$0xff]
        %v892 = vld [vmem:[%s287 + $0xee0] sm:$0xff]
        %v893 = vld [vmem:[%s287 + $0xee8] sm:$0xff]
        %v894 = vld [vmem:[%s287 + $0xef0] sm:$0xff]
        %v895 = vld [vmem:[%s287 + $0xef8] sm:$0xff]
        %v896 = vld [vmem:[%s287 + $0xf00] sm:$0xff]
        %v897 = vld [vmem:[%s287 + $0xf08] sm:$0xff]
        %v898 = vld [vmem:[%s287 + $0xf10] sm:$0xff]
        %v899 = vld [vmem:[%s287 + $0xf18] sm:$0xff]
        %v900 = vld [vmem:[%s287 + $0xf20] sm:$0xff]
        %v901 = vld [vmem:[%s287 + $0xf28] sm:$0xff]
        %v902 = vld [vmem:[%s287 + $0xf30] sm:$0xff]
        %v903 = vld [vmem:[%s287 + $0xf38] sm:$0xff]
        %v904 = vld [vmem:[%s287 + $0xf40] sm:$0xff]
        %v905 = vld [vmem:[%s287 + $0xf48] sm:$0xff]
        %v906 = vld [vmem:[%s287 + $0xf50] sm:$0xff]
        %v907 = vld [vmem:[%s287 + $0xf58] sm:$0xff]
        %v908 = vld [vmem:[%s287 + $0xf60] sm:$0xff]
        %v909 = vld [vmem:[%s287 + $0xf68] sm:$0xff]
        %v910 = vld [vmem:[%s287 + $0xf70] sm:$0xff]
        %v911 = vld [vmem:[%s287 + $0xf78] sm:$0xff]
        %v912 = vld [vmem:[%s287 + $0xf80] sm:$0xff]
        %v913 = vld [vmem:[%s287 + $0xf88] sm:$0xff]
        %v914 = vld [vmem:[%s287 + $0xf90] sm:$0xff]
        %v915 = vld [vmem:[%s287 + $0xf98] sm:$0xff]
        %v916 = vld [vmem:[%s287 + $0xfa0] sm:$0xff]
        %v917 = vld [vmem:[%s287 + $0xfa8] sm:$0xff]
        %v918 = vld [vmem:[%s287 + $0xfb0] sm:$0xff]
        %v919 = vld [vmem:[%s287 + $0xfb8] sm:$0xff]
        %v920 = vld [vmem:[%s287 + $0xfc0] sm:$0xff]
        %v921 = vld [vmem:[%s287 + $0xfc8] sm:$0xff]
        %v922 = vld [vmem:[%s287 + $0xfd0] sm:$0xff]
        %v923 = vld [vmem:[%s287 + $0xfd8] sm:$0xff]
        %v924 = vld [vmem:[%s287 + $0xfe0] sm:$0xff]
        %v925 = vld [vmem:[%s287 + $0xfe8] sm:$0xff]
        %v926 = vld [vmem:[%s287 + $0xff0] sm:$0xff]
        %v927 = vld [vmem:[%s287 + $0xff8] sm:$0xff]
        %v928 = vld [vmem:[%s296] sm:$0xf]
        %v930 = vlaneseq
        %v931 = vshrl.u32 %v930, 7
        %v932 = vsub.s32 0, %v931
        %v933 = vrot.slane %v928, %v932
        %v934 = vlaneseq
        %v935 = vshrl.u32 %v934, 7
        %v936 = vsub.s32 1, %v935
        %v937 = vrot.slane %v928, %v936
        %v938 = vlaneseq
        %v939 = vshrl.u32 %v938, 7
        %v940 = vsub.s32 2, %v939
        %v941 = vrot.slane %v928, %v940
        %v942 = vlaneseq
        %v943 = vshrl.u32 %v942, 7
        %v944 = vsub.s32 3, %v943
        %v945 = vrot.slane %v928, %v944
        %v1462 = vunpack.c.l.b16 %v416
        %v1463 = vunpack.c.h.b16 %v416
        %v1464 = vunpack.c.l.b16 %v417
        %v1465 = vunpack.c.h.b16 %v417
        %v1466 = vunpack.c.l.b16 %v418
        %v1467 = vunpack.c.h.b16 %v418
        %v1468 = vunpack.c.l.b16 %v419
        %v1469 = vunpack.c.h.b16 %v419
        %v1470 = vunpack.c.l.b16 %v420
        %v1471 = vunpack.c.h.b16 %v420
        %v1472 = vunpack.c.l.b16 %v421
        %v1473 = vunpack.c.h.b16 %v421
        %v1474 = vunpack.c.l.b16 %v422
        %v1475 = vunpack.c.h.b16 %v422
        %v1476 = vunpack.c.l.b16 %v423
        %v1477 = vunpack.c.h.b16 %v423
        %v1478 = vunpack.c.l.b16 %v424
        %v1479 = vunpack.c.h.b16 %v424
        %v1480 = vunpack.c.l.b16 %v425
        %v1481 = vunpack.c.h.b16 %v425
        %v1482 = vunpack.c.l.b16 %v426
        %v1483 = vunpack.c.h.b16 %v426
        %v1484 = vunpack.c.l.b16 %v427
        %v1485 = vunpack.c.h.b16 %v427
        %v1486 = vunpack.c.l.b16 %v428
        %v1487 = vunpack.c.h.b16 %v428
        %v1488 = vunpack.c.l.b16 %v429
        %v1489 = vunpack.c.h.b16 %v429
        %v1490 = vunpack.c.l.b16 %v430
        %v1491 = vunpack.c.h.b16 %v430
        %v1492 = vunpack.c.l.b16 %v431
        %v1493 = vunpack.c.h.b16 %v431
        %v1494 = vunpack.c.l.b16 %v432
        %v1495 = vunpack.c.h.b16 %v432
        %v1496 = vunpack.c.l.b16 %v433
        %v1497 = vunpack.c.h.b16 %v433
        %v1498 = vunpack.c.l.b16 %v434
        %v1499 = vunpack.c.h.b16 %v434
        %v1500 = vunpack.c.l.b16 %v435
        %v1501 = vunpack.c.h.b16 %v435
        %v1502 = vunpack.c.l.b16 %v436
        %v1503 = vunpack.c.h.b16 %v436
        %v1504 = vunpack.c.l.b16 %v437
        %v1505 = vunpack.c.h.b16 %v437
        %v1506 = vunpack.c.l.b16 %v438
        %v1507 = vunpack.c.h.b16 %v438
        %v1508 = vunpack.c.l.b16 %v439
        %v1509 = vunpack.c.h.b16 %v439
        %v1510 = vunpack.c.l.b16 %v440
        %v1511 = vunpack.c.h.b16 %v440
        %v1512 = vunpack.c.l.b16 %v441
        %v1513 = vunpack.c.h.b16 %v441
        %v1514 = vunpack.c.l.b16 %v442
        %v1515 = vunpack.c.h.b16 %v442
        %v1516 = vunpack.c.l.b16 %v443
        %v1517 = vunpack.c.h.b16 %v443
        %v1518 = vunpack.c.l.b16 %v444
        %v1519 = vunpack.c.h.b16 %v444
        %v1520 = vunpack.c.l.b16 %v445
        %v1521 = vunpack.c.h.b16 %v445
        %v1522 = vunpack.c.l.b16 %v446
        %v1523 = vunpack.c.h.b16 %v446
        %v1524 = vunpack.c.l.b16 %v447
        %v1525 = vunpack.c.h.b16 %v447
        %v1526 = vunpack.c.l.b16 %v448
        %v1527 = vunpack.c.h.b16 %v448
        %v1528 = vunpack.c.l.b16 %v449
        %v1529 = vunpack.c.h.b16 %v449
        %v1530 = vunpack.c.l.b16 %v450
        %v1531 = vunpack.c.h.b16 %v450
        %v1532 = vunpack.c.l.b16 %v451
        %v1533 = vunpack.c.h.b16 %v451
        %v1534 = vunpack.c.l.b16 %v452
        %v1535 = vunpack.c.h.b16 %v452
        %v1536 = vunpack.c.l.b16 %v453
        %v1537 = vunpack.c.h.b16 %v453
        %v1538 = vunpack.c.l.b16 %v454
        %v1539 = vunpack.c.h.b16 %v454
        %v1540 = vunpack.c.l.b16 %v455
        %v1541 = vunpack.c.h.b16 %v455
        %v1542 = vunpack.c.l.b16 %v456
        %v1543 = vunpack.c.h.b16 %v456
        %v1544 = vunpack.c.l.b16 %v457
        %v1545 = vunpack.c.h.b16 %v457
        %v1546 = vunpack.c.l.b16 %v458
        %v1547 = vunpack.c.h.b16 %v458
        %v1548 = vunpack.c.l.b16 %v459
        %v1549 = vunpack.c.h.b16 %v459
        %v1550 = vunpack.c.l.b16 %v460
        %v1551 = vunpack.c.h.b16 %v460
        %v1552 = vunpack.c.l.b16 %v461
        %v1553 = vunpack.c.h.b16 %v461
        %v1554 = vunpack.c.l.b16 %v462
        %v1555 = vunpack.c.h.b16 %v462
        %v1556 = vunpack.c.l.b16 %v463
        %v1557 = vunpack.c.h.b16 %v463
        %v1558 = vunpack.c.l.b16 %v464
        %v1559 = vunpack.c.h.b16 %v464
        %v1560 = vunpack.c.l.b16 %v465
        %v1561 = vunpack.c.h.b16 %v465
        %v1562 = vunpack.c.l.b16 %v466
        %v1563 = vunpack.c.h.b16 %v466
        %v1564 = vunpack.c.l.b16 %v467
        %v1565 = vunpack.c.h.b16 %v467
        %v1566 = vunpack.c.l.b16 %v468
        %v1567 = vunpack.c.h.b16 %v468
        %v1568 = vunpack.c.l.b16 %v469
        %v1569 = vunpack.c.h.b16 %v469
        %v1570 = vunpack.c.l.b16 %v470
        %v1571 = vunpack.c.h.b16 %v470
        %v1572 = vunpack.c.l.b16 %v471
        %v1573 = vunpack.c.h.b16 %v471
        %v1574 = vunpack.c.l.b16 %v472
        %v1575 = vunpack.c.h.b16 %v472
        %v1576 = vunpack.c.l.b16 %v473
        %v1577 = vunpack.c.h.b16 %v473
        %v1578 = vunpack.c.l.b16 %v474
        %v1579 = vunpack.c.h.b16 %v474
        %v1580 = vunpack.c.l.b16 %v475
        %v1581 = vunpack.c.h.b16 %v475
        %v1582 = vunpack.c.l.b16 %v476
        %v1583 = vunpack.c.h.b16 %v476
        %v1584 = vunpack.c.l.b16 %v477
        %v1585 = vunpack.c.h.b16 %v477
        %v1586 = vunpack.c.l.b16 %v478
        %v1587 = vunpack.c.h.b16 %v478
        %v1588 = vunpack.c.l.b16 %v479
        %v1589 = vunpack.c.h.b16 %v479
        %v1590 = vunpack.c.l.b16 %v480
        %v1591 = vunpack.c.h.b16 %v480
        %v1592 = vunpack.c.l.b16 %v481
        %v1593 = vunpack.c.h.b16 %v481
        %v1594 = vunpack.c.l.b16 %v482
        %v1595 = vunpack.c.h.b16 %v482
        %v1596 = vunpack.c.l.b16 %v483
        %v1597 = vunpack.c.h.b16 %v483
        %v1598 = vunpack.c.l.b16 %v484
        %v1599 = vunpack.c.h.b16 %v484
        %v1600 = vunpack.c.l.b16 %v485
        %v1601 = vunpack.c.h.b16 %v485
        %v1602 = vunpack.c.l.b16 %v486
        %v1603 = vunpack.c.h.b16 %v486
        %v1604 = vunpack.c.l.b16 %v487
        %v1605 = vunpack.c.h.b16 %v487
        %v1606 = vunpack.c.l.b16 %v488
        %v1607 = vunpack.c.h.b16 %v488
        %v1608 = vunpack.c.l.b16 %v489
        %v1609 = vunpack.c.h.b16 %v489
        %v1610 = vunpack.c.l.b16 %v490
        %v1611 = vunpack.c.h.b16 %v490
        %v1612 = vunpack.c.l.b16 %v491
        %v1613 = vunpack.c.h.b16 %v491
        %v1614 = vunpack.c.l.b16 %v492
        %v1615 = vunpack.c.h.b16 %v492
        %v1616 = vunpack.c.l.b16 %v493
        %v1617 = vunpack.c.h.b16 %v493
        %v1618 = vunpack.c.l.b16 %v494
        %v1619 = vunpack.c.h.b16 %v494
        %v1620 = vunpack.c.l.b16 %v495
        %v1621 = vunpack.c.h.b16 %v495
        %v1622 = vunpack.c.l.b16 %v496
        %v1623 = vunpack.c.h.b16 %v496
        %v1624 = vunpack.c.l.b16 %v497
        %v1625 = vunpack.c.h.b16 %v497
        %v1626 = vunpack.c.l.b16 %v498
        %v1627 = vunpack.c.h.b16 %v498
        %v1628 = vunpack.c.l.b16 %v499
        %v1629 = vunpack.c.h.b16 %v499
        %v1630 = vunpack.c.l.b16 %v500
        %v1631 = vunpack.c.h.b16 %v500
        %v1632 = vunpack.c.l.b16 %v501
        %v1633 = vunpack.c.h.b16 %v501
        %v1634 = vunpack.c.l.b16 %v502
        %v1635 = vunpack.c.h.b16 %v502
        %v1636 = vunpack.c.l.b16 %v503
        %v1637 = vunpack.c.h.b16 %v503
        %v1638 = vunpack.c.l.b16 %v504
        %v1639 = vunpack.c.h.b16 %v504
        %v1640 = vunpack.c.l.b16 %v505
        %v1641 = vunpack.c.h.b16 %v505
        %v1642 = vunpack.c.l.b16 %v506
        %v1643 = vunpack.c.h.b16 %v506
        %v1644 = vunpack.c.l.b16 %v507
        %v1645 = vunpack.c.h.b16 %v507
        %v1646 = vunpack.c.l.b16 %v508
        %v1647 = vunpack.c.h.b16 %v508
        %v1648 = vunpack.c.l.b16 %v509
        %v1649 = vunpack.c.h.b16 %v509
        %v1650 = vunpack.c.l.b16 %v510
        %v1651 = vunpack.c.h.b16 %v510
        %v1652 = vunpack.c.l.b16 %v511
        %v1653 = vunpack.c.h.b16 %v511
        %v1654 = vunpack.c.l.b16 %v512
        %v1655 = vunpack.c.h.b16 %v512
        %v1656 = vunpack.c.l.b16 %v513
        %v1657 = vunpack.c.h.b16 %v513
        %v1658 = vunpack.c.l.b16 %v514
        %v1659 = vunpack.c.h.b16 %v514
        %v1660 = vunpack.c.l.b16 %v515
        %v1661 = vunpack.c.h.b16 %v515
        %v1662 = vunpack.c.l.b16 %v516
        %v1663 = vunpack.c.h.b16 %v516
        %v1664 = vunpack.c.l.b16 %v517
        %v1665 = vunpack.c.h.b16 %v517
        %v1666 = vunpack.c.l.b16 %v518
        %v1667 = vunpack.c.h.b16 %v518
        %v1668 = vunpack.c.l.b16 %v519
        %v1669 = vunpack.c.h.b16 %v519
        %v1670 = vunpack.c.l.b16 %v520
        %v1671 = vunpack.c.h.b16 %v520
        %v1672 = vunpack.c.l.b16 %v521
        %v1673 = vunpack.c.h.b16 %v521
        %v1674 = vunpack.c.l.b16 %v522
        %v1675 = vunpack.c.h.b16 %v522
        %v1676 = vunpack.c.l.b16 %v523
        %v1677 = vunpack.c.h.b16 %v523
        %v1678 = vunpack.c.l.b16 %v524
        %v1679 = vunpack.c.h.b16 %v524
        %v1680 = vunpack.c.l.b16 %v525
        %v1681 = vunpack.c.h.b16 %v525
        %v1682 = vunpack.c.l.b16 %v526
        %v1683 = vunpack.c.h.b16 %v526
        %v1684 = vunpack.c.l.b16 %v527
        %v1685 = vunpack.c.h.b16 %v527
        %v1686 = vunpack.c.l.b16 %v528
        %v1687 = vunpack.c.h.b16 %v528
        %v1688 = vunpack.c.l.b16 %v529
        %v1689 = vunpack.c.h.b16 %v529
        %v1690 = vunpack.c.l.b16 %v530
        %v1691 = vunpack.c.h.b16 %v530
        %v1692 = vunpack.c.l.b16 %v531
        %v1693 = vunpack.c.h.b16 %v531
        %v1694 = vunpack.c.l.b16 %v532
        %v1695 = vunpack.c.h.b16 %v532
        %v1696 = vunpack.c.l.b16 %v533
        %v1697 = vunpack.c.h.b16 %v533
        %v1698 = vunpack.c.l.b16 %v534
        %v1699 = vunpack.c.h.b16 %v534
        %v1700 = vunpack.c.l.b16 %v535
        %v1701 = vunpack.c.h.b16 %v535
        %v1702 = vunpack.c.l.b16 %v536
        %v1703 = vunpack.c.h.b16 %v536
        %v1704 = vunpack.c.l.b16 %v537
        %v1705 = vunpack.c.h.b16 %v537
        %v1706 = vunpack.c.l.b16 %v538
        %v1707 = vunpack.c.h.b16 %v538
        %v1708 = vunpack.c.l.b16 %v539
        %v1709 = vunpack.c.h.b16 %v539
        %v1710 = vunpack.c.l.b16 %v540
        %v1711 = vunpack.c.h.b16 %v540
        %v1712 = vunpack.c.l.b16 %v541
        %v1713 = vunpack.c.h.b16 %v541
        %v1714 = vunpack.c.l.b16 %v542
        %v1715 = vunpack.c.h.b16 %v542
        %v1716 = vunpack.c.l.b16 %v543
        %v1717 = vunpack.c.h.b16 %v543
        %v1718 = vunpack.c.l.b16 %v544
        %v1719 = vunpack.c.h.b16 %v544
        %v1720 = vunpack.c.l.b16 %v545
        %v1721 = vunpack.c.h.b16 %v545
        %v1722 = vunpack.c.l.b16 %v546
        %v1723 = vunpack.c.h.b16 %v546
        %v1724 = vunpack.c.l.b16 %v547
        %v1725 = vunpack.c.h.b16 %v547
        %v1726 = vunpack.c.l.b16 %v548
        %v1727 = vunpack.c.h.b16 %v548
        %v1728 = vunpack.c.l.b16 %v549
        %v1729 = vunpack.c.h.b16 %v549
        %v1730 = vunpack.c.l.b16 %v550
        %v1731 = vunpack.c.h.b16 %v550
        %v1732 = vunpack.c.l.b16 %v551
        %v1733 = vunpack.c.h.b16 %v551
        %v1734 = vunpack.c.l.b16 %v552
        %v1735 = vunpack.c.h.b16 %v552
        %v1736 = vunpack.c.l.b16 %v553
        %v1737 = vunpack.c.h.b16 %v553
        %v1738 = vunpack.c.l.b16 %v554
        %v1739 = vunpack.c.h.b16 %v554
        %v1740 = vunpack.c.l.b16 %v555
        %v1741 = vunpack.c.h.b16 %v555
        %v1742 = vunpack.c.l.b16 %v556
        %v1743 = vunpack.c.h.b16 %v556
        %v1744 = vunpack.c.l.b16 %v557
        %v1745 = vunpack.c.h.b16 %v557
        %v1746 = vunpack.c.l.b16 %v558
        %v1747 = vunpack.c.h.b16 %v558
        %v1748 = vunpack.c.l.b16 %v559
        %v1749 = vunpack.c.h.b16 %v559
        %v1750 = vunpack.c.l.b16 %v560
        %v1751 = vunpack.c.h.b16 %v560
        %v1752 = vunpack.c.l.b16 %v561
        %v1753 = vunpack.c.h.b16 %v561
        %v1754 = vunpack.c.l.b16 %v562
        %v1755 = vunpack.c.h.b16 %v562
        %v1756 = vunpack.c.l.b16 %v563
        %v1757 = vunpack.c.h.b16 %v563
        %v1758 = vunpack.c.l.b16 %v564
        %v1759 = vunpack.c.h.b16 %v564
        %v1760 = vunpack.c.l.b16 %v565
        %v1761 = vunpack.c.h.b16 %v565
        %v1762 = vunpack.c.l.b16 %v566
        %v1763 = vunpack.c.h.b16 %v566
        %v1764 = vunpack.c.l.b16 %v567
        %v1765 = vunpack.c.h.b16 %v567
        %v1766 = vunpack.c.l.b16 %v568
        %v1767 = vunpack.c.h.b16 %v568
        %v1768 = vunpack.c.l.b16 %v569
        %v1769 = vunpack.c.h.b16 %v569
        %v1770 = vunpack.c.l.b16 %v570
        %v1771 = vunpack.c.h.b16 %v570
        %v1772 = vunpack.c.l.b16 %v571
        %v1773 = vunpack.c.h.b16 %v571
        %v1774 = vunpack.c.l.b16 %v572
        %v1775 = vunpack.c.h.b16 %v572
        %v1776 = vunpack.c.l.b16 %v573
        %v1777 = vunpack.c.h.b16 %v573
        %v1778 = vunpack.c.l.b16 %v574
        %v1779 = vunpack.c.h.b16 %v574
        %v1780 = vunpack.c.l.b16 %v575
        %v1781 = vunpack.c.h.b16 %v575
        %v1782 = vunpack.c.l.b16 %v576
        %v1783 = vunpack.c.h.b16 %v576
        %v1784 = vunpack.c.l.b16 %v577
        %v1785 = vunpack.c.h.b16 %v577
        %v1786 = vunpack.c.l.b16 %v578
        %v1787 = vunpack.c.h.b16 %v578
        %v1788 = vunpack.c.l.b16 %v579
        %v1789 = vunpack.c.h.b16 %v579
        %v1790 = vunpack.c.l.b16 %v580
        %v1791 = vunpack.c.h.b16 %v580
        %v1792 = vunpack.c.l.b16 %v581
        %v1793 = vunpack.c.h.b16 %v581
        %v1794 = vunpack.c.l.b16 %v582
        %v1795 = vunpack.c.h.b16 %v582
        %v1796 = vunpack.c.l.b16 %v583
        %v1797 = vunpack.c.h.b16 %v583
        %v1798 = vunpack.c.l.b16 %v584
        %v1799 = vunpack.c.h.b16 %v584
        %v1800 = vunpack.c.l.b16 %v585
        %v1801 = vunpack.c.h.b16 %v585
        %v1802 = vunpack.c.l.b16 %v586
        %v1803 = vunpack.c.h.b16 %v586
        %v1804 = vunpack.c.l.b16 %v587
        %v1805 = vunpack.c.h.b16 %v587
        %v1806 = vunpack.c.l.b16 %v588
        %v1807 = vunpack.c.h.b16 %v588
        %v1808 = vunpack.c.l.b16 %v589
        %v1809 = vunpack.c.h.b16 %v589
        %v1810 = vunpack.c.l.b16 %v590
        %v1811 = vunpack.c.h.b16 %v590
        %v1812 = vunpack.c.l.b16 %v591
        %v1813 = vunpack.c.h.b16 %v591
        %v1814 = vunpack.c.l.b16 %v592
        %v1815 = vunpack.c.h.b16 %v592
        %v1816 = vunpack.c.l.b16 %v593
        %v1817 = vunpack.c.h.b16 %v593
        %v1818 = vunpack.c.l.b16 %v594
        %v1819 = vunpack.c.h.b16 %v594
        %v1820 = vunpack.c.l.b16 %v595
        %v1821 = vunpack.c.h.b16 %v595
        %v1822 = vunpack.c.l.b16 %v596
        %v1823 = vunpack.c.h.b16 %v596
        %v1824 = vunpack.c.l.b16 %v597
        %v1825 = vunpack.c.h.b16 %v597
        %v1826 = vunpack.c.l.b16 %v598
        %v1827 = vunpack.c.h.b16 %v598
        %v1828 = vunpack.c.l.b16 %v599
        %v1829 = vunpack.c.h.b16 %v599
        %v1830 = vunpack.c.l.b16 %v600
        %v1831 = vunpack.c.h.b16 %v600
        %v1832 = vunpack.c.l.b16 %v601
        %v1833 = vunpack.c.h.b16 %v601
        %v1834 = vunpack.c.l.b16 %v602
        %v1835 = vunpack.c.h.b16 %v602
        %v1836 = vunpack.c.l.b16 %v603
        %v1837 = vunpack.c.h.b16 %v603
        %v1838 = vunpack.c.l.b16 %v604
        %v1839 = vunpack.c.h.b16 %v604
        %v1840 = vunpack.c.l.b16 %v605
        %v1841 = vunpack.c.h.b16 %v605
        %v1842 = vunpack.c.l.b16 %v606
        %v1843 = vunpack.c.h.b16 %v606
        %v1844 = vunpack.c.l.b16 %v607
        %v1845 = vunpack.c.h.b16 %v607
        %v1846 = vunpack.c.l.b16 %v608
        %v1847 = vunpack.c.h.b16 %v608
        %v1848 = vunpack.c.l.b16 %v609
        %v1849 = vunpack.c.h.b16 %v609
        %v1850 = vunpack.c.l.b16 %v610
        %v1851 = vunpack.c.h.b16 %v610
        %v1852 = vunpack.c.l.b16 %v611
        %v1853 = vunpack.c.h.b16 %v611
        %v1854 = vunpack.c.l.b16 %v612
        %v1855 = vunpack.c.h.b16 %v612
        %v1856 = vunpack.c.l.b16 %v613
        %v1857 = vunpack.c.h.b16 %v613
        %v1858 = vunpack.c.l.b16 %v614
        %v1859 = vunpack.c.h.b16 %v614
        %v1860 = vunpack.c.l.b16 %v615
        %v1861 = vunpack.c.h.b16 %v615
        %v1862 = vunpack.c.l.b16 %v616
        %v1863 = vunpack.c.h.b16 %v616
        %v1864 = vunpack.c.l.b16 %v617
        %v1865 = vunpack.c.h.b16 %v617
        %v1866 = vunpack.c.l.b16 %v618
        %v1867 = vunpack.c.h.b16 %v618
        %v1868 = vunpack.c.l.b16 %v619
        %v1869 = vunpack.c.h.b16 %v619
        %v1870 = vunpack.c.l.b16 %v620
        %v1871 = vunpack.c.h.b16 %v620
        %v1872 = vunpack.c.l.b16 %v621
        %v1873 = vunpack.c.h.b16 %v621
        %v1874 = vunpack.c.l.b16 %v622
        %v1875 = vunpack.c.h.b16 %v622
        %v1876 = vunpack.c.l.b16 %v623
        %v1877 = vunpack.c.h.b16 %v623
        %v1878 = vunpack.c.l.b16 %v624
        %v1879 = vunpack.c.h.b16 %v624
        %v1880 = vunpack.c.l.b16 %v625
        %v1881 = vunpack.c.h.b16 %v625
        %v1882 = vunpack.c.l.b16 %v626
        %v1883 = vunpack.c.h.b16 %v626
        %v1884 = vunpack.c.l.b16 %v627
        %v1885 = vunpack.c.h.b16 %v627
        %v1886 = vunpack.c.l.b16 %v628
        %v1887 = vunpack.c.h.b16 %v628
        %v1888 = vunpack.c.l.b16 %v629
        %v1889 = vunpack.c.h.b16 %v629
        %v1890 = vunpack.c.l.b16 %v630
        %v1891 = vunpack.c.h.b16 %v630
        %v1892 = vunpack.c.l.b16 %v631
        %v1893 = vunpack.c.h.b16 %v631
        %v1894 = vunpack.c.l.b16 %v632
        %v1895 = vunpack.c.h.b16 %v632
        %v1896 = vunpack.c.l.b16 %v633
        %v1897 = vunpack.c.h.b16 %v633
        %v1898 = vunpack.c.l.b16 %v634
        %v1899 = vunpack.c.h.b16 %v634
        %v1900 = vunpack.c.l.b16 %v635
        %v1901 = vunpack.c.h.b16 %v635
        %v1902 = vunpack.c.l.b16 %v636
        %v1903 = vunpack.c.h.b16 %v636
        %v1904 = vunpack.c.l.b16 %v637
        %v1905 = vunpack.c.h.b16 %v637
        %v1906 = vunpack.c.l.b16 %v638
        %v1907 = vunpack.c.h.b16 %v638
        %v1908 = vunpack.c.l.b16 %v639
        %v1909 = vunpack.c.h.b16 %v639
        %v1910 = vunpack.c.l.b16 %v640
        %v1911 = vunpack.c.h.b16 %v640
        %v1912 = vunpack.c.l.b16 %v641
        %v1913 = vunpack.c.h.b16 %v641
        %v1914 = vunpack.c.l.b16 %v642
        %v1915 = vunpack.c.h.b16 %v642
        %v1916 = vunpack.c.l.b16 %v643
        %v1917 = vunpack.c.h.b16 %v643
        %v1918 = vunpack.c.l.b16 %v644
        %v1919 = vunpack.c.h.b16 %v644
        %v1920 = vunpack.c.l.b16 %v645
        %v1921 = vunpack.c.h.b16 %v645
        %v1922 = vunpack.c.l.b16 %v646
        %v1923 = vunpack.c.h.b16 %v646
        %v1924 = vunpack.c.l.b16 %v647
        %v1925 = vunpack.c.h.b16 %v647
        %v1926 = vunpack.c.l.b16 %v648
        %v1927 = vunpack.c.h.b16 %v648
        %v1928 = vunpack.c.l.b16 %v649
        %v1929 = vunpack.c.h.b16 %v649
        %v1930 = vunpack.c.l.b16 %v650
        %v1931 = vunpack.c.h.b16 %v650
        %v1932 = vunpack.c.l.b16 %v651
        %v1933 = vunpack.c.h.b16 %v651
        %v1934 = vunpack.c.l.b16 %v652
        %v1935 = vunpack.c.h.b16 %v652
        %v1936 = vunpack.c.l.b16 %v653
        %v1937 = vunpack.c.h.b16 %v653
        %v1938 = vunpack.c.l.b16 %v654
        %v1939 = vunpack.c.h.b16 %v654
        %v1940 = vunpack.c.l.b16 %v655
        %v1941 = vunpack.c.h.b16 %v655
        %v1942 = vunpack.c.l.b16 %v656
        %v1943 = vunpack.c.h.b16 %v656
        %v1944 = vunpack.c.l.b16 %v657
        %v1945 = vunpack.c.h.b16 %v657
        %v1946 = vunpack.c.l.b16 %v658
        %v1947 = vunpack.c.h.b16 %v658
        %v1948 = vunpack.c.l.b16 %v659
        %v1949 = vunpack.c.h.b16 %v659
        %v1950 = vunpack.c.l.b16 %v660
        %v1951 = vunpack.c.h.b16 %v660
        %v1952 = vunpack.c.l.b16 %v661
        %v1953 = vunpack.c.h.b16 %v661
        %v1954 = vunpack.c.l.b16 %v662
        %v1955 = vunpack.c.h.b16 %v662
        %v1956 = vunpack.c.l.b16 %v663
        %v1957 = vunpack.c.h.b16 %v663
        %v1958 = vunpack.c.l.b16 %v664
        %v1959 = vunpack.c.h.b16 %v664
        %v1960 = vunpack.c.l.b16 %v665
        %v1961 = vunpack.c.h.b16 %v665
        %v1962 = vunpack.c.l.b16 %v666
        %v1963 = vunpack.c.h.b16 %v666
        %v1964 = vunpack.c.l.b16 %v667
        %v1965 = vunpack.c.h.b16 %v667
        %v1966 = vunpack.c.l.b16 %v668
        %v1967 = vunpack.c.h.b16 %v668
        %v1968 = vunpack.c.l.b16 %v669
        %v1969 = vunpack.c.h.b16 %v669
        %v1970 = vunpack.c.l.b16 %v670
        %v1971 = vunpack.c.h.b16 %v670
        %v1972 = vunpack.c.l.b16 %v671
        %v1973 = vunpack.c.h.b16 %v671
        %v1974 = vunpack.c.l.b16 %v672
        %v1975 = vunpack.c.h.b16 %v672
        %v1976 = vunpack.c.l.b16 %v673
        %v1977 = vunpack.c.h.b16 %v673
        %v1978 = vunpack.c.l.b16 %v674
        %v1979 = vunpack.c.h.b16 %v674
        %v1980 = vunpack.c.l.b16 %v675
        %v1981 = vunpack.c.h.b16 %v675
        %v1982 = vunpack.c.l.b16 %v676
        %v1983 = vunpack.c.h.b16 %v676
        %v1984 = vunpack.c.l.b16 %v677
        %v1985 = vunpack.c.h.b16 %v677
        %v1986 = vunpack.c.l.b16 %v678
        %v1987 = vunpack.c.h.b16 %v678
        %v1988 = vunpack.c.l.b16 %v679
        %v1989 = vunpack.c.h.b16 %v679
        %v1990 = vunpack.c.l.b16 %v680
        %v1991 = vunpack.c.h.b16 %v680
        %v1992 = vunpack.c.l.b16 %v681
        %v1993 = vunpack.c.h.b16 %v681
        %v1994 = vunpack.c.l.b16 %v682
        %v1995 = vunpack.c.h.b16 %v682
        %v1996 = vunpack.c.l.b16 %v683
        %v1997 = vunpack.c.h.b16 %v683
        %v1998 = vunpack.c.l.b16 %v684
        %v1999 = vunpack.c.h.b16 %v684
        %v2000 = vunpack.c.l.b16 %v685
        %v2001 = vunpack.c.h.b16 %v685
        %v2002 = vunpack.c.l.b16 %v686
        %v2003 = vunpack.c.h.b16 %v686
        %v2004 = vunpack.c.l.b16 %v687
        %v2005 = vunpack.c.h.b16 %v687
        %v2006 = vunpack.c.l.b16 %v688
        %v2007 = vunpack.c.h.b16 %v688
        %v2008 = vunpack.c.l.b16 %v689
        %v2009 = vunpack.c.h.b16 %v689
        %v2010 = vunpack.c.l.b16 %v690
        %v2011 = vunpack.c.h.b16 %v690
        %v2012 = vunpack.c.l.b16 %v691
        %v2013 = vunpack.c.h.b16 %v691
        %v2014 = vunpack.c.l.b16 %v692
        %v2015 = vunpack.c.h.b16 %v692
        %v2016 = vunpack.c.l.b16 %v693
        %v2017 = vunpack.c.h.b16 %v693
        %v2018 = vunpack.c.l.b16 %v694
        %v2019 = vunpack.c.h.b16 %v694
        %v2020 = vunpack.c.l.b16 %v695
        %v2021 = vunpack.c.h.b16 %v695
        %v2022 = vunpack.c.l.b16 %v696
        %v2023 = vunpack.c.h.b16 %v696
        %v2024 = vunpack.c.l.b16 %v697
        %v2025 = vunpack.c.h.b16 %v697
        %v2026 = vunpack.c.l.b16 %v698
        %v2027 = vunpack.c.h.b16 %v698
        %v2028 = vunpack.c.l.b16 %v699
        %v2029 = vunpack.c.h.b16 %v699
        %v2030 = vunpack.c.l.b16 %v700
        %v2031 = vunpack.c.h.b16 %v700
        %v2032 = vunpack.c.l.b16 %v701
        %v2033 = vunpack.c.h.b16 %v701
        %v2034 = vunpack.c.l.b16 %v702
        %v2035 = vunpack.c.h.b16 %v702
        %v2036 = vunpack.c.l.b16 %v703
        %v2037 = vunpack.c.h.b16 %v703
        %v2038 = vunpack.c.l.b16 %v704
        %v2039 = vunpack.c.h.b16 %v704
        %v2040 = vunpack.c.l.b16 %v705
        %v2041 = vunpack.c.h.b16 %v705
        %v2042 = vunpack.c.l.b16 %v706
        %v2043 = vunpack.c.h.b16 %v706
        %v2044 = vunpack.c.l.b16 %v707
        %v2045 = vunpack.c.h.b16 %v707
        %v2046 = vunpack.c.l.b16 %v708
        %v2047 = vunpack.c.h.b16 %v708
        %v2048 = vunpack.c.l.b16 %v709
        %v2049 = vunpack.c.h.b16 %v709
        %v2050 = vunpack.c.l.b16 %v710
        %v2051 = vunpack.c.h.b16 %v710
        %v2052 = vunpack.c.l.b16 %v711
        %v2053 = vunpack.c.h.b16 %v711
        %v2054 = vunpack.c.l.b16 %v712
        %v2055 = vunpack.c.h.b16 %v712
        %v2056 = vunpack.c.l.b16 %v713
        %v2057 = vunpack.c.h.b16 %v713
        %v2058 = vunpack.c.l.b16 %v714
        %v2059 = vunpack.c.h.b16 %v714
        %v2060 = vunpack.c.l.b16 %v715
        %v2061 = vunpack.c.h.b16 %v715
        %v2062 = vunpack.c.l.b16 %v716
        %v2063 = vunpack.c.h.b16 %v716
        %v2064 = vunpack.c.l.b16 %v717
        %v2065 = vunpack.c.h.b16 %v717
        %v2066 = vunpack.c.l.b16 %v718
        %v2067 = vunpack.c.h.b16 %v718
        %v2068 = vunpack.c.l.b16 %v719
        %v2069 = vunpack.c.h.b16 %v719
        %v2070 = vunpack.c.l.b16 %v720
        %v2071 = vunpack.c.h.b16 %v720
        %v2072 = vunpack.c.l.b16 %v721
        %v2073 = vunpack.c.h.b16 %v721
        %v2074 = vunpack.c.l.b16 %v722
        %v2075 = vunpack.c.h.b16 %v722
        %v2076 = vunpack.c.l.b16 %v723
        %v2077 = vunpack.c.h.b16 %v723
        %v2078 = vunpack.c.l.b16 %v724
        %v2079 = vunpack.c.h.b16 %v724
        %v2080 = vunpack.c.l.b16 %v725
        %v2081 = vunpack.c.h.b16 %v725
        %v2082 = vunpack.c.l.b16 %v726
        %v2083 = vunpack.c.h.b16 %v726
        %v2084 = vunpack.c.l.b16 %v727
        %v2085 = vunpack.c.h.b16 %v727
        %v2086 = vunpack.c.l.b16 %v728
        %v2087 = vunpack.c.h.b16 %v728
        %v2088 = vunpack.c.l.b16 %v729
        %v2089 = vunpack.c.h.b16 %v729
        %v2090 = vunpack.c.l.b16 %v730
        %v2091 = vunpack.c.h.b16 %v730
        %v2092 = vunpack.c.l.b16 %v731
        %v2093 = vunpack.c.h.b16 %v731
        %v2094 = vunpack.c.l.b16 %v732
        %v2095 = vunpack.c.h.b16 %v732
        %v2096 = vunpack.c.l.b16 %v733
        %v2097 = vunpack.c.h.b16 %v733
        %v2098 = vunpack.c.l.b16 %v734
        %v2099 = vunpack.c.h.b16 %v734
        %v2100 = vunpack.c.l.b16 %v735
        %v2101 = vunpack.c.h.b16 %v735
        %v2102 = vunpack.c.l.b16 %v736
        %v2103 = vunpack.c.h.b16 %v736
        %v2104 = vunpack.c.l.b16 %v737
        %v2105 = vunpack.c.h.b16 %v737
        %v2106 = vunpack.c.l.b16 %v738
        %v2107 = vunpack.c.h.b16 %v738
        %v2108 = vunpack.c.l.b16 %v739
        %v2109 = vunpack.c.h.b16 %v739
        %v2110 = vunpack.c.l.b16 %v740
        %v2111 = vunpack.c.h.b16 %v740
        %v2112 = vunpack.c.l.b16 %v741
        %v2113 = vunpack.c.h.b16 %v741
        %v2114 = vunpack.c.l.b16 %v742
        %v2115 = vunpack.c.h.b16 %v742
        %v2116 = vunpack.c.l.b16 %v743
        %v2117 = vunpack.c.h.b16 %v743
        %v2118 = vunpack.c.l.b16 %v744
        %v2119 = vunpack.c.h.b16 %v744
        %v2120 = vunpack.c.l.b16 %v745
        %v2121 = vunpack.c.h.b16 %v745
        %v2122 = vunpack.c.l.b16 %v746
        %v2123 = vunpack.c.h.b16 %v746
        %v2124 = vunpack.c.l.b16 %v747
        %v2125 = vunpack.c.h.b16 %v747
        %v2126 = vunpack.c.l.b16 %v748
        %v2127 = vunpack.c.h.b16 %v748
        %v2128 = vunpack.c.l.b16 %v749
        %v2129 = vunpack.c.h.b16 %v749
        %v2130 = vunpack.c.l.b16 %v750
        %v2131 = vunpack.c.h.b16 %v750
        %v2132 = vunpack.c.l.b16 %v751
        %v2133 = vunpack.c.h.b16 %v751
        %v2134 = vunpack.c.l.b16 %v752
        %v2135 = vunpack.c.h.b16 %v752
        %v2136 = vunpack.c.l.b16 %v753
        %v2137 = vunpack.c.h.b16 %v753
        %v2138 = vunpack.c.l.b16 %v754
        %v2139 = vunpack.c.h.b16 %v754
        %v2140 = vunpack.c.l.b16 %v755
        %v2141 = vunpack.c.h.b16 %v755
        %v2142 = vunpack.c.l.b16 %v756
        %v2143 = vunpack.c.h.b16 %v756
        %v2144 = vunpack.c.l.b16 %v757
        %v2145 = vunpack.c.h.b16 %v757
        %v2146 = vunpack.c.l.b16 %v758
        %v2147 = vunpack.c.h.b16 %v758
        %v2148 = vunpack.c.l.b16 %v759
        %v2149 = vunpack.c.h.b16 %v759
        %v2150 = vunpack.c.l.b16 %v760
        %v2151 = vunpack.c.h.b16 %v760
        %v2152 = vunpack.c.l.b16 %v761
        %v2153 = vunpack.c.h.b16 %v761
        %v2154 = vunpack.c.l.b16 %v762
        %v2155 = vunpack.c.h.b16 %v762
        %v2156 = vunpack.c.l.b16 %v763
        %v2157 = vunpack.c.h.b16 %v763
        %v2158 = vunpack.c.l.b16 %v764
        %v2159 = vunpack.c.h.b16 %v764
        %v2160 = vunpack.c.l.b16 %v765
        %v2161 = vunpack.c.h.b16 %v765
        %v2162 = vunpack.c.l.b16 %v766
        %v2163 = vunpack.c.h.b16 %v766
        %v2164 = vunpack.c.l.b16 %v767
        %v2165 = vunpack.c.h.b16 %v767
        %v2166 = vunpack.c.l.b16 %v768
        %v2167 = vunpack.c.h.b16 %v768
        %v2168 = vunpack.c.l.b16 %v769
        %v2169 = vunpack.c.h.b16 %v769
        %v2170 = vunpack.c.l.b16 %v770
        %v2171 = vunpack.c.h.b16 %v770
        %v2172 = vunpack.c.l.b16 %v771
        %v2173 = vunpack.c.h.b16 %v771
        %v2174 = vunpack.c.l.b16 %v772
        %v2175 = vunpack.c.h.b16 %v772
        %v2176 = vunpack.c.l.b16 %v773
        %v2177 = vunpack.c.h.b16 %v773
        %v2178 = vunpack.c.l.b16 %v774
        %v2179 = vunpack.c.h.b16 %v774
        %v2180 = vunpack.c.l.b16 %v775
        %v2181 = vunpack.c.h.b16 %v775
        %v2182 = vunpack.c.l.b16 %v776
        %v2183 = vunpack.c.h.b16 %v776
        %v2184 = vunpack.c.l.b16 %v777
        %v2185 = vunpack.c.h.b16 %v777
        %v2186 = vunpack.c.l.b16 %v778
        %v2187 = vunpack.c.h.b16 %v778
        %v2188 = vunpack.c.l.b16 %v779
        %v2189 = vunpack.c.h.b16 %v779
        %v2190 = vunpack.c.l.b16 %v780
        %v2191 = vunpack.c.h.b16 %v780
        %v2192 = vunpack.c.l.b16 %v781
        %v2193 = vunpack.c.h.b16 %v781
        %v2194 = vunpack.c.l.b16 %v782
        %v2195 = vunpack.c.h.b16 %v782
        %v2196 = vunpack.c.l.b16 %v783
        %v2197 = vunpack.c.h.b16 %v783
        %v2198 = vunpack.c.l.b16 %v784
        %v2199 = vunpack.c.h.b16 %v784
        %v2200 = vunpack.c.l.b16 %v785
        %v2201 = vunpack.c.h.b16 %v785
        %v2202 = vunpack.c.l.b16 %v786
        %v2203 = vunpack.c.h.b16 %v786
        %v2204 = vunpack.c.l.b16 %v787
        %v2205 = vunpack.c.h.b16 %v787
        %v2206 = vunpack.c.l.b16 %v788
        %v2207 = vunpack.c.h.b16 %v788
        %v2208 = vunpack.c.l.b16 %v789
        %v2209 = vunpack.c.h.b16 %v789
        %v2210 = vunpack.c.l.b16 %v790
        %v2211 = vunpack.c.h.b16 %v790
        %v2212 = vunpack.c.l.b16 %v791
        %v2213 = vunpack.c.h.b16 %v791
        %v2214 = vunpack.c.l.b16 %v792
        %v2215 = vunpack.c.h.b16 %v792
        %v2216 = vunpack.c.l.b16 %v793
        %v2217 = vunpack.c.h.b16 %v793
        %v2218 = vunpack.c.l.b16 %v794
        %v2219 = vunpack.c.h.b16 %v794
        %v2220 = vunpack.c.l.b16 %v795
        %v2221 = vunpack.c.h.b16 %v795
        %v2222 = vunpack.c.l.b16 %v796
        %v2223 = vunpack.c.h.b16 %v796
        %v2224 = vunpack.c.l.b16 %v797
        %v2225 = vunpack.c.h.b16 %v797
        %v2226 = vunpack.c.l.b16 %v798
        %v2227 = vunpack.c.h.b16 %v798
        %v2228 = vunpack.c.l.b16 %v799
        %v2229 = vunpack.c.h.b16 %v799
        %v2230 = vunpack.c.l.b16 %v800
        %v2231 = vunpack.c.h.b16 %v800
        %v2232 = vunpack.c.l.b16 %v801
        %v2233 = vunpack.c.h.b16 %v801
        %v2234 = vunpack.c.l.b16 %v802
        %v2235 = vunpack.c.h.b16 %v802
        %v2236 = vunpack.c.l.b16 %v803
        %v2237 = vunpack.c.h.b16 %v803
        %v2238 = vunpack.c.l.b16 %v804
        %v2239 = vunpack.c.h.b16 %v804
        %v2240 = vunpack.c.l.b16 %v805
        %v2241 = vunpack.c.h.b16 %v805
        %v2242 = vunpack.c.l.b16 %v806
        %v2243 = vunpack.c.h.b16 %v806
        %v2244 = vunpack.c.l.b16 %v807
        %v2245 = vunpack.c.h.b16 %v807
        %v2246 = vunpack.c.l.b16 %v808
        %v2247 = vunpack.c.h.b16 %v808
        %v2248 = vunpack.c.l.b16 %v809
        %v2249 = vunpack.c.h.b16 %v809
        %v2250 = vunpack.c.l.b16 %v810
        %v2251 = vunpack.c.h.b16 %v810
        %v2252 = vunpack.c.l.b16 %v811
        %v2253 = vunpack.c.h.b16 %v811
        %v2254 = vunpack.c.l.b16 %v812
        %v2255 = vunpack.c.h.b16 %v812
        %v2256 = vunpack.c.l.b16 %v813
        %v2257 = vunpack.c.h.b16 %v813
        %v2258 = vunpack.c.l.b16 %v814
        %v2259 = vunpack.c.h.b16 %v814
        %v2260 = vunpack.c.l.b16 %v815
        %v2261 = vunpack.c.h.b16 %v815
        %v2262 = vunpack.c.l.b16 %v816
        %v2263 = vunpack.c.h.b16 %v816
        %v2264 = vunpack.c.l.b16 %v817
        %v2265 = vunpack.c.h.b16 %v817
        %v2266 = vunpack.c.l.b16 %v818
        %v2267 = vunpack.c.h.b16 %v818
        %v2268 = vunpack.c.l.b16 %v819
        %v2269 = vunpack.c.h.b16 %v819
        %v2270 = vunpack.c.l.b16 %v820
        %v2271 = vunpack.c.h.b16 %v820
        %v2272 = vunpack.c.l.b16 %v821
        %v2273 = vunpack.c.h.b16 %v821
        %v2274 = vunpack.c.l.b16 %v822
        %v2275 = vunpack.c.h.b16 %v822
        %v2276 = vunpack.c.l.b16 %v823
        %v2277 = vunpack.c.h.b16 %v823
        %v2278 = vunpack.c.l.b16 %v824
        %v2279 = vunpack.c.h.b16 %v824
        %v2280 = vunpack.c.l.b16 %v825
        %v2281 = vunpack.c.h.b16 %v825
        %v2282 = vunpack.c.l.b16 %v826
        %v2283 = vunpack.c.h.b16 %v826
        %v2284 = vunpack.c.l.b16 %v827
        %v2285 = vunpack.c.h.b16 %v827
        %v2286 = vunpack.c.l.b16 %v828
        %v2287 = vunpack.c.h.b16 %v828
        %v2288 = vunpack.c.l.b16 %v829
        %v2289 = vunpack.c.h.b16 %v829
        %v2290 = vunpack.c.l.b16 %v830
        %v2291 = vunpack.c.h.b16 %v830
        %v2292 = vunpack.c.l.b16 %v831
        %v2293 = vunpack.c.h.b16 %v831
        %v2294 = vunpack.c.l.b16 %v832
        %v2295 = vunpack.c.h.b16 %v832
        %v2296 = vunpack.c.l.b16 %v833
        %v2297 = vunpack.c.h.b16 %v833
        %v2298 = vunpack.c.l.b16 %v834
        %v2299 = vunpack.c.h.b16 %v834
        %v2300 = vunpack.c.l.b16 %v835
        %v2301 = vunpack.c.h.b16 %v835
        %v2302 = vunpack.c.l.b16 %v836
        %v2303 = vunpack.c.h.b16 %v836
        %v2304 = vunpack.c.l.b16 %v837
        %v2305 = vunpack.c.h.b16 %v837
        %v2306 = vunpack.c.l.b16 %v838
        %v2307 = vunpack.c.h.b16 %v838
        %v2308 = vunpack.c.l.b16 %v839
        %v2309 = vunpack.c.h.b16 %v839
        %v2310 = vunpack.c.l.b16 %v840
        %v2311 = vunpack.c.h.b16 %v840
        %v2312 = vunpack.c.l.b16 %v841
        %v2313 = vunpack.c.h.b16 %v841
        %v2314 = vunpack.c.l.b16 %v842
        %v2315 = vunpack.c.h.b16 %v842
        %v2316 = vunpack.c.l.b16 %v843
        %v2317 = vunpack.c.h.b16 %v843
        %v2318 = vunpack.c.l.b16 %v844
        %v2319 = vunpack.c.h.b16 %v844
        %v2320 = vunpack.c.l.b16 %v845
        %v2321 = vunpack.c.h.b16 %v845
        %v2322 = vunpack.c.l.b16 %v846
        %v2323 = vunpack.c.h.b16 %v846
        %v2324 = vunpack.c.l.b16 %v847
        %v2325 = vunpack.c.h.b16 %v847
        %v2326 = vunpack.c.l.b16 %v848
        %v2327 = vunpack.c.h.b16 %v848
        %v2328 = vunpack.c.l.b16 %v849
        %v2329 = vunpack.c.h.b16 %v849
        %v2330 = vunpack.c.l.b16 %v850
        %v2331 = vunpack.c.h.b16 %v850
        %v2332 = vunpack.c.l.b16 %v851
        %v2333 = vunpack.c.h.b16 %v851
        %v2334 = vunpack.c.l.b16 %v852
        %v2335 = vunpack.c.h.b16 %v852
        %v2336 = vunpack.c.l.b16 %v853
        %v2337 = vunpack.c.h.b16 %v853
        %v2338 = vunpack.c.l.b16 %v854
        %v2339 = vunpack.c.h.b16 %v854
        %v2340 = vunpack.c.l.b16 %v855
        %v2341 = vunpack.c.h.b16 %v855
        %v2342 = vunpack.c.l.b16 %v856
        %v2343 = vunpack.c.h.b16 %v856
        %v2344 = vunpack.c.l.b16 %v857
        %v2345 = vunpack.c.h.b16 %v857
        %v2346 = vunpack.c.l.b16 %v858
        %v2347 = vunpack.c.h.b16 %v858
        %v2348 = vunpack.c.l.b16 %v859
        %v2349 = vunpack.c.h.b16 %v859
        %v2350 = vunpack.c.l.b16 %v860
        %v2351 = vunpack.c.h.b16 %v860
        %v2352 = vunpack.c.l.b16 %v861
        %v2353 = vunpack.c.h.b16 %v861
        %v2354 = vunpack.c.l.b16 %v862
        %v2355 = vunpack.c.h.b16 %v862
        %v2356 = vunpack.c.l.b16 %v863
        %v2357 = vunpack.c.h.b16 %v863
        %v2358 = vunpack.c.l.b16 %v864
        %v2359 = vunpack.c.h.b16 %v864
        %v2360 = vunpack.c.l.b16 %v865
        %v2361 = vunpack.c.h.b16 %v865
        %v2362 = vunpack.c.l.b16 %v866
        %v2363 = vunpack.c.h.b16 %v866
        %v2364 = vunpack.c.l.b16 %v867
        %v2365 = vunpack.c.h.b16 %v867
        %v2366 = vunpack.c.l.b16 %v868
        %v2367 = vunpack.c.h.b16 %v868
        %v2368 = vunpack.c.l.b16 %v869
        %v2369 = vunpack.c.h.b16 %v869
        %v2370 = vunpack.c.l.b16 %v870
        %v2371 = vunpack.c.h.b16 %v870
        %v2372 = vunpack.c.l.b16 %v871
        %v2373 = vunpack.c.h.b16 %v871
        %v2374 = vunpack.c.l.b16 %v872
        %v2375 = vunpack.c.h.b16 %v872
        %v2376 = vunpack.c.l.b16 %v873
        %v2377 = vunpack.c.h.b16 %v873
        %v2378 = vunpack.c.l.b16 %v874
        %v2379 = vunpack.c.h.b16 %v874
        %v2380 = vunpack.c.l.b16 %v875
        %v2381 = vunpack.c.h.b16 %v875
        %v2382 = vunpack.c.l.b16 %v876
        %v2383 = vunpack.c.h.b16 %v876
        %v2384 = vunpack.c.l.b16 %v877
        %v2385 = vunpack.c.h.b16 %v877
        %v2386 = vunpack.c.l.b16 %v878
        %v2387 = vunpack.c.h.b16 %v878
        %v2388 = vunpack.c.l.b16 %v879
        %v2389 = vunpack.c.h.b16 %v879
        %v2390 = vunpack.c.l.b16 %v880
        %v2391 = vunpack.c.h.b16 %v880
        %v2392 = vunpack.c.l.b16 %v881
        %v2393 = vunpack.c.h.b16 %v881
        %v2394 = vunpack.c.l.b16 %v882
        %v2395 = vunpack.c.h.b16 %v882
        %v2396 = vunpack.c.l.b16 %v883
        %v2397 = vunpack.c.h.b16 %v883
        %v2398 = vunpack.c.l.b16 %v884
        %v2399 = vunpack.c.h.b16 %v884
        %v2400 = vunpack.c.l.b16 %v885
        %v2401 = vunpack.c.h.b16 %v885
        %v2402 = vunpack.c.l.b16 %v886
        %v2403 = vunpack.c.h.b16 %v886
        %v2404 = vunpack.c.l.b16 %v887
        %v2405 = vunpack.c.h.b16 %v887
        %v2406 = vunpack.c.l.b16 %v888
        %v2407 = vunpack.c.h.b16 %v888
        %v2408 = vunpack.c.l.b16 %v889
        %v2409 = vunpack.c.h.b16 %v889
        %v2410 = vunpack.c.l.b16 %v890
        %v2411 = vunpack.c.h.b16 %v890
        %v2412 = vunpack.c.l.b16 %v891
        %v2413 = vunpack.c.h.b16 %v891
        %v2414 = vunpack.c.l.b16 %v892
        %v2415 = vunpack.c.h.b16 %v892
        %v2416 = vunpack.c.l.b16 %v893
        %v2417 = vunpack.c.h.b16 %v893
        %v2418 = vunpack.c.l.b16 %v894
        %v2419 = vunpack.c.h.b16 %v894
        %v2420 = vunpack.c.l.b16 %v895
        %v2421 = vunpack.c.h.b16 %v895
        %v2422 = vunpack.c.l.b16 %v896
        %v2423 = vunpack.c.h.b16 %v896
        %v2424 = vunpack.c.l.b16 %v897
        %v2425 = vunpack.c.h.b16 %v897
        %v2426 = vunpack.c.l.b16 %v898
        %v2427 = vunpack.c.h.b16 %v898
        %v2428 = vunpack.c.l.b16 %v899
        %v2429 = vunpack.c.h.b16 %v899
        %v2430 = vunpack.c.l.b16 %v900
        %v2431 = vunpack.c.h.b16 %v900
        %v2432 = vunpack.c.l.b16 %v901
        %v2433 = vunpack.c.h.b16 %v901
        %v2434 = vunpack.c.l.b16 %v902
        %v2435 = vunpack.c.h.b16 %v902
        %v2436 = vunpack.c.l.b16 %v903
        %v2437 = vunpack.c.h.b16 %v903
        %v2438 = vunpack.c.l.b16 %v904
        %v2439 = vunpack.c.h.b16 %v904
        %v2440 = vunpack.c.l.b16 %v905
        %v2441 = vunpack.c.h.b16 %v905
        %v2442 = vunpack.c.l.b16 %v906
        %v2443 = vunpack.c.h.b16 %v906
        %v2444 = vunpack.c.l.b16 %v907
        %v2445 = vunpack.c.h.b16 %v907
        %v2446 = vunpack.c.l.b16 %v908
        %v2447 = vunpack.c.h.b16 %v908
        %v2448 = vunpack.c.l.b16 %v909
        %v2449 = vunpack.c.h.b16 %v909
        %v2450 = vunpack.c.l.b16 %v910
        %v2451 = vunpack.c.h.b16 %v910
        %v2452 = vunpack.c.l.b16 %v911
        %v2453 = vunpack.c.h.b16 %v911
        %v2454 = vunpack.c.l.b16 %v912
        %v2455 = vunpack.c.h.b16 %v912
        %v2456 = vunpack.c.l.b16 %v913
        %v2457 = vunpack.c.h.b16 %v913
        %v2458 = vunpack.c.l.b16 %v914
        %v2459 = vunpack.c.h.b16 %v914
        %v2460 = vunpack.c.l.b16 %v915
        %v2461 = vunpack.c.h.b16 %v915
        %v2462 = vunpack.c.l.b16 %v916
        %v2463 = vunpack.c.h.b16 %v916
        %v2464 = vunpack.c.l.b16 %v917
        %v2465 = vunpack.c.h.b16 %v917
        %v2466 = vunpack.c.l.b16 %v918
        %v2467 = vunpack.c.h.b16 %v918
        %v2468 = vunpack.c.l.b16 %v919
        %v2469 = vunpack.c.h.b16 %v919
        %v2470 = vunpack.c.l.b16 %v920
        %v2471 = vunpack.c.h.b16 %v920
        %v2472 = vunpack.c.l.b16 %v921
        %v2473 = vunpack.c.h.b16 %v921
        %v2474 = vunpack.c.l.b16 %v922
        %v2475 = vunpack.c.h.b16 %v922
        %v2476 = vunpack.c.l.b16 %v923
        %v2477 = vunpack.c.h.b16 %v923
        %v2478 = vunpack.c.l.b16 %v924
        %v2479 = vunpack.c.h.b16 %v924
        %v2480 = vunpack.c.l.b16 %v925
        %v2481 = vunpack.c.h.b16 %v925
        %v2482 = vunpack.c.l.b16 %v926
        %v2483 = vunpack.c.h.b16 %v926
        %v2484 = vunpack.c.l.b16 %v927
        %v2485 = vunpack.c.h.b16 %v927
        %v2486 = vpack.c.b16 %v1466, %v1462
        %v2487 = vpack.c.b16 %v1467, %v1463
        %v2488 = vpack.c.b16 %v1468, %v1464
        %v2489 = vpack.c.b16 %v1469, %v1465
        %v2490 = vpack.c.b16 %v1474, %v1470
        %v2491 = vpack.c.b16 %v1475, %v1471
        %v2492 = vpack.c.b16 %v1476, %v1472
        %v2493 = vpack.c.b16 %v1477, %v1473
        %v2494 = vpack.c.b16 %v1482, %v1478
        %v2495 = vpack.c.b16 %v1483, %v1479
        %v2496 = vpack.c.b16 %v1484, %v1480
        %v2497 = vpack.c.b16 %v1485, %v1481
        %v2498 = vpack.c.b16 %v1490, %v1486
        %v2499 = vpack.c.b16 %v1491, %v1487
        %v2500 = vpack.c.b16 %v1492, %v1488
        %v2501 = vpack.c.b16 %v1493, %v1489
        %v2502 = vpack.c.b16 %v1498, %v1494
        %v2503 = vpack.c.b16 %v1499, %v1495
        %v2504 = vpack.c.b16 %v1500, %v1496
        %v2505 = vpack.c.b16 %v1501, %v1497
        %v2506 = vpack.c.b16 %v1506, %v1502
        %v2507 = vpack.c.b16 %v1507, %v1503
        %v2508 = vpack.c.b16 %v1508, %v1504
        %v2509 = vpack.c.b16 %v1509, %v1505
        %v2510 = vpack.c.b16 %v1514, %v1510
        %v2511 = vpack.c.b16 %v1515, %v1511
        %v2512 = vpack.c.b16 %v1516, %v1512
        %v2513 = vpack.c.b16 %v1517, %v1513
        %v2514 = vpack.c.b16 %v1522, %v1518
        %v2515 = vpack.c.b16 %v1523, %v1519
        %v2516 = vpack.c.b16 %v1524, %v1520
        %v2517 = vpack.c.b16 %v1525, %v1521
        %v2518 = vpack.c.b16 %v1530, %v1526
        %v2519 = vpack.c.b16 %v1531, %v1527
        %v2520 = vpack.c.b16 %v1532, %v1528
        %v2521 = vpack.c.b16 %v1533, %v1529
        %v2522 = vpack.c.b16 %v1538, %v1534
        %v2523 = vpack.c.b16 %v1539, %v1535
        %v2524 = vpack.c.b16 %v1540, %v1536
        %v2525 = vpack.c.b16 %v1541, %v1537
        %v2526 = vpack.c.b16 %v1546, %v1542
        %v2527 = vpack.c.b16 %v1547, %v1543
        %v2528 = vpack.c.b16 %v1548, %v1544
        %v2529 = vpack.c.b16 %v1549, %v1545
        %v2530 = vpack.c.b16 %v1554, %v1550
        %v2531 = vpack.c.b16 %v1555, %v1551
        %v2532 = vpack.c.b16 %v1556, %v1552
        %v2533 = vpack.c.b16 %v1557, %v1553
        %v2534 = vpack.c.b16 %v1562, %v1558
        %v2535 = vpack.c.b16 %v1563, %v1559
        %v2536 = vpack.c.b16 %v1564, %v1560
        %v2537 = vpack.c.b16 %v1565, %v1561
        %v2538 = vpack.c.b16 %v1570, %v1566
        %v2539 = vpack.c.b16 %v1571, %v1567
        %v2540 = vpack.c.b16 %v1572, %v1568
        %v2541 = vpack.c.b16 %v1573, %v1569
        %v2542 = vpack.c.b16 %v1578, %v1574
        %v2543 = vpack.c.b16 %v1579, %v1575
        %v2544 = vpack.c.b16 %v1580, %v1576
        %v2545 = vpack.c.b16 %v1581, %v1577
        %v2546 = vpack.c.b16 %v1586, %v1582
        %v2547 = vpack.c.b16 %v1587, %v1583
        %v2548 = vpack.c.b16 %v1588, %v1584
        %v2549 = vpack.c.b16 %v1589, %v1585
        %v2550 = vpack.c.b16 %v1594, %v1590
        %v2551 = vpack.c.b16 %v1595, %v1591
        %v2552 = vpack.c.b16 %v1596, %v1592
        %v2553 = vpack.c.b16 %v1597, %v1593
        %v2554 = vpack.c.b16 %v1602, %v1598
        %v2555 = vpack.c.b16 %v1603, %v1599
        %v2556 = vpack.c.b16 %v1604, %v1600
        %v2557 = vpack.c.b16 %v1605, %v1601
        %v2558 = vpack.c.b16 %v1610, %v1606
        %v2559 = vpack.c.b16 %v1611, %v1607
        %v2560 = vpack.c.b16 %v1612, %v1608
        %v2561 = vpack.c.b16 %v1613, %v1609
        %v2562 = vpack.c.b16 %v1618, %v1614
        %v2563 = vpack.c.b16 %v1619, %v1615
        %v2564 = vpack.c.b16 %v1620, %v1616
        %v2565 = vpack.c.b16 %v1621, %v1617
        %v2566 = vpack.c.b16 %v1626, %v1622
        %v2567 = vpack.c.b16 %v1627, %v1623
        %v2568 = vpack.c.b16 %v1628, %v1624
        %v2569 = vpack.c.b16 %v1629, %v1625
        %v2570 = vpack.c.b16 %v1634, %v1630
        %v2571 = vpack.c.b16 %v1635, %v1631
        %v2572 = vpack.c.b16 %v1636, %v1632
        %v2573 = vpack.c.b16 %v1637, %v1633
        %v2574 = vpack.c.b16 %v1642, %v1638
        %v2575 = vpack.c.b16 %v1643, %v1639
        %v2576 = vpack.c.b16 %v1644, %v1640
        %v2577 = vpack.c.b16 %v1645, %v1641
        %v2578 = vpack.c.b16 %v1650, %v1646
        %v2579 = vpack.c.b16 %v1651, %v1647
        %v2580 = vpack.c.b16 %v1652, %v1648
        %v2581 = vpack.c.b16 %v1653, %v1649
        %v2582 = vpack.c.b16 %v1658, %v1654
        %v2583 = vpack.c.b16 %v1659, %v1655
        %v2584 = vpack.c.b16 %v1660, %v1656
        %v2585 = vpack.c.b16 %v1661, %v1657
        %v2586 = vpack.c.b16 %v1666, %v1662
        %v2587 = vpack.c.b16 %v1667, %v1663
        %v2588 = vpack.c.b16 %v1668, %v1664
        %v2589 = vpack.c.b16 %v1669, %v1665
        %v2590 = vpack.c.b16 %v1674, %v1670
        %v2591 = vpack.c.b16 %v1675, %v1671
        %v2592 = vpack.c.b16 %v1676, %v1672
        %v2593 = vpack.c.b16 %v1677, %v1673
        %v2594 = vpack.c.b16 %v1682, %v1678
        %v2595 = vpack.c.b16 %v1683, %v1679
        %v2596 = vpack.c.b16 %v1684, %v1680
        %v2597 = vpack.c.b16 %v1685, %v1681
        %v2598 = vpack.c.b16 %v1690, %v1686
        %v2599 = vpack.c.b16 %v1691, %v1687
        %v2600 = vpack.c.b16 %v1692, %v1688
        %v2601 = vpack.c.b16 %v1693, %v1689
        %v2602 = vpack.c.b16 %v1698, %v1694
        %v2603 = vpack.c.b16 %v1699, %v1695
        %v2604 = vpack.c.b16 %v1700, %v1696
        %v2605 = vpack.c.b16 %v1701, %v1697
        %v2606 = vpack.c.b16 %v1706, %v1702
        %v2607 = vpack.c.b16 %v1707, %v1703
        %v2608 = vpack.c.b16 %v1708, %v1704
        %v2609 = vpack.c.b16 %v1709, %v1705
        %v2610 = vpack.c.b16 %v1714, %v1710
        %v2611 = vpack.c.b16 %v1715, %v1711
        %v2612 = vpack.c.b16 %v1716, %v1712
        %v2613 = vpack.c.b16 %v1717, %v1713
        %v2614 = vpack.c.b16 %v1722, %v1718
        %v2615 = vpack.c.b16 %v1723, %v1719
        %v2616 = vpack.c.b16 %v1724, %v1720
        %v2617 = vpack.c.b16 %v1725, %v1721
        %v2618 = vpack.c.b16 %v1730, %v1726
        %v2619 = vpack.c.b16 %v1731, %v1727
        %v2620 = vpack.c.b16 %v1732, %v1728
        %v2621 = vpack.c.b16 %v1733, %v1729
        %v2622 = vpack.c.b16 %v1738, %v1734
        %v2623 = vpack.c.b16 %v1739, %v1735
        %v2624 = vpack.c.b16 %v1740, %v1736
        %v2625 = vpack.c.b16 %v1741, %v1737
        %v2626 = vpack.c.b16 %v1746, %v1742
        %v2627 = vpack.c.b16 %v1747, %v1743
        %v2628 = vpack.c.b16 %v1748, %v1744
        %v2629 = vpack.c.b16 %v1749, %v1745
        %v2630 = vpack.c.b16 %v1754, %v1750
        %v2631 = vpack.c.b16 %v1755, %v1751
        %v2632 = vpack.c.b16 %v1756, %v1752
        %v2633 = vpack.c.b16 %v1757, %v1753
        %v2634 = vpack.c.b16 %v1762, %v1758
        %v2635 = vpack.c.b16 %v1763, %v1759
        %v2636 = vpack.c.b16 %v1764, %v1760
        %v2637 = vpack.c.b16 %v1765, %v1761
        %v2638 = vpack.c.b16 %v1770, %v1766
        %v2639 = vpack.c.b16 %v1771, %v1767
        %v2640 = vpack.c.b16 %v1772, %v1768
        %v2641 = vpack.c.b16 %v1773, %v1769
        %v2642 = vpack.c.b16 %v1778, %v1774
        %v2643 = vpack.c.b16 %v1779, %v1775
        %v2644 = vpack.c.b16 %v1780, %v1776
        %v2645 = vpack.c.b16 %v1781, %v1777
        %v2646 = vpack.c.b16 %v1786, %v1782
        %v2647 = vpack.c.b16 %v1787, %v1783
        %v2648 = vpack.c.b16 %v1788, %v1784
        %v2649 = vpack.c.b16 %v1789, %v1785
        %v2650 = vpack.c.b16 %v1794, %v1790
        %v2651 = vpack.c.b16 %v1795, %v1791
        %v2652 = vpack.c.b16 %v1796, %v1792
        %v2653 = vpack.c.b16 %v1797, %v1793
        %v2654 = vpack.c.b16 %v1802, %v1798
        %v2655 = vpack.c.b16 %v1803, %v1799
        %v2656 = vpack.c.b16 %v1804, %v1800
        %v2657 = vpack.c.b16 %v1805, %v1801
        %v2658 = vpack.c.b16 %v1810, %v1806
        %v2659 = vpack.c.b16 %v1811, %v1807
        %v2660 = vpack.c.b16 %v1812, %v1808
        %v2661 = vpack.c.b16 %v1813, %v1809
        %v2662 = vpack.c.b16 %v1818, %v1814
        %v2663 = vpack.c.b16 %v1819, %v1815
        %v2664 = vpack.c.b16 %v1820, %v1816
        %v2665 = vpack.c.b16 %v1821, %v1817
        %v2666 = vpack.c.b16 %v1826, %v1822
        %v2667 = vpack.c.b16 %v1827, %v1823
        %v2668 = vpack.c.b16 %v1828, %v1824
        %v2669 = vpack.c.b16 %v1829, %v1825
        %v2670 = vpack.c.b16 %v1834, %v1830
        %v2671 = vpack.c.b16 %v1835, %v1831
        %v2672 = vpack.c.b16 %v1836, %v1832
        %v2673 = vpack.c.b16 %v1837, %v1833
        %v2674 = vpack.c.b16 %v1842, %v1838
        %v2675 = vpack.c.b16 %v1843, %v1839
        %v2676 = vpack.c.b16 %v1844, %v1840
        %v2677 = vpack.c.b16 %v1845, %v1841
        %v2678 = vpack.c.b16 %v1850, %v1846
        %v2679 = vpack.c.b16 %v1851, %v1847
        %v2680 = vpack.c.b16 %v1852, %v1848
        %v2681 = vpack.c.b16 %v1853, %v1849
        %v2682 = vpack.c.b16 %v1858, %v1854
        %v2683 = vpack.c.b16 %v1859, %v1855
        %v2684 = vpack.c.b16 %v1860, %v1856
        %v2685 = vpack.c.b16 %v1861, %v1857
        %v2686 = vpack.c.b16 %v1866, %v1862
        %v2687 = vpack.c.b16 %v1867, %v1863
        %v2688 = vpack.c.b16 %v1868, %v1864
        %v2689 = vpack.c.b16 %v1869, %v1865
        %v2690 = vpack.c.b16 %v1874, %v1870
        %v2691 = vpack.c.b16 %v1875, %v1871
        %v2692 = vpack.c.b16 %v1876, %v1872
        %v2693 = vpack.c.b16 %v1877, %v1873
        %v2694 = vpack.c.b16 %v1882, %v1878
        %v2695 = vpack.c.b16 %v1883, %v1879
        %v2696 = vpack.c.b16 %v1884, %v1880
        %v2697 = vpack.c.b16 %v1885, %v1881
        %v2698 = vpack.c.b16 %v1890, %v1886
        %v2699 = vpack.c.b16 %v1891, %v1887
        %v2700 = vpack.c.b16 %v1892, %v1888
        %v2701 = vpack.c.b16 %v1893, %v1889
        %v2702 = vpack.c.b16 %v1898, %v1894
        %v2703 = vpack.c.b16 %v1899, %v1895
        %v2704 = vpack.c.b16 %v1900, %v1896
        %v2705 = vpack.c.b16 %v1901, %v1897
        %v2706 = vpack.c.b16 %v1906, %v1902
        %v2707 = vpack.c.b16 %v1907, %v1903
        %v2708 = vpack.c.b16 %v1908, %v1904
        %v2709 = vpack.c.b16 %v1909, %v1905
        %v2710 = vpack.c.b16 %v1914, %v1910
        %v2711 = vpack.c.b16 %v1915, %v1911
        %v2712 = vpack.c.b16 %v1916, %v1912
        %v2713 = vpack.c.b16 %v1917, %v1913
        %v2714 = vpack.c.b16 %v1922, %v1918
        %v2715 = vpack.c.b16 %v1923, %v1919
        %v2716 = vpack.c.b16 %v1924, %v1920
        %v2717 = vpack.c.b16 %v1925, %v1921
        %v2718 = vpack.c.b16 %v1930, %v1926
        %v2719 = vpack.c.b16 %v1931, %v1927
        %v2720 = vpack.c.b16 %v1932, %v1928
        %v2721 = vpack.c.b16 %v1933, %v1929
        %v2722 = vpack.c.b16 %v1938, %v1934
        %v2723 = vpack.c.b16 %v1939, %v1935
        %v2724 = vpack.c.b16 %v1940, %v1936
        %v2725 = vpack.c.b16 %v1941, %v1937
        %v2726 = vpack.c.b16 %v1946, %v1942
        %v2727 = vpack.c.b16 %v1947, %v1943
        %v2728 = vpack.c.b16 %v1948, %v1944
        %v2729 = vpack.c.b16 %v1949, %v1945
        %v2730 = vpack.c.b16 %v1954, %v1950
        %v2731 = vpack.c.b16 %v1955, %v1951
        %v2732 = vpack.c.b16 %v1956, %v1952
        %v2733 = vpack.c.b16 %v1957, %v1953
        %v2734 = vpack.c.b16 %v1962, %v1958
        %v2735 = vpack.c.b16 %v1963, %v1959
        %v2736 = vpack.c.b16 %v1964, %v1960
        %v2737 = vpack.c.b16 %v1965, %v1961
        %v2738 = vpack.c.b16 %v1970, %v1966
        %v2739 = vpack.c.b16 %v1971, %v1967
        %v2740 = vpack.c.b16 %v1972, %v1968
        %v2741 = vpack.c.b16 %v1973, %v1969
        %v2742 = vpack.c.b16 %v1978, %v1974
        %v2743 = vpack.c.b16 %v1979, %v1975
        %v2744 = vpack.c.b16 %v1980, %v1976
        %v2745 = vpack.c.b16 %v1981, %v1977
        %v2746 = vpack.c.b16 %v1986, %v1982
        %v2747 = vpack.c.b16 %v1987, %v1983
        %v2748 = vpack.c.b16 %v1988, %v1984
        %v2749 = vpack.c.b16 %v1989, %v1985
        %v2750 = vpack.c.b16 %v1994, %v1990
        %v2751 = vpack.c.b16 %v1995, %v1991
        %v2752 = vpack.c.b16 %v1996, %v1992
        %v2753 = vpack.c.b16 %v1997, %v1993
        %v2754 = vpack.c.b16 %v2002, %v1998
        %v2755 = vpack.c.b16 %v2003, %v1999
        %v2756 = vpack.c.b16 %v2004, %v2000
        %v2757 = vpack.c.b16 %v2005, %v2001
        %v2758 = vpack.c.b16 %v2010, %v2006
        %v2759 = vpack.c.b16 %v2011, %v2007
        %v2760 = vpack.c.b16 %v2012, %v2008
        %v2761 = vpack.c.b16 %v2013, %v2009
        %v2762 = vpack.c.b16 %v2018, %v2014
        %v2763 = vpack.c.b16 %v2019, %v2015
        %v2764 = vpack.c.b16 %v2020, %v2016
        %v2765 = vpack.c.b16 %v2021, %v2017
        %v2766 = vpack.c.b16 %v2026, %v2022
        %v2767 = vpack.c.b16 %v2027, %v2023
        %v2768 = vpack.c.b16 %v2028, %v2024
        %v2769 = vpack.c.b16 %v2029, %v2025
        %v2770 = vpack.c.b16 %v2034, %v2030
        %v2771 = vpack.c.b16 %v2035, %v2031
        %v2772 = vpack.c.b16 %v2036, %v2032
        %v2773 = vpack.c.b16 %v2037, %v2033
        %v2774 = vpack.c.b16 %v2042, %v2038
        %v2775 = vpack.c.b16 %v2043, %v2039
        %v2776 = vpack.c.b16 %v2044, %v2040
        %v2777 = vpack.c.b16 %v2045, %v2041
        %v2778 = vpack.c.b16 %v2050, %v2046
        %v2779 = vpack.c.b16 %v2051, %v2047
        %v2780 = vpack.c.b16 %v2052, %v2048
        %v2781 = vpack.c.b16 %v2053, %v2049
        %v2782 = vpack.c.b16 %v2058, %v2054
        %v2783 = vpack.c.b16 %v2059, %v2055
        %v2784 = vpack.c.b16 %v2060, %v2056
        %v2785 = vpack.c.b16 %v2061, %v2057
        %v2786 = vpack.c.b16 %v2066, %v2062
        %v2787 = vpack.c.b16 %v2067, %v2063
        %v2788 = vpack.c.b16 %v2068, %v2064
        %v2789 = vpack.c.b16 %v2069, %v2065
        %v2790 = vpack.c.b16 %v2074, %v2070
        %v2791 = vpack.c.b16 %v2075, %v2071
        %v2792 = vpack.c.b16 %v2076, %v2072
        %v2793 = vpack.c.b16 %v2077, %v2073
        %v2794 = vpack.c.b16 %v2082, %v2078
        %v2795 = vpack.c.b16 %v2083, %v2079
        %v2796 = vpack.c.b16 %v2084, %v2080
        %v2797 = vpack.c.b16 %v2085, %v2081
        %v2798 = vpack.c.b16 %v2090, %v2086
        %v2799 = vpack.c.b16 %v2091, %v2087
        %v2800 = vpack.c.b16 %v2092, %v2088
        %v2801 = vpack.c.b16 %v2093, %v2089
        %v2802 = vpack.c.b16 %v2098, %v2094
        %v2803 = vpack.c.b16 %v2099, %v2095
        %v2804 = vpack.c.b16 %v2100, %v2096
        %v2805 = vpack.c.b16 %v2101, %v2097
        %v2806 = vpack.c.b16 %v2106, %v2102
        %v2807 = vpack.c.b16 %v2107, %v2103
        %v2808 = vpack.c.b16 %v2108, %v2104
        %v2809 = vpack.c.b16 %v2109, %v2105
        %v2810 = vpack.c.b16 %v2114, %v2110
        %v2811 = vpack.c.b16 %v2115, %v2111
        %v2812 = vpack.c.b16 %v2116, %v2112
        %v2813 = vpack.c.b16 %v2117, %v2113
        %v2814 = vpack.c.b16 %v2122, %v2118
        %v2815 = vpack.c.b16 %v2123, %v2119
        %v2816 = vpack.c.b16 %v2124, %v2120
        %v2817 = vpack.c.b16 %v2125, %v2121
        %v2818 = vpack.c.b16 %v2130, %v2126
        %v2819 = vpack.c.b16 %v2131, %v2127
        %v2820 = vpack.c.b16 %v2132, %v2128
        %v2821 = vpack.c.b16 %v2133, %v2129
        %v2822 = vpack.c.b16 %v2138, %v2134
        %v2823 = vpack.c.b16 %v2139, %v2135
        %v2824 = vpack.c.b16 %v2140, %v2136
        %v2825 = vpack.c.b16 %v2141, %v2137
        %v2826 = vpack.c.b16 %v2146, %v2142
        %v2827 = vpack.c.b16 %v2147, %v2143
        %v2828 = vpack.c.b16 %v2148, %v2144
        %v2829 = vpack.c.b16 %v2149, %v2145
        %v2830 = vpack.c.b16 %v2154, %v2150
        %v2831 = vpack.c.b16 %v2155, %v2151
        %v2832 = vpack.c.b16 %v2156, %v2152
        %v2833 = vpack.c.b16 %v2157, %v2153
        %v2834 = vpack.c.b16 %v2162, %v2158
        %v2835 = vpack.c.b16 %v2163, %v2159
        %v2836 = vpack.c.b16 %v2164, %v2160
        %v2837 = vpack.c.b16 %v2165, %v2161
        %v2838 = vpack.c.b16 %v2170, %v2166
        %v2839 = vpack.c.b16 %v2171, %v2167
        %v2840 = vpack.c.b16 %v2172, %v2168
        %v2841 = vpack.c.b16 %v2173, %v2169
        %v2842 = vpack.c.b16 %v2178, %v2174
        %v2843 = vpack.c.b16 %v2179, %v2175
        %v2844 = vpack.c.b16 %v2180, %v2176
        %v2845 = vpack.c.b16 %v2181, %v2177
        %v2846 = vpack.c.b16 %v2186, %v2182
        %v2847 = vpack.c.b16 %v2187, %v2183
        %v2848 = vpack.c.b16 %v2188, %v2184
        %v2849 = vpack.c.b16 %v2189, %v2185
        %v2850 = vpack.c.b16 %v2194, %v2190
        %v2851 = vpack.c.b16 %v2195, %v2191
        %v2852 = vpack.c.b16 %v2196, %v2192
        %v2853 = vpack.c.b16 %v2197, %v2193
        %v2854 = vpack.c.b16 %v2202, %v2198
        %v2855 = vpack.c.b16 %v2203, %v2199
        %v2856 = vpack.c.b16 %v2204, %v2200
        %v2857 = vpack.c.b16 %v2205, %v2201
        %v2858 = vpack.c.b16 %v2210, %v2206
        %v2859 = vpack.c.b16 %v2211, %v2207
        %v2860 = vpack.c.b16 %v2212, %v2208
        %v2861 = vpack.c.b16 %v2213, %v2209
        %v2862 = vpack.c.b16 %v2218, %v2214
        %v2863 = vpack.c.b16 %v2219, %v2215
        %v2864 = vpack.c.b16 %v2220, %v2216
        %v2865 = vpack.c.b16 %v2221, %v2217
        %v2866 = vpack.c.b16 %v2226, %v2222
        %v2867 = vpack.c.b16 %v2227, %v2223
        %v2868 = vpack.c.b16 %v2228, %v2224
        %v2869 = vpack.c.b16 %v2229, %v2225
        %v2870 = vpack.c.b16 %v2234, %v2230
        %v2871 = vpack.c.b16 %v2235, %v2231
        %v2872 = vpack.c.b16 %v2236, %v2232
        %v2873 = vpack.c.b16 %v2237, %v2233
        %v2874 = vpack.c.b16 %v2242, %v2238
        %v2875 = vpack.c.b16 %v2243, %v2239
        %v2876 = vpack.c.b16 %v2244, %v2240
        %v2877 = vpack.c.b16 %v2245, %v2241
        %v2878 = vpack.c.b16 %v2250, %v2246
        %v2879 = vpack.c.b16 %v2251, %v2247
        %v2880 = vpack.c.b16 %v2252, %v2248
        %v2881 = vpack.c.b16 %v2253, %v2249
        %v2882 = vpack.c.b16 %v2258, %v2254
        %v2883 = vpack.c.b16 %v2259, %v2255
        %v2884 = vpack.c.b16 %v2260, %v2256
        %v2885 = vpack.c.b16 %v2261, %v2257
        %v2886 = vpack.c.b16 %v2266, %v2262
        %v2887 = vpack.c.b16 %v2267, %v2263
        %v2888 = vpack.c.b16 %v2268, %v2264
        %v2889 = vpack.c.b16 %v2269, %v2265
        %v2890 = vpack.c.b16 %v2274, %v2270
        %v2891 = vpack.c.b16 %v2275, %v2271
        %v2892 = vpack.c.b16 %v2276, %v2272
        %v2893 = vpack.c.b16 %v2277, %v2273
        %v2894 = vpack.c.b16 %v2282, %v2278
        %v2895 = vpack.c.b16 %v2283, %v2279
        %v2896 = vpack.c.b16 %v2284, %v2280
        %v2897 = vpack.c.b16 %v2285, %v2281
        %v2898 = vpack.c.b16 %v2290, %v2286
        %v2899 = vpack.c.b16 %v2291, %v2287
        %v2900 = vpack.c.b16 %v2292, %v2288
        %v2901 = vpack.c.b16 %v2293, %v2289
        %v2902 = vpack.c.b16 %v2298, %v2294
        %v2903 = vpack.c.b16 %v2299, %v2295
        %v2904 = vpack.c.b16 %v2300, %v2296
        %v2905 = vpack.c.b16 %v2301, %v2297
        %v2906 = vpack.c.b16 %v2306, %v2302
        %v2907 = vpack.c.b16 %v2307, %v2303
        %v2908 = vpack.c.b16 %v2308, %v2304
        %v2909 = vpack.c.b16 %v2309, %v2305
        %v2910 = vpack.c.b16 %v2314, %v2310
        %v2911 = vpack.c.b16 %v2315, %v2311
        %v2912 = vpack.c.b16 %v2316, %v2312
        %v2913 = vpack.c.b16 %v2317, %v2313
        %v2914 = vpack.c.b16 %v2322, %v2318
        %v2915 = vpack.c.b16 %v2323, %v2319
        %v2916 = vpack.c.b16 %v2324, %v2320
        %v2917 = vpack.c.b16 %v2325, %v2321
        %v2918 = vpack.c.b16 %v2330, %v2326
        %v2919 = vpack.c.b16 %v2331, %v2327
        %v2920 = vpack.c.b16 %v2332, %v2328
        %v2921 = vpack.c.b16 %v2333, %v2329
        %v2922 = vpack.c.b16 %v2338, %v2334
        %v2923 = vpack.c.b16 %v2339, %v2335
        %v2924 = vpack.c.b16 %v2340, %v2336
        %v2925 = vpack.c.b16 %v2341, %v2337
        %v2926 = vpack.c.b16 %v2346, %v2342
        %v2927 = vpack.c.b16 %v2347, %v2343
        %v2928 = vpack.c.b16 %v2348, %v2344
        %v2929 = vpack.c.b16 %v2349, %v2345
        %v2930 = vpack.c.b16 %v2354, %v2350
        %v2931 = vpack.c.b16 %v2355, %v2351
        %v2932 = vpack.c.b16 %v2356, %v2352
        %v2933 = vpack.c.b16 %v2357, %v2353
        %v2934 = vpack.c.b16 %v2362, %v2358
        %v2935 = vpack.c.b16 %v2363, %v2359
        %v2936 = vpack.c.b16 %v2364, %v2360
        %v2937 = vpack.c.b16 %v2365, %v2361
        %v2938 = vpack.c.b16 %v2370, %v2366
        %v2939 = vpack.c.b16 %v2371, %v2367
        %v2940 = vpack.c.b16 %v2372, %v2368
        %v2941 = vpack.c.b16 %v2373, %v2369
        %v2942 = vpack.c.b16 %v2378, %v2374
        %v2943 = vpack.c.b16 %v2379, %v2375
        %v2944 = vpack.c.b16 %v2380, %v2376
        %v2945 = vpack.c.b16 %v2381, %v2377
        %v2946 = vpack.c.b16 %v2386, %v2382
        %v2947 = vpack.c.b16 %v2387, %v2383
        %v2948 = vpack.c.b16 %v2388, %v2384
        %v2949 = vpack.c.b16 %v2389, %v2385
        %v2950 = vpack.c.b16 %v2394, %v2390
        %v2951 = vpack.c.b16 %v2395, %v2391
        %v2952 = vpack.c.b16 %v2396, %v2392
        %v2953 = vpack.c.b16 %v2397, %v2393
        %v2954 = vpack.c.b16 %v2402, %v2398
        %v2955 = vpack.c.b16 %v2403, %v2399
        %v2956 = vpack.c.b16 %v2404, %v2400
        %v2957 = vpack.c.b16 %v2405, %v2401
        %v2958 = vpack.c.b16 %v2410, %v2406
        %v2959 = vpack.c.b16 %v2411, %v2407
        %v2960 = vpack.c.b16 %v2412, %v2408
        %v2961 = vpack.c.b16 %v2413, %v2409
        %v2962 = vpack.c.b16 %v2418, %v2414
        %v2963 = vpack.c.b16 %v2419, %v2415
        %v2964 = vpack.c.b16 %v2420, %v2416
        %v2965 = vpack.c.b16 %v2421, %v2417
        %v2966 = vpack.c.b16 %v2426, %v2422
        %v2967 = vpack.c.b16 %v2427, %v2423
        %v2968 = vpack.c.b16 %v2428, %v2424
        %v2969 = vpack.c.b16 %v2429, %v2425
        %v2970 = vpack.c.b16 %v2434, %v2430
        %v2971 = vpack.c.b16 %v2435, %v2431
        %v2972 = vpack.c.b16 %v2436, %v2432
        %v2973 = vpack.c.b16 %v2437, %v2433
        %v2974 = vpack.c.b16 %v2442, %v2438
        %v2975 = vpack.c.b16 %v2443, %v2439
        %v2976 = vpack.c.b16 %v2444, %v2440
        %v2977 = vpack.c.b16 %v2445, %v2441
        %v2978 = vpack.c.b16 %v2450, %v2446
        %v2979 = vpack.c.b16 %v2451, %v2447
        %v2980 = vpack.c.b16 %v2452, %v2448
        %v2981 = vpack.c.b16 %v2453, %v2449
        %v2982 = vpack.c.b16 %v2458, %v2454
        %v2983 = vpack.c.b16 %v2459, %v2455
        %v2984 = vpack.c.b16 %v2460, %v2456
        %v2985 = vpack.c.b16 %v2461, %v2457
        %v2986 = vpack.c.b16 %v2466, %v2462
        %v2987 = vpack.c.b16 %v2467, %v2463
        %v2988 = vpack.c.b16 %v2468, %v2464
        %v2989 = vpack.c.b16 %v2469, %v2465
        %v2990 = vpack.c.b16 %v2474, %v2470
        %v2991 = vpack.c.b16 %v2475, %v2471
        %v2992 = vpack.c.b16 %v2476, %v2472
        %v2993 = vpack.c.b16 %v2477, %v2473
        %v2994 = vpack.c.b16 %v2482, %v2478
        %v2995 = vpack.c.b16 %v2483, %v2479
        %v2996 = vpack.c.b16 %v2484, %v2480
        %v2997 = vpack.c.b16 %v2485, %v2481
        %3510 = vmatprep.subr.bf16.mxu0 %v2487
        %3511 = vmatpush1.bf16.msra.mxu0 %v2486
        %3512 = vmatprep.subr.bf16.mxu0 %v2491
        %3513 = vmatpush1.bf16.msra.mxu0 %v2490
        %3514 = vmatprep.subr.bf16.mxu0 %v2495
        %3515 = vmatpush1.bf16.msra.mxu0 %v2494
        %3516 = vmatprep.subr.bf16.mxu0 %v2499
        %3517 = vmatpush1.bf16.msra.mxu0 %v2498
        %3518 = vmatprep.subr.bf16.mxu0 %v2503
        %3519 = vmatpush1.bf16.msra.mxu0 %v2502
        %3520 = vmatprep.subr.bf16.mxu0 %v2507
        %3521 = vmatpush1.bf16.msra.mxu0 %v2506
        %3522 = vmatprep.subr.bf16.mxu0 %v2511
        %3523 = vmatpush1.bf16.msra.mxu0 %v2510
        %3524 = vmatprep.subr.bf16.mxu0 %v2515
        %3525 = vmatpush1.bf16.msra.mxu0 %v2514
        %3526 = vmatprep.subr.bf16.mxu0 %v2519
        %3527 = vmatpush1.bf16.msra.mxu0 %v2518
        %3528 = vmatprep.subr.bf16.mxu0 %v2523
        %3529 = vmatpush1.bf16.msra.mxu0 %v2522
        %3530 = vmatprep.subr.bf16.mxu0 %v2527
        %3531 = vmatpush1.bf16.msra.mxu0 %v2526
        %3532 = vmatprep.subr.bf16.mxu0 %v2531
        %3533 = vmatpush1.bf16.msra.mxu0 %v2530
        %3534 = vmatprep.subr.bf16.mxu0 %v2535
        %3535 = vmatpush1.bf16.msra.mxu0 %v2534
        %3536 = vmatprep.subr.bf16.mxu0 %v2539
        %3537 = vmatpush1.bf16.msra.mxu0 %v2538
        %3538 = vmatprep.subr.bf16.mxu0 %v2543
        %3539 = vmatpush1.bf16.msra.mxu0 %v2542
        %3540 = vmatprep.subr.bf16.mxu0 %v2547
        %3541 = vmatpush1.bf16.msra.mxu0 %v2546
        %3542 = vmatprep.mubr.bf16.mxu0 %v401
        %3543 = vmatmul.mubr.bf16.gmra.mrb[0].mxu0 %v400
        %v3544 = vpop.f32.mrb[0].mxu0
        %v3545 = vadd.f32 %v933, %v3544
        %v3546 = vpop.f32.mrb[0].mxu0
        %v3547 = vadd.f32 %v937, %v3546
        %v3548 = vpop.f32.mrb[0].mxu0
        %v3549 = vadd.f32 %v933, %v3548
        %v3550 = vpop.f32.mrb[0].mxu0
        %v3551 = vadd.f32 %v937, %v3550
        %3552 = vdwg.mxu0
        %3553 = vmatprep.subr.bf16.mxu0 %v2551
        %3554 = vmatpush1.bf16.msra.mxu0 %v2550
        %3555 = vmatprep.subr.bf16.mxu0 %v2555
        %3556 = vmatpush1.bf16.msra.mxu0 %v2554
        %3557 = vmatprep.subr.bf16.mxu0 %v2559
        %3558 = vmatpush1.bf16.msra.mxu0 %v2558
        %3559 = vmatprep.subr.bf16.mxu0 %v2563
        %3560 = vmatpush1.bf16.msra.mxu0 %v2562
        %3561 = vmatprep.subr.bf16.mxu0 %v2567
        %3562 = vmatpush1.bf16.msra.mxu0 %v2566
        %3563 = vmatprep.subr.bf16.mxu0 %v2571
        %3564 = vmatpush1.bf16.msra.mxu0 %v2570
        %3565 = vmatprep.subr.bf16.mxu0 %v2575
        %3566 = vmatpush1.bf16.msra.mxu0 %v2574
        %3567 = vmatprep.subr.bf16.mxu0 %v2579
        %3568 = vmatpush1.bf16.msra.mxu0 %v2578
        %3569 = vmatprep.subr.bf16.mxu0 %v2583
        %3570 = vmatpush1.bf16.msra.mxu0 %v2582
        %3571 = vmatprep.subr.bf16.mxu0 %v2587
        %3572 = vmatpush1.bf16.msra.mxu0 %v2586
        %3573 = vmatprep.subr.bf16.mxu0 %v2591
        %3574 = vmatpush1.bf16.msra.mxu0 %v2590
        %3575 = vmatprep.subr.bf16.mxu0 %v2595
        %3576 = vmatpush1.bf16.msra.mxu0 %v2594
        %3577 = vmatprep.subr.bf16.mxu0 %v2599
        %3578 = vmatpush1.bf16.msra.mxu0 %v2598
        %3579 = vmatprep.subr.bf16.mxu0 %v2603
        %3580 = vmatpush1.bf16.msra.mxu0 %v2602
        %3581 = vmatprep.subr.bf16.mxu0 %v2607
        %3582 = vmatpush1.bf16.msra.mxu0 %v2606
        %3583 = vmatprep.subr.bf16.mxu0 %v2611
        %3584 = vmatpush1.bf16.msra.mxu0 %v2610
        %3585 = vmatprep.mubr.bf16.mxu0 %v403
        %3586 = vmatmul.mubr.bf16.gmra.mrb[0].mxu0 %v402
        %v3587 = vpop.f32.mrb[0].mxu0
        %v3588 = vadd.f32 %v3545, %v3587
        %v3589 = vpop.f32.mrb[0].mxu0
        %v3590 = vadd.f32 %v3547, %v3589
        %v3591 = vpop.f32.mrb[0].mxu0
        %v3592 = vadd.f32 %v3549, %v3591
        %v3593 = vpop.f32.mrb[0].mxu0
        %v3594 = vadd.f32 %v3551, %v3593
        %3595 = vdwg.mxu0
        %3596 = vmatprep.subr.bf16.mxu0 %v2615
        %3597 = vmatpush1.bf16.msra.mxu0 %v2614
        %3598 = vmatprep.subr.bf16.mxu0 %v2619
        %3599 = vmatpush1.bf16.msra.mxu0 %v2618
        %3600 = vmatprep.subr.bf16.mxu0 %v2623
        %3601 = vmatpush1.bf16.msra.mxu0 %v2622
        %3602 = vmatprep.subr.bf16.mxu0 %v2627
        %3603 = vmatpush1.bf16.msra.mxu0 %v2626
        %3604 = vmatprep.subr.bf16.mxu0 %v2631
        %3605 = vmatpush1.bf16.msra.mxu0 %v2630
        %3606 = vmatprep.subr.bf16.mxu0 %v2635
        %3607 = vmatpush1.bf16.msra.mxu0 %v2634
        %3608 = vmatprep.subr.bf16.mxu0 %v2639
        %3609 = vmatpush1.bf16.msra.mxu0 %v2638
        %3610 = vmatprep.subr.bf16.mxu0 %v2643
        %3611 = vmatpush1.bf16.msra.mxu0 %v2642
        %3612 = vmatprep.subr.bf16.mxu0 %v2647
        %3613 = vmatpush1.bf16.msra.mxu0 %v2646
        %3614 = vmatprep.subr.bf16.mxu0 %v2651
        %3615 = vmatpush1.bf16.msra.mxu0 %v2650
        %3616 = vmatprep.subr.bf16.mxu0 %v2655
        %3617 = vmatpush1.bf16.msra.mxu0 %v2654
        %3618 = vmatprep.subr.bf16.mxu0 %v2659
        %3619 = vmatpush1.bf16.msra.mxu0 %v2658
        %3620 = vmatprep.subr.bf16.mxu0 %v2663
        %3621 = vmatpush1.bf16.msra.mxu0 %v2662
        %3622 = vmatprep.subr.bf16.mxu0 %v2667
        %3623 = vmatpush1.bf16.msra.mxu0 %v2666
        %3624 = vmatprep.subr.bf16.mxu0 %v2671
        %3625 = vmatpush1.bf16.msra.mxu0 %v2670
        %3626 = vmatprep.subr.bf16.mxu0 %v2675
        %3627 = vmatpush1.bf16.msra.mxu0 %v2674
        %3628 = vmatprep.mubr.bf16.mxu0 %v405
        %3629 = vmatmul.mubr.bf16.gmra.mrb[0].mxu0 %v404
        %v3630 = vpop.f32.mrb[0].mxu0
        %v3631 = vadd.f32 %v3588, %v3630
        %v3632 = vpop.f32.mrb[0].mxu0
        %v3633 = vadd.f32 %v3590, %v3632
        %v3634 = vpop.f32.mrb[0].mxu0
        %v3635 = vadd.f32 %v3592, %v3634
        %v3636 = vpop.f32.mrb[0].mxu0
        %v3637 = vadd.f32 %v3594, %v3636
        %3638 = vdwg.mxu0
        %3639 = vmatprep.subr.bf16.mxu0 %v2679
        %3640 = vmatpush1.bf16.msra.mxu0 %v2678
        %3641 = vmatprep.subr.bf16.mxu0 %v2683
        %3642 = vmatpush1.bf16.msra.mxu0 %v2682
        %3643 = vmatprep.subr.bf16.mxu0 %v2687
        %3644 = vmatpush1.bf16.msra.mxu0 %v2686
        %3645 = vmatprep.subr.bf16.mxu0 %v2691
        %3646 = vmatpush1.bf16.msra.mxu0 %v2690
        %3647 = vmatprep.subr.bf16.mxu0 %v2695
        %3648 = vmatpush1.bf16.msra.mxu0 %v2694
        %3649 = vmatprep.subr.bf16.mxu0 %v2699
        %3650 = vmatpush1.bf16.msra.mxu0 %v2698
        %3651 = vmatprep.subr.bf16.mxu0 %v2703
        %3652 = vmatpush1.bf16.msra.mxu0 %v2702
        %3653 = vmatprep.subr.bf16.mxu0 %v2707
        %3654 = vmatpush1.bf16.msra.mxu0 %v2706
        %3655 = vmatprep.subr.bf16.mxu0 %v2711
        %3656 = vmatpush1.bf16.msra.mxu0 %v2710
        %3657 = vmatprep.subr.bf16.mxu0 %v2715
        %3658 = vmatpush1.bf16.msra.mxu0 %v2714
        %3659 = vmatprep.subr.bf16.mxu0 %v2719
        %3660 = vmatpush1.bf16.msra.mxu0 %v2718
        %3661 = vmatprep.subr.bf16.mxu0 %v2723
        %3662 = vmatpush1.bf16.msra.mxu0 %v2722
        %3663 = vmatprep.subr.bf16.mxu0 %v2727
        %3664 = vmatpush1.bf16.msra.mxu0 %v2726
        %3665 = vmatprep.subr.bf16.mxu0 %v2731
        %3666 = vmatpush1.bf16.msra.mxu0 %v2730
        %3667 = vmatprep.subr.bf16.mxu0 %v2735
        %3668 = vmatpush1.bf16.msra.mxu0 %v2734
        %3669 = vmatprep.subr.bf16.mxu0 %v2739
        %3670 = vmatpush1.bf16.msra.mxu0 %v2738
        %3671 = vmatprep.mubr.bf16.mxu0 %v407
        %3672 = vmatmul.mubr.bf16.gmra.mrb[0].mxu0 %v406
        %v3673 = vpop.f32.mrb[0].mxu0
        %v3674 = vadd.f32 %v3631, %v3673
        %v3675 = vpop.f32.mrb[0].mxu0
        %v3676 = vadd.f32 %v3633, %v3675
        %v3677 = vpop.f32.mrb[0].mxu0
        %v3678 = vadd.f32 %v3635, %v3677
        %v3679 = vpop.f32.mrb[0].mxu0
        %v3680 = vadd.f32 %v3637, %v3679
        %3681 = vdwg.mxu0
        %3682 = vmatprep.subr.bf16.mxu0 %v2743
        %3683 = vmatpush1.bf16.msra.mxu0 %v2742
        %3684 = vmatprep.subr.bf16.mxu0 %v2747
        %3685 = vmatpush1.bf16.msra.mxu0 %v2746
        %3686 = vmatprep.subr.bf16.mxu0 %v2751
        %3687 = vmatpush1.bf16.msra.mxu0 %v2750
        %3688 = vmatprep.subr.bf16.mxu0 %v2755
        %3689 = vmatpush1.bf16.msra.mxu0 %v2754
        %3690 = vmatprep.subr.bf16.mxu0 %v2759
        %3691 = vmatpush1.bf16.msra.mxu0 %v2758
        %3692 = vmatprep.subr.bf16.mxu0 %v2763
        %3693 = vmatpush1.bf16.msra.mxu0 %v2762
        %3694 = vmatprep.subr.bf16.mxu0 %v2767
        %3695 = vmatpush1.bf16.msra.mxu0 %v2766
        %3696 = vmatprep.subr.bf16.mxu0 %v2771
        %3697 = vmatpush1.bf16.msra.mxu0 %v2770
        %3698 = vmatprep.subr.bf16.mxu0 %v2775
        %3699 = vmatpush1.bf16.msra.mxu0 %v2774
        %3700 = vmatprep.subr.bf16.mxu0 %v2779
        %3701 = vmatpush1.bf16.msra.mxu0 %v2778
        %3702 = vmatprep.subr.bf16.mxu0 %v2783
        %3703 = vmatpush1.bf16.msra.mxu0 %v2782
        %3704 = vmatprep.subr.bf16.mxu0 %v2787
        %3705 = vmatpush1.bf16.msra.mxu0 %v2786
        %3706 = vmatprep.subr.bf16.mxu0 %v2791
        %3707 = vmatpush1.bf16.msra.mxu0 %v2790
        %3708 = vmatprep.subr.bf16.mxu0 %v2795
        %3709 = vmatpush1.bf16.msra.mxu0 %v2794
        %3710 = vmatprep.subr.bf16.mxu0 %v2799
        %3711 = vmatpush1.bf16.msra.mxu0 %v2798
        %3712 = vmatprep.subr.bf16.mxu0 %v2803
        %3713 = vmatpush1.bf16.msra.mxu0 %v2802
        %3714 = vmatprep.mubr.bf16.mxu0 %v409
        %3715 = vmatmul.mubr.bf16.gmra.mrb[0].mxu0 %v408
        %v3716 = vpop.f32.mrb[0].mxu0
        %v3717 = vadd.f32 %v3674, %v3716
        %v3718 = vpop.f32.mrb[0].mxu0
        %v3719 = vadd.f32 %v3676, %v3718
        %v3720 = vpop.f32.mrb[0].mxu0
        %v3721 = vadd.f32 %v3678, %v3720
        %v3722 = vpop.f32.mrb[0].mxu0
        %v3723 = vadd.f32 %v3680, %v3722
        %3724 = vdwg.mxu0
        %3725 = vmatprep.subr.bf16.mxu0 %v2807
        %3726 = vmatpush1.bf16.msra.mxu0 %v2806
        %3727 = vmatprep.subr.bf16.mxu0 %v2811
        %3728 = vmatpush1.bf16.msra.mxu0 %v2810
        %3729 = vmatprep.subr.bf16.mxu0 %v2815
        %3730 = vmatpush1.bf16.msra.mxu0 %v2814
        %3731 = vmatprep.subr.bf16.mxu0 %v2819
        %3732 = vmatpush1.bf16.msra.mxu0 %v2818
        %3733 = vmatprep.subr.bf16.mxu0 %v2823
        %3734 = vmatpush1.bf16.msra.mxu0 %v2822
        %3735 = vmatprep.subr.bf16.mxu0 %v2827
        %3736 = vmatpush1.bf16.msra.mxu0 %v2826
        %3737 = vmatprep.subr.bf16.mxu0 %v2831
        %3738 = vmatpush1.bf16.msra.mxu0 %v2830
        %3739 = vmatprep.subr.bf16.mxu0 %v2835
        %3740 = vmatpush1.bf16.msra.mxu0 %v2834
        %3741 = vmatprep.subr.bf16.mxu0 %v2839
        %3742 = vmatpush1.bf16.msra.mxu0 %v2838
        %3743 = vmatprep.subr.bf16.mxu0 %v2843
        %3744 = vmatpush1.bf16.msra.mxu0 %v2842
        %3745 = vmatprep.subr.bf16.mxu0 %v2847
        %3746 = vmatpush1.bf16.msra.mxu0 %v2846
        %3747 = vmatprep.subr.bf16.mxu0 %v2851
        %3748 = vmatpush1.bf16.msra.mxu0 %v2850
        %3749 = vmatprep.subr.bf16.mxu0 %v2855
        %3750 = vmatpush1.bf16.msra.mxu0 %v2854
        %3751 = vmatprep.subr.bf16.mxu0 %v2859
        %3752 = vmatpush1.bf16.msra.mxu0 %v2858
        %3753 = vmatprep.subr.bf16.mxu0 %v2863
        %3754 = vmatpush1.bf16.msra.mxu0 %v2862
        %3755 = vmatprep.subr.bf16.mxu0 %v2867
        %3756 = vmatpush1.bf16.msra.mxu0 %v2866
        %3757 = vmatprep.mubr.bf16.mxu0 %v411
        %3758 = vmatmul.mubr.bf16.gmra.mrb[0].mxu0 %v410
        %v3759 = vpop.f32.mrb[0].mxu0
        %v3760 = vadd.f32 %v3717, %v3759
        %v3761 = vpop.f32.mrb[0].mxu0
        %v3762 = vadd.f32 %v3719, %v3761
        %v3763 = vpop.f32.mrb[0].mxu0
        %v3764 = vadd.f32 %v3721, %v3763
        %v3765 = vpop.f32.mrb[0].mxu0
        %v3766 = vadd.f32 %v3723, %v3765
        %3767 = vdwg.mxu0
        %3768 = vmatprep.subr.bf16.mxu0 %v2871
        %3769 = vmatpush1.bf16.msra.mxu0 %v2870
        %3770 = vmatprep.subr.bf16.mxu0 %v2875
        %3771 = vmatpush1.bf16.msra.mxu0 %v2874
        %3772 = vmatprep.subr.bf16.mxu0 %v2879
        %3773 = vmatpush1.bf16.msra.mxu0 %v2878
        %3774 = vmatprep.subr.bf16.mxu0 %v2883
        %3775 = vmatpush1.bf16.msra.mxu0 %v2882
        %3776 = vmatprep.subr.bf16.mxu0 %v2887
        %3777 = vmatpush1.bf16.msra.mxu0 %v2886
        %3778 = vmatprep.subr.bf16.mxu0 %v2891
        %3779 = vmatpush1.bf16.msra.mxu0 %v2890
        %3780 = vmatprep.subr.bf16.mxu0 %v2895
        %3781 = vmatpush1.bf16.msra.mxu0 %v2894
        %3782 = vmatprep.subr.bf16.mxu0 %v2899
        %3783 = vmatpush1.bf16.msra.mxu0 %v2898
        %3784 = vmatprep.subr.bf16.mxu0 %v2903
        %3785 = vmatpush1.bf16.msra.mxu0 %v2902
        %3786 = vmatprep.subr.bf16.mxu0 %v2907
        %3787 = vmatpush1.bf16.msra.mxu0 %v2906
        %3788 = vmatprep.subr.bf16.mxu0 %v2911
        %3789 = vmatpush1.bf16.msra.mxu0 %v2910
        %3790 = vmatprep.subr.bf16.mxu0 %v2915
        %3791 = vmatpush1.bf16.msra.mxu0 %v2914
        %3792 = vmatprep.subr.bf16.mxu0 %v2919
        %3793 = vmatpush1.bf16.msra.mxu0 %v2918
        %3794 = vmatprep.subr.bf16.mxu0 %v2923
        %3795 = vmatpush1.bf16.msra.mxu0 %v2922
        %3796 = vmatprep.subr.bf16.mxu0 %v2927
        %3797 = vmatpush1.bf16.msra.mxu0 %v2926
        %3798 = vmatprep.subr.bf16.mxu0 %v2931
        %3799 = vmatpush1.bf16.msra.mxu0 %v2930
        %3800 = vmatprep.mubr.bf16.mxu0 %v413
        %3801 = vmatmul.mubr.bf16.gmra.mrb[0].mxu0 %v412
        %v3802 = vpop.f32.mrb[0].mxu0
        %v3803 = vadd.f32 %v3760, %v3802
        %v3804 = vpop.f32.mrb[0].mxu0
        %v3805 = vadd.f32 %v3762, %v3804
        %v3806 = vpop.f32.mrb[0].mxu0
        %v3807 = vadd.f32 %v3764, %v3806
        %v3808 = vpop.f32.mrb[0].mxu0
        %v3809 = vadd.f32 %v3766, %v3808
        %3810 = vdwg.mxu0
        %3811 = vmatprep.subr.bf16.mxu0 %v2935
        %3812 = vmatpush1.bf16.msra.mxu0 %v2934
        %3813 = vmatprep.subr.bf16.mxu0 %v2939
        %3814 = vmatpush1.bf16.msra.mxu0 %v2938
        %3815 = vmatprep.subr.bf16.mxu0 %v2943
        %3816 = vmatpush1.bf16.msra.mxu0 %v2942
        %3817 = vmatprep.subr.bf16.mxu0 %v2947
        %3818 = vmatpush1.bf16.msra.mxu0 %v2946
        %3819 = vmatprep.subr.bf16.mxu0 %v2951
        %3820 = vmatpush1.bf16.msra.mxu0 %v2950
        %3821 = vmatprep.subr.bf16.mxu0 %v2955
        %3822 = vmatpush1.bf16.msra.mxu0 %v2954
        %3823 = vmatprep.subr.bf16.mxu0 %v2959
        %3824 = vmatpush1.bf16.msra.mxu0 %v2958
        %3825 = vmatprep.subr.bf16.mxu0 %v2963
        %3826 = vmatpush1.bf16.msra.mxu0 %v2962
        %3827 = vmatprep.subr.bf16.mxu0 %v2967
        %3828 = vmatpush1.bf16.msra.mxu0 %v2966
        %3829 = vmatprep.subr.bf16.mxu0 %v2971
        %3830 = vmatpush1.bf16.msra.mxu0 %v2970
        %3831 = vmatprep.subr.bf16.mxu0 %v2975
        %3832 = vmatpush1.bf16.msra.mxu0 %v2974
        %3833 = vmatprep.subr.bf16.mxu0 %v2979
        %3834 = vmatpush1.bf16.msra.mxu0 %v2978
        %3835 = vmatprep.subr.bf16.mxu0 %v2983
        %3836 = vmatpush1.bf16.msra.mxu0 %v2982
        %3837 = vmatprep.subr.bf16.mxu0 %v2987
        %3838 = vmatpush1.bf16.msra.mxu0 %v2986
        %3839 = vmatprep.subr.bf16.mxu0 %v2991
        %3840 = vmatpush1.bf16.msra.mxu0 %v2990
        %3841 = vmatprep.subr.bf16.mxu0 %v2995
        %3842 = vmatpush1.bf16.msra.mxu0 %v2994
        %3843 = vmatprep.mubr.bf16.mxu0 %v415
        %3844 = vmatmul.mubr.bf16.gmra.mrb[0].mxu0 %v414
        %v3845 = vpop.f32.mrb[0].mxu0
        %v3846 = vadd.f32 %v3803, %v3845
        %v3847 = vpop.f32.mrb[0].mxu0
        %v3848 = vadd.f32 %v3805, %v3847
        %v3849 = vpop.f32.mrb[0].mxu0
        %v3850 = vadd.f32 %v3807, %v3849
        %v3851 = vpop.f32.mrb[0].mxu0
        %v3852 = vadd.f32 %v3809, %v3851
        %3853 = vdwg.mxu0
        %3854 = vmatprep.subr.bf16.mxu0 %v2489
        %3855 = vmatpush1.bf16.msra.mxu0 %v2488
        %3856 = vmatprep.subr.bf16.mxu0 %v2493
        %3857 = vmatpush1.bf16.msra.mxu0 %v2492
        %3858 = vmatprep.subr.bf16.mxu0 %v2497
        %3859 = vmatpush1.bf16.msra.mxu0 %v2496
        %3860 = vmatprep.subr.bf16.mxu0 %v2501
        %3861 = vmatpush1.bf16.msra.mxu0 %v2500
        %3862 = vmatprep.subr.bf16.mxu0 %v2505
        %3863 = vmatpush1.bf16.msra.mxu0 %v2504
        %3864 = vmatprep.subr.bf16.mxu0 %v2509
        %3865 = vmatpush1.bf16.msra.mxu0 %v2508
        %3866 = vmatprep.subr.bf16.mxu0 %v2513
        %3867 = vmatpush1.bf16.msra.mxu0 %v2512
        %3868 = vmatprep.subr.bf16.mxu0 %v2517
        %3869 = vmatpush1.bf16.msra.mxu0 %v2516
        %3870 = vmatprep.subr.bf16.mxu0 %v2521
        %3871 = vmatpush1.bf16.msra.mxu0 %v2520
        %3872 = vmatprep.subr.bf16.mxu0 %v2525
        %3873 = vmatpush1.bf16.msra.mxu0 %v2524
        %3874 = vmatprep.subr.bf16.mxu0 %v2529
        %3875 = vmatpush1.bf16.msra.mxu0 %v2528
        %3876 = vmatprep.subr.bf16.mxu0 %v2533
        %3877 = vmatpush1.bf16.msra.mxu0 %v2532
        %3878 = vmatprep.subr.bf16.mxu0 %v2537
        %3879 = vmatpush1.bf16.msra.mxu0 %v2536
        %3880 = vmatprep.subr.bf16.mxu0 %v2541
        %3881 = vmatpush1.bf16.msra.mxu0 %v2540
        %3882 = vmatprep.subr.bf16.mxu0 %v2545
        %3883 = vmatpush1.bf16.msra.mxu0 %v2544
        %3884 = vmatprep.subr.bf16.mxu0 %v2549
        %3885 = vmatpush1.bf16.msra.mxu0 %v2548
        %3886 = vmatprep.mubr.bf16.mxu0 %v401
        %3887 = vmatmul.mubr.bf16.gmra.mrb[0].mxu0 %v400
        %v3888 = vpop.f32.mrb[0].mxu0
        %v3889 = vadd.f32 %v941, %v3888
        %v3890 = vpop.f32.mrb[0].mxu0
        %v3891 = vadd.f32 %v945, %v3890
        %v3892 = vpop.f32.mrb[0].mxu0
        %v3893 = vadd.f32 %v941, %v3892
        %v3894 = vpop.f32.mrb[0].mxu0
        %v3895 = vadd.f32 %v945, %v3894
        %3896 = vdwg.mxu0
        %3897 = vmatprep.subr.bf16.mxu0 %v2553
        %3898 = vmatpush1.bf16.msra.mxu0 %v2552
        %3899 = vmatprep.subr.bf16.mxu0 %v2557
        %3900 = vmatpush1.bf16.msra.mxu0 %v2556
        %3901 = vmatprep.subr.bf16.mxu0 %v2561
        %3902 = vmatpush1.bf16.msra.mxu0 %v2560
        %3903 = vmatprep.subr.bf16.mxu0 %v2565
        %3904 = vmatpush1.bf16.msra.mxu0 %v2564
        %3905 = vmatprep.subr.bf16.mxu0 %v2569
        %3906 = vmatpush1.bf16.msra.mxu0 %v2568
        %3907 = vmatprep.subr.bf16.mxu0 %v2573
        %3908 = vmatpush1.bf16.msra.mxu0 %v2572
        %3909 = vmatprep.subr.bf16.mxu0 %v2577
        %3910 = vmatpush1.bf16.msra.mxu0 %v2576
        %3911 = vmatprep.subr.bf16.mxu0 %v2581
        %3912 = vmatpush1.bf16.msra.mxu0 %v2580
        %3913 = vmatprep.subr.bf16.mxu0 %v2585
        %3914 = vmatpush1.bf16.msra.mxu0 %v2584
        %3915 = vmatprep.subr.bf16.mxu0 %v2589
        %3916 = vmatpush1.bf16.msra.mxu0 %v2588
        %3917 = vmatprep.subr.bf16.mxu0 %v2593
        %3918 = vmatpush1.bf16.msra.mxu0 %v2592
        %3919 = vmatprep.subr.bf16.mxu0 %v2597
        %3920 = vmatpush1.bf16.msra.mxu0 %v2596
        %3921 = vmatprep.subr.bf16.mxu0 %v2601
        %3922 = vmatpush1.bf16.msra.mxu0 %v2600
        %3923 = vmatprep.subr.bf16.mxu0 %v2605
        %3924 = vmatpush1.bf16.msra.mxu0 %v2604
        %3925 = vmatprep.subr.bf16.mxu0 %v2609
        %3926 = vmatpush1.bf16.msra.mxu0 %v2608
        %3927 = vmatprep.subr.bf16.mxu0 %v2613
        %3928 = vmatpush1.bf16.msra.mxu0 %v2612
        %3929 = vmatprep.mubr.bf16.mxu0 %v403
        %3930 = vmatmul.mubr.bf16.gmra.mrb[0].mxu0 %v402
        %v3931 = vpop.f32.mrb[0].mxu0
        %v3932 = vadd.f32 %v3889, %v3931
        %v3933 = vpop.f32.mrb[0].mxu0
        %v3934 = vadd.f32 %v3891, %v3933
        %v3935 = vpop.f32.mrb[0].mxu0
        %v3936 = vadd.f32 %v3893, %v3935
        %v3937 = vpop.f32.mrb[0].mxu0
        %v3938 = vadd.f32 %v3895, %v3937
        %3939 = vdwg.mxu0
        %3940 = vmatprep.subr.bf16.mxu0 %v2617
        %3941 = vmatpush1.bf16.msra.mxu0 %v2616
        %3942 = vmatprep.subr.bf16.mxu0 %v2621
        %3943 = vmatpush1.bf16.msra.mxu0 %v2620
        %3944 = vmatprep.subr.bf16.mxu0 %v2625
        %3945 = vmatpush1.bf16.msra.mxu0 %v2624
        %3946 = vmatprep.subr.bf16.mxu0 %v2629
        %3947 = vmatpush1.bf16.msra.mxu0 %v2628
        %3948 = vmatprep.subr.bf16.mxu0 %v2633
        %3949 = vmatpush1.bf16.msra.mxu0 %v2632
        %3950 = vmatprep.subr.bf16.mxu0 %v2637
        %3951 = vmatpush1.bf16.msra.mxu0 %v2636
        %3952 = vmatprep.subr.bf16.mxu0 %v2641
        %3953 = vmatpush1.bf16.msra.mxu0 %v2640
        %3954 = vmatprep.subr.bf16.mxu0 %v2645
        %3955 = vmatpush1.bf16.msra.mxu0 %v2644
        %3956 = vmatprep.subr.bf16.mxu0 %v2649
        %3957 = vmatpush1.bf16.msra.mxu0 %v2648
        %3958 = vmatprep.subr.bf16.mxu0 %v2653
        %3959 = vmatpush1.bf16.msra.mxu0 %v2652
        %3960 = vmatprep.subr.bf16.mxu0 %v2657
        %3961 = vmatpush1.bf16.msra.mxu0 %v2656
        %3962 = vmatprep.subr.bf16.mxu0 %v2661
        %3963 = vmatpush1.bf16.msra.mxu0 %v2660
        %3964 = vmatprep.subr.bf16.mxu0 %v2665
        %3965 = vmatpush1.bf16.msra.mxu0 %v2664
        %3966 = vmatprep.subr.bf16.mxu0 %v2669
        %3967 = vmatpush1.bf16.msra.mxu0 %v2668
        %3968 = vmatprep.subr.bf16.mxu0 %v2673
        %3969 = vmatpush1.bf16.msra.mxu0 %v2672
        %3970 = vmatprep.subr.bf16.mxu0 %v2677
        %3971 = vmatpush1.bf16.msra.mxu0 %v2676
        %3972 = vmatprep.mubr.bf16.mxu0 %v405
        %3973 = vmatmul.mubr.bf16.gmra.mrb[0].mxu0 %v404
        %v3974 = vpop.f32.mrb[0].mxu0
        %v3975 = vadd.f32 %v3932, %v3974
        %v3976 = vpop.f32.mrb[0].mxu0
        %v3977 = vadd.f32 %v3934, %v3976
        %v3978 = vpop.f32.mrb[0].mxu0
        %v3979 = vadd.f32 %v3936, %v3978
        %v3980 = vpop.f32.mrb[0].mxu0
        %v3981 = vadd.f32 %v3938, %v3980
        %3982 = vdwg.mxu0
        %3983 = vmatprep.subr.bf16.mxu0 %v2681
        %3984 = vmatpush1.bf16.msra.mxu0 %v2680
        %3985 = vmatprep.subr.bf16.mxu0 %v2685
        %3986 = vmatpush1.bf16.msra.mxu0 %v2684
        %3987 = vmatprep.subr.bf16.mxu0 %v2689
        %3988 = vmatpush1.bf16.msra.mxu0 %v2688
        %3989 = vmatprep.subr.bf16.mxu0 %v2693
        %3990 = vmatpush1.bf16.msra.mxu0 %v2692
        %3991 = vmatprep.subr.bf16.mxu0 %v2697
        %3992 = vmatpush1.bf16.msra.mxu0 %v2696
        %3993 = vmatprep.subr.bf16.mxu0 %v2701
        %3994 = vmatpush1.bf16.msra.mxu0 %v2700
        %3995 = vmatprep.subr.bf16.mxu0 %v2705
        %3996 = vmatpush1.bf16.msra.mxu0 %v2704
        %3997 = vmatprep.subr.bf16.mxu0 %v2709
        %3998 = vmatpush1.bf16.msra.mxu0 %v2708
        %3999 = vmatprep.subr.bf16.mxu0 %v2713
        %4000 = vmatpush1.bf16.msra.mxu0 %v2712
        %4001 = vmatprep.subr.bf16.mxu0 %v2717
        %4002 = vmatpush1.bf16.msra.mxu0 %v2716
        %4003 = vmatprep.subr.bf16.mxu0 %v2721
        %4004 = vmatpush1.bf16.msra.mxu0 %v2720
        %4005 = vmatprep.subr.bf16.mxu0 %v2725
        %4006 = vmatpush1.bf16.msra.mxu0 %v2724
        %4007 = vmatprep.subr.bf16.mxu0 %v2729
        %4008 = vmatpush1.bf16.msra.mxu0 %v2728
        %4009 = vmatprep.subr.bf16.mxu0 %v2733
        %4010 = vmatpush1.bf16.msra.mxu0 %v2732
        %4011 = vmatprep.subr.bf16.mxu0 %v2737
        %4012 = vmatpush1.bf16.msra.mxu0 %v2736
        %4013 = vmatprep.subr.bf16.mxu0 %v2741
        %4014 = vmatpush1.bf16.msra.mxu0 %v2740
        %4015 = vmatprep.mubr.bf16.mxu0 %v407
        %4016 = vmatmul.mubr.bf16.gmra.mrb[0].mxu0 %v406
        %v4017 = vpop.f32.mrb[0].mxu0
        %v4018 = vadd.f32 %v3975, %v4017
        %v4019 = vpop.f32.mrb[0].mxu0
        %v4020 = vadd.f32 %v3977, %v4019
        %v4021 = vpop.f32.mrb[0].mxu0
        %v4022 = vadd.f32 %v3979, %v4021
        %v4023 = vpop.f32.mrb[0].mxu0
        %v4024 = vadd.f32 %v3981, %v4023
        %4025 = vdwg.mxu0
        %4026 = vmatprep.subr.bf16.mxu0 %v2745
        %4027 = vmatpush1.bf16.msra.mxu0 %v2744
        %4028 = vmatprep.subr.bf16.mxu0 %v2749
        %4029 = vmatpush1.bf16.msra.mxu0 %v2748
        %4030 = vmatprep.subr.bf16.mxu0 %v2753
        %4031 = vmatpush1.bf16.msra.mxu0 %v2752
        %4032 = vmatprep.subr.bf16.mxu0 %v2757
        %4033 = vmatpush1.bf16.msra.mxu0 %v2756
        %4034 = vmatprep.subr.bf16.mxu0 %v2761
        %4035 = vmatpush1.bf16.msra.mxu0 %v2760
        %4036 = vmatprep.subr.bf16.mxu0 %v2765
        %4037 = vmatpush1.bf16.msra.mxu0 %v2764
        %4038 = vmatprep.subr.bf16.mxu0 %v2769
        %4039 = vmatpush1.bf16.msra.mxu0 %v2768
        %4040 = vmatprep.subr.bf16.mxu0 %v2773
        %4041 = vmatpush1.bf16.msra.mxu0 %v2772
        %4042 = vmatprep.subr.bf16.mxu0 %v2777
        %4043 = vmatpush1.bf16.msra.mxu0 %v2776
        %4044 = vmatprep.subr.bf16.mxu0 %v2781
        %4045 = vmatpush1.bf16.msra.mxu0 %v2780
        %4046 = vmatprep.subr.bf16.mxu0 %v2785
        %4047 = vmatpush1.bf16.msra.mxu0 %v2784
        %4048 = vmatprep.subr.bf16.mxu0 %v2789
        %4049 = vmatpush1.bf16.msra.mxu0 %v2788
        %4050 = vmatprep.subr.bf16.mxu0 %v2793
        %4051 = vmatpush1.bf16.msra.mxu0 %v2792
        %4052 = vmatprep.subr.bf16.mxu0 %v2797
        %4053 = vmatpush1.bf16.msra.mxu0 %v2796
        %4054 = vmatprep.subr.bf16.mxu0 %v2801
        %4055 = vmatpush1.bf16.msra.mxu0 %v2800
        %4056 = vmatprep.subr.bf16.mxu0 %v2805
        %4057 = vmatpush1.bf16.msra.mxu0 %v2804
        %4058 = vmatprep.mubr.bf16.mxu0 %v409
        %4059 = vmatmul.mubr.bf16.gmra.mrb[0].mxu0 %v408
        %v4060 = vpop.f32.mrb[0].mxu0
        %v4061 = vadd.f32 %v4018, %v4060
        %v4062 = vpop.f32.mrb[0].mxu0
        %v4063 = vadd.f32 %v4020, %v4062
        %v4064 = vpop.f32.mrb[0].mxu0
        %v4065 = vadd.f32 %v4022, %v4064
        %v4066 = vpop.f32.mrb[0].mxu0
        %v4067 = vadd.f32 %v4024, %v4066
        %4068 = vdwg.mxu0
        %4069 = vmatprep.subr.bf16.mxu0 %v2809
        %4070 = vmatpush1.bf16.msra.mxu0 %v2808
        %4071 = vmatprep.subr.bf16.mxu0 %v2813
        %4072 = vmatpush1.bf16.msra.mxu0 %v2812
        %4073 = vmatprep.subr.bf16.mxu0 %v2817
        %4074 = vmatpush1.bf16.msra.mxu0 %v2816
        %4075 = vmatprep.subr.bf16.mxu0 %v2821
        %4076 = vmatpush1.bf16.msra.mxu0 %v2820
        %4077 = vmatprep.subr.bf16.mxu0 %v2825
        %4078 = vmatpush1.bf16.msra.mxu0 %v2824
        %4079 = vmatprep.subr.bf16.mxu0 %v2829
        %4080 = vmatpush1.bf16.msra.mxu0 %v2828
        %4081 = vmatprep.subr.bf16.mxu0 %v2833
        %4082 = vmatpush1.bf16.msra.mxu0 %v2832
        %4083 = vmatprep.subr.bf16.mxu0 %v2837
        %4084 = vmatpush1.bf16.msra.mxu0 %v2836
        %4085 = vmatprep.subr.bf16.mxu0 %v2841
        %4086 = vmatpush1.bf16.msra.mxu0 %v2840
        %4087 = vmatprep.subr.bf16.mxu0 %v2845
        %4088 = vmatpush1.bf16.msra.mxu0 %v2844
        %4089 = vmatprep.subr.bf16.mxu0 %v2849
        %4090 = vmatpush1.bf16.msra.mxu0 %v2848
        %4091 = vmatprep.subr.bf16.mxu0 %v2853
        %4092 = vmatpush1.bf16.msra.mxu0 %v2852
        %4093 = vmatprep.subr.bf16.mxu0 %v2857
        %4094 = vmatpush1.bf16.msra.mxu0 %v2856
        %4095 = vmatprep.subr.bf16.mxu0 %v2861
        %4096 = vmatpush1.bf16.msra.mxu0 %v2860
        %4097 = vmatprep.subr.bf16.mxu0 %v2865
        %4098 = vmatpush1.bf16.msra.mxu0 %v2864
        %4099 = vmatprep.subr.bf16.mxu0 %v2869
        %4100 = vmatpush1.bf16.msra.mxu0 %v2868
        %4101 = vmatprep.mubr.bf16.mxu0 %v411
        %4102 = vmatmul.mubr.bf16.gmra.mrb[0].mxu0 %v410
        %v4103 = vpop.f32.mrb[0].mxu0
        %v4104 = vadd.f32 %v4061, %v4103
        %v4105 = vpop.f32.mrb[0].mxu0
        %v4106 = vadd.f32 %v4063, %v4105
        %v4107 = vpop.f32.mrb[0].mxu0
        %v4108 = vadd.f32 %v4065, %v4107
        %v4109 = vpop.f32.mrb[0].mxu0
        %v4110 = vadd.f32 %v4067, %v4109
        %4111 = vdwg.mxu0
        %4112 = vmatprep.subr.bf16.mxu0 %v2873
        %4113 = vmatpush1.bf16.msra.mxu0 %v2872
        %4114 = vmatprep.subr.bf16.mxu0 %v2877
        %4115 = vmatpush1.bf16.msra.mxu0 %v2876
        %4116 = vmatprep.subr.bf16.mxu0 %v2881
        %4117 = vmatpush1.bf16.msra.mxu0 %v2880
        %4118 = vmatprep.subr.bf16.mxu0 %v2885
        %4119 = vmatpush1.bf16.msra.mxu0 %v2884
        %4120 = vmatprep.subr.bf16.mxu0 %v2889
        %4121 = vmatpush1.bf16.msra.mxu0 %v2888
        %4122 = vmatprep.subr.bf16.mxu0 %v2893
        %4123 = vmatpush1.bf16.msra.mxu0 %v2892
        %4124 = vmatprep.subr.bf16.mxu0 %v2897
        %4125 = vmatpush1.bf16.msra.mxu0 %v2896
        %4126 = vmatprep.subr.bf16.mxu0 %v2901
        %4127 = vmatpush1.bf16.msra.mxu0 %v2900
        %4128 = vmatprep.subr.bf16.mxu0 %v2905
        %4129 = vmatpush1.bf16.msra.mxu0 %v2904
        %4130 = vmatprep.subr.bf16.mxu0 %v2909
        %4131 = vmatpush1.bf16.msra.mxu0 %v2908
        %4132 = vmatprep.subr.bf16.mxu0 %v2913
        %4133 = vmatpush1.bf16.msra.mxu0 %v2912
        %4134 = vmatprep.subr.bf16.mxu0 %v2917
        %4135 = vmatpush1.bf16.msra.mxu0 %v2916
        %4136 = vmatprep.subr.bf16.mxu0 %v2921
        %4137 = vmatpush1.bf16.msra.mxu0 %v2920
        %4138 = vmatprep.subr.bf16.mxu0 %v2925
        %4139 = vmatpush1.bf16.msra.mxu0 %v2924
        %4140 = vmatprep.subr.bf16.mxu0 %v2929
        %4141 = vmatpush1.bf16.msra.mxu0 %v2928
        %4142 = vmatprep.subr.bf16.mxu0 %v2933
        %4143 = vmatpush1.bf16.msra.mxu0 %v2932
        %4144 = vmatprep.mubr.bf16.mxu0 %v413
        %4145 = vmatmul.mubr.bf16.gmra.mrb[0].mxu0 %v412
        %v4146 = vpop.f32.mrb[0].mxu0
        %v4147 = vadd.f32 %v4104, %v4146
        %v4148 = vpop.f32.mrb[0].mxu0
        %v4149 = vadd.f32 %v4106, %v4148
        %v4150 = vpop.f32.mrb[0].mxu0
        %v4151 = vadd.f32 %v4108, %v4150
        %v4152 = vpop.f32.mrb[0].mxu0
        %v4153 = vadd.f32 %v4110, %v4152
        %4154 = vdwg.mxu0
        %4155 = vmatprep.subr.bf16.mxu0 %v2937
        %4156 = vmatpush1.bf16.msra.mxu0 %v2936
        %4157 = vmatprep.subr.bf16.mxu0 %v2941
        %4158 = vmatpush1.bf16.msra.mxu0 %v2940
        %4159 = vmatprep.subr.bf16.mxu0 %v2945
        %4160 = vmatpush1.bf16.msra.mxu0 %v2944
        %4161 = vmatprep.subr.bf16.mxu0 %v2949
        %4162 = vmatpush1.bf16.msra.mxu0 %v2948
        %4163 = vmatprep.subr.bf16.mxu0 %v2953
        %4164 = vmatpush1.bf16.msra.mxu0 %v2952
        %4165 = vmatprep.subr.bf16.mxu0 %v2957
        %4166 = vmatpush1.bf16.msra.mxu0 %v2956
        %4167 = vmatprep.subr.bf16.mxu0 %v2961
        %4168 = vmatpush1.bf16.msra.mxu0 %v2960
        %4169 = vmatprep.subr.bf16.mxu0 %v2965
        %4170 = vmatpush1.bf16.msra.mxu0 %v2964
        %4171 = vmatprep.subr.bf16.mxu0 %v2969
        %4172 = vmatpush1.bf16.msra.mxu0 %v2968
        %4173 = vmatprep.subr.bf16.mxu0 %v2973
        %4174 = vmatpush1.bf16.msra.mxu0 %v2972
        %4175 = vmatprep.subr.bf16.mxu0 %v2977
        %4176 = vmatpush1.bf16.msra.mxu0 %v2976
        %4177 = vmatprep.subr.bf16.mxu0 %v2981
        %4178 = vmatpush1.bf16.msra.mxu0 %v2980
        %4179 = vmatprep.subr.bf16.mxu0 %v2985
        %4180 = vmatpush1.bf16.msra.mxu0 %v2984
        %4181 = vmatprep.subr.bf16.mxu0 %v2989
        %4182 = vmatpush1.bf16.msra.mxu0 %v2988
        %4183 = vmatprep.subr.bf16.mxu0 %v2993
        %4184 = vmatpush1.bf16.msra.mxu0 %v2992
        %4185 = vmatprep.subr.bf16.mxu0 %v2997
        %4186 = vmatpush1.bf16.msra.mxu0 %v2996
        %4187 = vmatprep.mubr.bf16.mxu0 %v415
        %4188 = vmatmul.mubr.bf16.gmra.mrb[0].mxu0 %v414
        %v4189 = vpop.f32.mrb[0].mxu0
        %v4190 = vadd.f32 %v4147, %v4189
        %v4191 = vpop.f32.mrb[0].mxu0
        %v4192 = vadd.f32 %v4149, %v4191
        %v4193 = vpop.f32.mrb[0].mxu0
        %v4194 = vadd.f32 %v4151, %v4193
        %v4195 = vpop.f32.mrb[0].mxu0
        %v4196 = vadd.f32 %v4153, %v4195
        %4197 = vdwg.mxu0
        %4198 = vst [vmem:[%s335] sm:$0xff] %v3846
        %4199 = vst [vmem:[%s335 + $0x8] sm:$0xff] %v3848
        %4200 = vst [vmem:[%s335 + $0x10] sm:$0xff] %v4190
        %4201 = vst [vmem:[%s335 + $0x18] sm:$0xff] %v4192
        %4202 = vst [vmem:[%s335 + $0x20] sm:$0xff] %v3850
        %4203 = vst [vmem:[%s335 + $0x28] sm:$0xff] %v3852
        %4204 = vst [vmem:[%s335 + $0x30] sm:$0xff] %v4194
        %4205 = vst [vmem:[%s335 + $0x38] sm:$0xff] %v4196
        %p4206 = scmp.eq.s32.totalorder %s33, 0
        // Predicated region
        $region45: #{tpu_custom_call.1} parent=31 // pred_check
          %p4207 = pneg %p4206
        $region46: #{tpu_custom_call.1} parent=31 // pred_check_branch
          %4209 = sbr.rel (%p4207) target = $region48
        $region47: #{tpu_custom_call.1} parent=31 // pred_region
          %v4210 = vmul.f32 %v368, %v368
          %v4211 = vmul.f32 %v369, %v369
          %v4212 = vmul.f32 %v370, %v370
          %v4213 = vmul.f32 %v371, %v371
          %v4214 = vmul.f32 %v372, %v372
          %v4215 = vmul.f32 %v373, %v373
          %v4216 = vmul.f32 %v374, %v374
          %v4217 = vmul.f32 %v375, %v375
          %v4218 = vmul.f32 %v376, %v376
          %v4219 = vmul.f32 %v377, %v377
          %v4220 = vmul.f32 %v378, %v378
          %v4221 = vmul.f32 %v379, %v379
          %v4222 = vmul.f32 %v380, %v380
          %v4223 = vmul.f32 %v381, %v381
          %v4224 = vmul.f32 %v382, %v382
          %v4225 = vmul.f32 %v383, %v383
          %v4226 = vmul.f32 %v384, %v384
          %v4227 = vmul.f32 %v385, %v385
          %v4228 = vmul.f32 %v386, %v386
          %v4229 = vmul.f32 %v387, %v387
          %v4230 = vmul.f32 %v388, %v388
          %v4231 = vmul.f32 %v389, %v389
          %v4232 = vmul.f32 %v390, %v390
          %v4233 = vmul.f32 %v391, %v391
          %v4234 = vmul.f32 %v392, %v392
          %v4235 = vmul.f32 %v393, %v393
          %v4236 = vmul.f32 %v394, %v394
          %v4237 = vmul.f32 %v395, %v395
          %v4238 = vmul.f32 %v396, %v396
          %v4239 = vmul.f32 %v397, %v397
          %v4240 = vmul.f32 %v398, %v398
          %v4241 = vmul.f32 %v399, %v399
          %v4242 = vadd.f32 %v4210, %v4211
          %v4243 = vadd.f32 %v4242, %v4212
          %v4244 = vadd.f32 %v4243, %v4213
          %v4245 = vadd.f32 %v4244, %v4214
          %v4246 = vadd.f32 %v4245, %v4215
          %v4247 = vadd.f32 %v4246, %v4216
          %v4248 = vadd.f32 %v4247, %v4217
          %v4249 = vadd.f32 %v4248, %v4218
          %v4250 = vadd.f32 %v4249, %v4219
          %v4251 = vadd.f32 %v4250, %v4220
          %v4252 = vadd.f32 %v4251, %v4221
          %v4253 = vadd.f32 %v4252, %v4222
          %v4254 = vadd.f32 %v4253, %v4223
          %v4255 = vadd.f32 %v4254, %v4224
          %v4256 = vadd.f32 %v4255, %v4225
          %4257 = vadd.xlane.f32.xlu0 %v4256
          %v4258 = vpop.xlane.xlu0 %4257
          %v4259 = vadd.f32 %v4226, %v4227
          %v4260 = vadd.f32 %v4259, %v4228
          %v4261 = vadd.f32 %v4260, %v4229
          %v4262 = vadd.f32 %v4261, %v4230
          %v4263 = vadd.f32 %v4262, %v4231
          %v4264 = vadd.f32 %v4263, %v4232
          %v4265 = vadd.f32 %v4264, %v4233
          %v4266 = vadd.f32 %v4265, %v4234
          %v4267 = vadd.f32 %v4266, %v4235
          %v4268 = vadd.f32 %v4267, %v4236
          %v4269 = vadd.f32 %v4268, %v4237
          %v4270 = vadd.f32 %v4269, %v4238
          %v4271 = vadd.f32 %v4270, %v4239
          %v4272 = vadd.f32 %v4271, %v4240
          %v4273 = vadd.f32 %v4272, %v4241
          %4274 = vadd.xlane.f32.xlu0 %v4273
          %v4275 = vpop.xlane.xlu0 %4274
          %v4276 = vrsqrt.pop %v4258
          %v4277 = vmul.f32 %v4258, %v4276
          %vm4278 = vcmp.eq.f32.partialorder %v4258, inf
          %v4279 = vsel %vm4278, %v4258, %v4277
          %vm4280 = vcmp.eq.f32.partialorder %v4258, 0.0
          %v4281 = vand.u32 %v4258, 2147483648
          %v4282 = vsel %vm4280, %v4281, %v4279
          %v4283 = vrsqrt.pop %v4275
          %v4284 = vmul.f32 %v4275, %v4283
          %vm4285 = vcmp.eq.f32.partialorder %v4275, inf
          %v4286 = vsel %vm4285, %v4275, %v4284
          %vm4287 = vcmp.eq.f32.partialorder %v4275, 0.0
          %v4288 = vand.u32 %v4275, 2147483648
          %v4289 = vsel %vm4287, %v4288, %v4286
          %v4290 = vadd.f32 %v4282, 1e-12
          %v4291 = vadd.f32 %v4289, 1e-12
          %v4292 = vrcp.pop %v4290
          %v4293 = vrcp.pop %v4291
          %v4294 = vmul.f32 %v368, %v4292
          %v4295 = vmul.f32 %v369, %v4292
          %v4296 = vmul.f32 %v370, %v4292
          %v4297 = vmul.f32 %v371, %v4292
          %v4298 = vmul.f32 %v372, %v4292
          %v4299 = vmul.f32 %v373, %v4292
          %v4300 = vmul.f32 %v374, %v4292
          %v4301 = vmul.f32 %v375, %v4292
          %v4302 = vmul.f32 %v376, %v4292
          %v4303 = vmul.f32 %v377, %v4292
          %v4304 = vmul.f32 %v378, %v4292
          %v4305 = vmul.f32 %v379, %v4292
          %v4306 = vmul.f32 %v380, %v4292
          %v4307 = vmul.f32 %v381, %v4292
          %v4308 = vmul.f32 %v382, %v4292
          %v4309 = vmul.f32 %v383, %v4292
          %v4310 = vmul.f32 %v384, %v4293
          %v4311 = vmul.f32 %v385, %v4293
          %v4312 = vmul.f32 %v386, %v4293
          %v4313 = vmul.f32 %v387, %v4293
          %v4314 = vmul.f32 %v388, %v4293
          %v4315 = vmul.f32 %v389, %v4293
          %v4316 = vmul.f32 %v390, %v4293
          %v4317 = vmul.f32 %v391, %v4293
          %v4318 = vmul.f32 %v392, %v4293
          %v4319 = vmul.f32 %v393, %v4293
          %v4320 = vmul.f32 %v394, %v4293
          %v4321 = vmul.f32 %v395, %v4293
          %v4322 = vmul.f32 %v396, %v4293
          %v4323 = vmul.f32 %v397, %v4293
          %v4324 = vmul.f32 %v398, %v4293
          %v4325 = vmul.f32 %v399, %v4293
          %4326 = vst [vmem:[%s328] sm:$0xff] %v4294
          %4327 = vst [vmem:[%s328 + $0x8] sm:$0xff] %v4295
          %4328 = vst [vmem:[%s328 + $0x10] sm:$0xff] %v4296
          %4329 = vst [vmem:[%s328 + $0x18] sm:$0xff] %v4297
          %4330 = vst [vmem:[%s328 + $0x20] sm:$0xff] %v4298
          %4331 = vst [vmem:[%s328 + $0x28] sm:$0xff] %v4299
          %4332 = vst [vmem:[%s328 + $0x30] sm:$0xff] %v4300
          %4333 = vst [vmem:[%s328 + $0x38] sm:$0xff] %v4301
          %4334 = vst [vmem:[%s328 + $0x40] sm:$0xff] %v4302
          %4335 = vst [vmem:[%s328 + $0x48] sm:$0xff] %v4303
          %4336 = vst [vmem:[%s328 + $0x50] sm:$0xff] %v4304
          %4337 = vst [vmem:[%s328 + $0x58] sm:$0xff] %v4305
          %4338 = vst [vmem:[%s328 + $0x60] sm:$0xff] %v4306
          %4339 = vst [vmem:[%s328 + $0x68] sm:$0xff] %v4307
          %4340 = vst [vmem:[%s328 + $0x70] sm:$0xff] %v4308
          %4341 = vst [vmem:[%s328 + $0x78] sm:$0xff] %v4309
          %4342 = vst [vmem:[%s328 + $0x80] sm:$0xff] %v4310
          %4343 = vst [vmem:[%s328 + $0x88] sm:$0xff] %v4311
          %4344 = vst [vmem:[%s328 + $0x90] sm:$0xff] %v4312
          %4345 = vst [vmem:[%s328 + $0x98] sm:$0xff] %v4313
          %4346 = vst [vmem:[%s328 + $0xa0] sm:$0xff] %v4314
          %4347 = vst [vmem:[%s328 + $0xa8] sm:$0xff] %v4315
          %4348 = vst [vmem:[%s328 + $0xb0] sm:$0xff] %v4316
          %4349 = vst [vmem:[%s328 + $0xb8] sm:$0xff] %v4317
          %4350 = vst [vmem:[%s328 + $0xc0] sm:$0xff] %v4318
          %4351 = vst [vmem:[%s328 + $0xc8] sm:$0xff] %v4319
          %4352 = vst [vmem:[%s328 + $0xd0] sm:$0xff] %v4320
          %4353 = vst [vmem:[%s328 + $0xd8] sm:$0xff] %v4321
          %4354 = vst [vmem:[%s328 + $0xe0] sm:$0xff] %v4322
          %4355 = vst [vmem:[%s328 + $0xe8] sm:$0xff] %v4323
          %4356 = vst [vmem:[%s328 + $0xf0] sm:$0xff] %v4324
          %4357 = vst [vmem:[%s328 + $0xf8] sm:$0xff] %v4325
        $region48: #{tpu_custom_call.1} parent=31 // pred_fallthru
          _
        %s4358 = sand.u32 %s126, 1
        %s4359 = scalar_lea.sflag [#allocation4], %s4358
        %s4360 = sand.u32 %s126, 1
        %s4361 = smul.addr %s4360, 256
        %s4362 = scalar_lea.vmem [#allocation8], %s4361
        %s4363 = sand.u32 %s154, 1
        %s4364 = scalar_lea.sflag [#allocation10], %s4363
        %s4365 = sand.u32 %s154, 1
        %s4366 = smul.addr %s4365, 64
        %s4367 = scalar_lea.vmem [#allocation9], %s4366
        // Predicated region
        $region49: #{tpu_custom_call.1} parent=31 // pred_check
          %p4368 = pneg %p136
        $region50: #{tpu_custom_call.1} parent=31 // pred_check_branch
          %4370 = sbr.rel (%p4368) target = $region52
        $region51: #{tpu_custom_call.1} parent=31 // pred_region
          %s4371 = smul.u32 2, %s32
          %s4372 = ssub.s32 3, %s4371
          %p4373 = scmp.lt.s32.totalorder %s4372, 2
          %s4374 = scalar_select %p4373, %s4372, 2
          %s4375 = smul.u32 128, %s4374
          %s4376 = smul.u32 %s4375, 16
          %s4378 = ssub.s32 4096, %s4376
          %4379 = vsyncadd %s4359, %s4378
          %p4380 = scmp.ne.s32.totalorder 0, %s4376
          %s4381 = smul.addr %s4371, 16
          %s4382 = smul.addr %s4381, 128
          %s4383 = scalar_lea.hbm %s3, %s4382
          %s4384 = smul.u32 128, %s4374
          %s4385 = sshll.u32 %s4362, 4
          %s4386 = int_to_ptr.vmem [resolvable:$true] %s4385
          %s4387 = sshll.u32 %s4384, 4
          %4391 = dma.vmem_to_hbm [thread:$0]  (%p4380), %s4386, %s4387, %s4383, %s4359, 2048, 2048, 128
        $region52: #{tpu_custom_call.1} parent=31 // pred_fallthru
          _
        // Predicated region
        $region53: #{tpu_custom_call.1} parent=31 // pred_check
          %p4392 = pneg %p164
        $region54: #{tpu_custom_call.1} parent=31 // pred_check_branch
          %4394 = sbr.rel (%p4392) target = $region56
        $region55: #{tpu_custom_call.1} parent=31 // pred_region
          %s4395 = smul.u32 2, %s32
          %s4396 = smul.u32 4, %s33
          %s4397 = ssub.s32 3, %s4395
          %p4398 = scmp.lt.s32.totalorder %s4397, 2
          %s4399 = scalar_select %p4398, %s4397, 2
          %s4400 = smul.u32 128, %s4399
          %s4401 = ssub.s32 5, %s4396
          %p4402 = scmp.lt.s32.totalorder %s4401, 4
          %s4403 = scalar_select %p4402, %s4401, 4
          %s4404 = smul.u32 %s4400, %s4403
          %s4406 = ssub.s32 1024, %s4404
          %4407 = vsyncadd %s4364, %s4406
          %p4408 = scmp.ne.s32.totalorder 0, %s4404
          %s4409 = smul.addr %s4395, 5
          %s4410 = sadd.s32 %s4396, %s4409
          %s4411 = smul.addr %s4410, 128
          %s4412 = scalar_lea.hbm %s4, %s4411
          %s4413 = smul.u32 %s4403, 8
          %s4414 = smul.u32 %s4413, %s4399
          %s4415 = sshll.u32 %s4367, 4
          %s4416 = int_to_ptr.vmem [resolvable:$true] %s4415
          %s4417 = sshll.u32 %s4414, 4
          %4421 = dma.vmem_to_hbm [thread:$0]  (%p4408), %s4416, %s4417, %s4412, %s4364, 512, 640, %s4413
        $region56: #{tpu_custom_call.1} parent=31 // pred_fallthru
          _
      $region32: #{tpu_custom_call.1} parent=5 // pred_fallthru
        _
      %p4422 = scmp.le.s32.totalorder 2, %s23
      // Predicated region
      $region57: #{tpu_custom_call.1} parent=5 // pred_check
        %p4423 = pneg %p4422
      $region58: #{tpu_custom_call.1} parent=5 // pred_check_branch
        %4425 = sbr.rel (%p4423) target = $region60
      $region59: #{tpu_custom_call.1} parent=5 // pred_region
        %s4426 = ssub.s32 %s23, 2
        // Predicated region
        $region61: #{tpu_custom_call.1} parent=59 // pred_check
          %p4427 = pneg %p142
        $region62: #{tpu_custom_call.1} parent=59 // pred_check_branch
          %4429 = sbr.rel (%p4427) target = $region64
        $region63: #{tpu_custom_call.1} parent=59 // pred_region
          %s4430 = sand.u32 %s127, 1
          %s4431 = scalar_lea.sflag [#allocation4], %s4430
          %s4432 = sand.u32 %s127, 1
          %s4433 = smul.addr %s4432, 256
          %s4434 = scalar_lea.vmem [#allocation8], %s4433
          %4435 = dma.done %s4431, 4096
        $region64: #{tpu_custom_call.1} parent=59 // pred_fallthru
          _
        // Predicated region
        $region65: #{tpu_custom_call.1} parent=59 // pred_check
          %p4436 = pneg %p170
        $region66: #{tpu_custom_call.1} parent=59 // pred_check_branch
          %4438 = sbr.rel (%p4436) target = $region68
        $region67: #{tpu_custom_call.1} parent=59 // pred_region
          %s4439 = sand.u32 %s155, 1
          %s4440 = scalar_lea.sflag [#allocation10], %s4439
          %s4441 = sand.u32 %s155, 1
          %s4442 = smul.addr %s4441, 64
          %s4443 = scalar_lea.vmem [#allocation9], %s4442
          %4444 = dma.done %s4440, 1024
        $region68: #{tpu_custom_call.1} parent=59 // pred_fallthru
          _
      $region60: #{tpu_custom_call.1} parent=5 // pred_fallthru
        _
    $region6: #{tpu_custom_call.1} parent=1 // loop_footer
      %s27 = sadd.s32 1, %s23
    $region7: #{tpu_custom_call.1} parent=1 // loop_footer_branch
      %22 = sbr.rel target = $region3
    $region8: #{tpu_custom_call.1} parent=1 // loop_exit
      _
    %4445 = vsyncpa [#allocation3], 1
    %s4446 = scalar_lea.sflag [#allocation3], 1
    %4447 = vsyncpa %s4446, 1
    %4448 = vsyncpa [#allocation6], 1
    %s4449 = scalar_lea.sflag [#allocation6], 1
    %4450 = vsyncpa %s4449, 1
    %4451 = vsyncpa [#allocation4], 1
    %s4452 = scalar_lea.sflag [#allocation4], 1
    %4453 = vsyncpa %s4452, 1
    %4454 = vsyncpa [#allocation10], 1
    %s4455 = scalar_lea.sflag [#allocation10], 1
    %4456 = vsyncpa %s4455, 1

</llo_original>
